<compile_context>
chip_gen: v7x
topology: tpu7x:2x2x1
jax: 0.10.0
libtpu: 0.0.40
codegen_flags: <defaults>
</compile_context>

<pallas_src>
import functools
import math

import jax
import jax.numpy as jnp
from jax.experimental import pallas as pl
from jax.experimental.pallas import tpu as pltpu

# ----------------------------- config (small) -----------------------------
B = 2
C = 3
IMG = 32
PATCH = 16
N_PATCH = (IMG // PATCH) ** 2          # 4
SEQ = N_PATCH + 1                      # 5 (cls token + patches)
SEQ_PAD = 8                            # sublane-aligned tokens per batch
TOK = B * SEQ_PAD                      # 16 padded token rows
D = 32                                 # embed dim (768 in the real model)
HEADS = 2
HEAD_DIM = D // HEADS                  # 16
MLP = 4 * D                            # 128
DEPTH = 2
NUM_CLASS = 2
S_SCALE = 1.0                          # BinaryHead(s=1)
LN_EPS = 1e-6                          # timm ViT LayerNorm eps
BN_EPS = 1e-5                          # nn.BatchNorm1d eps
PATCH_DIM = C * PATCH * PATCH          # 768
NEG_INF = -1e30


# ----------------------------- spec helper -----------------------------
def _full_spec(shape):
    nd = len(shape)
    return pl.BlockSpec(shape, lambda g, _nd=nd: (0,) * _nd)


# ----------------------------- fused kernel -----------------------------
def _layernorm(x, gamma, beta):
    mu = jnp.mean(x, axis=-1, keepdims=True)
    var = jnp.mean(jnp.square(x - mu), axis=-1, keepdims=True)
    return (x - mu) * jax.lax.rsqrt(var + LN_EPS) * gamma + beta


def fused_vit_kernel(xp_ref, pw_ref, add_ref, wattn_ref, wfc1_ref, wfc2_ref,
                     pvec_ref, epi_ref, o_ref):
    f32 = jnp.float32
    bf16 = jnp.bfloat16

    # --- patch embedding: Conv2d(k=16,s=16) == matmul on pre-placed patch rows.
    # xp rows are already laid out so outputs land at token slots b*8 + 1..4
    # (zero rows at cls/pad slots); addend carries cls+pos / patch_bias+pos / 0.
    x = jnp.dot(xp_ref[...], pw_ref[...], preferred_element_type=f32)   # [TOK, D]
    x = x + add_ref[...]
    # pos_drop(p=0) and self.dropout are unused in forward -> no-ops.

    # --- per-head lane masks (softmax scale folded into Q mask; exact: 2^-2) ---
    lane = jax.lax.broadcasted_iota(jnp.int32, (1, D), 1)
    scale = 1.0 / math.sqrt(HEAD_DIM)
    qmasks, vmasks = [], []
    for h in range(HEADS):
        in_h = (lane >= h * HEAD_DIM) & (lane < (h + 1) * HEAD_DIM)
        qmasks.append(jnp.where(in_h, scale, 0.0).astype(f32))          # [1, D]
        vmasks.append(jnp.where(in_h, 1.0, 0.0).astype(f32))            # [1, D]

    # --- block-diagonal batch mask; padded key rows (token 5..7) masked out ---
    qi = jax.lax.broadcasted_iota(jnp.int32, (TOK, TOK), 0)
    kj = jax.lax.broadcasted_iota(jnp.int32, (TOK, TOK), 1)
    ok = None
    for b in range(B):
        q_in = (qi >= b * SEQ_PAD) & (qi < (b + 1) * SEQ_PAD)
        k_in = (kj >= b * SEQ_PAD) & (kj < b * SEQ_PAD + SEQ)
        blk = q_in & k_in
        ok = blk if ok is None else (ok | blk)
    attn_bias = jnp.where(ok, 0.0, NEG_INF).astype(f32)                 # [TOK, TOK]

    for l in range(DEPTH):
        # packed per-layer vectors (row layout fixed in the wrapper)
        ln1g = pvec_ref[l, 0:1, 0:D]
        ln1b = pvec_ref[l, 1:2, 0:D]
        bq = pvec_ref[l, 2:3, 0:D]
        bk = pvec_ref[l, 3:4, 0:D]
        bv = pvec_ref[l, 4:5, 0:D]
        bproj = pvec_ref[l, 5:6, 0:D]
        ln2g = pvec_ref[l, 6:7, 0:D]
        ln2b = pvec_ref[l, 7:8, 0:D]
        bfc2 = pvec_ref[l, 8:9, 0:D]
        bfc1 = pvec_ref[l, 9:10, :]

        # --- LayerNorm 1 + Q/K/V projections (single bf16 cast of xn, reused) ---
        xn = _layernorm(x, ln1g, ln1b)
        xnb = xn.astype(bf16)
        q = jnp.dot(xnb, wattn_ref[l, 0], preferred_element_type=f32) + bq
        k = jnp.dot(xnb, wattn_ref[l, 1], preferred_element_type=f32) + bk
        v = jnp.dot(xnb, wattn_ref[l, 2], preferred_element_type=f32) + bv

        kTb = k.T.astype(bf16)                                          # [D, TOK]

        # --- head-masked full-tile attention ---
        attn = jnp.zeros((TOK, D), f32)
        for h in range(HEADS):
            qmh = (q * qmasks[h]).astype(bf16)                          # [TOK, D]
            s = jnp.dot(qmh, kTb, preferred_element_type=f32)           # [TOK, TOK]
            s = s + attn_bias
            s = s - jnp.max(s, axis=-1, keepdims=True)
            p_ = jnp.exp(s)
            p_ = p_ * pl.reciprocal(jnp.sum(p_, axis=-1, keepdims=True))
            vmh = (v * vmasks[h]).astype(bf16)                          # [TOK, D]
            attn = attn + jnp.dot(p_.astype(bf16), vmh,
                                  preferred_element_type=f32)           # head h lanes

        x = x + jnp.dot(attn.astype(bf16), wattn_ref[l, 3],
                        preferred_element_type=f32) + bproj

        # --- LayerNorm 2 + MLP (exact erf GELU, like nn.GELU) ---
        xn2 = _layernorm(x, ln2g, ln2b)
        h1 = jnp.dot(xn2.astype(bf16), wfc1_ref[l],
                     preferred_element_type=f32) + bfc1                 # [TOK, MLP]
        h1 = 0.5 * h1 * (1.0 + jax.lax.erf(h1 * (1.0 / math.sqrt(2.0))))
        x = x + jnp.dot(h1.astype(bf16), wfc2_ref[l],
                        preferred_element_type=f32) + bfc2

    # --- cls token features (rows 0 and 8; 8-aligned), net.norm/head = Identity ---
    cls_feat = jnp.concatenate(
        [x[b * SEQ_PAD:b * SEQ_PAD + 1] for b in range(B)], axis=0)     # [B, D]

    # --- BatchNorm1d: training-mode batch stats (biased var), beta frozen at 0 ---
    bn_g = epi_ref[0:1, :]
    bn_b = epi_ref[1:2, :]
    mu_b = jnp.mean(cls_feat, axis=0, keepdims=True)
    var_b = jnp.mean(jnp.square(cls_feat - mu_b), axis=0, keepdims=True)
    xb = (cls_feat - mu_b) * jax.lax.rsqrt(var_b + BN_EPS) * bn_g + bn_b

    # --- l2_norm along axis=1 (torch.norm(.,2,1,True); no eps, matching spec) ---
    xl = xb * jax.lax.rsqrt(jnp.sum(xb * xb, axis=1, keepdims=True))

    # --- BinaryHead fc * s (per-class reductions against head_w^T rows) ---
    hb = epi_ref[2:3, 0:NUM_CLASS]                                      # [1, NC]
    cols = []
    for ci in range(NUM_CLASS):
        w_c = epi_ref[3 + ci:4 + ci, :]                                 # [1, D]
        cols.append(jnp.sum(xl * w_c, axis=1, keepdims=True))           # [B, 1]
    logits = jnp.concatenate(cols, axis=1) + hb                         # [B, NC]
    o_ref[...] = logits * S_SCALE


# ----------------------------- wrapper -----------------------------
def extract_patches(x):
    # x: [B, C, H, W] (NCHW, like the PyTorch conv input) -> [B, N_PATCH, C*P*P]
    b, c, h, w = x.shape
    gh, gw = h // PATCH, w // PATCH
    x = x.reshape(b, c, gh, PATCH, gw, PATCH)
    x = x.transpose(0, 2, 4, 1, 3, 5)                     # [B, gh, gw, C, P, P]
    return x.reshape(b, gh * gw, c * PATCH * PATCH)


def vit_bh_forward(x, p):
    bf16 = jnp.bfloat16
    f32 = jnp.float32

    # token-slot-aligned patch rows: slot b*8 + 1..4 holds batch b's patches
    patches = extract_patches(x)                                         # [B, NP, 768]
    xp_pad = jnp.zeros((B, SEQ_PAD, PATCH_DIM), f32)
    xp_pad = xp_pad.at[:, 1:1 + N_PATCH].set(patches)
    xp_pad = xp_pad.reshape(TOK, PATCH_DIM).astype(bf16)

    # additive tensor: cls+pos at slot 0, patch_bias+pos at 1..4, zeros at pads
    pos = p["pos"].reshape(SEQ, D)
    add_b = jnp.zeros((SEQ_PAD, D), f32)
    add_b = add_b.at[0].set(p["cls"].reshape(D) + pos[0])
    add_b = add_b.at[1:SEQ].set(pos[1:] + p["patch_b"].reshape(1, D))
    addend = jnp.tile(add_b, (B, 1))                                     # [TOK, D]

    # packed bf16 weight slabs (leading depth axis; sliced with static ints in-kernel)
    wq = p["wqkv"][:, :, 0:D]
    wk = p["wqkv"][:, :, D:2 * D]
    wv = p["wqkv"][:, :, 2 * D:]
    w_attn = jnp.stack([wq, wk, wv, p["wproj"]], axis=1).astype(bf16)    # [DEPTH,4,D,D]
    w_fc1 = p["wfc1"].astype(bf16)                                       # [DEPTH,D,MLP]
    w_fc2 = p["wfc2"].astype(bf16)                                       # [DEPTH,MLP,D]

    # packed f32 vector slab: LN gammas/betas + all biases, one row each
    def pad_d(v):
        return jnp.pad(v.reshape(DEPTH, -1), ((0, 0), (0, MLP - D)))

    bq = p["bqkv"][:, 0, 0:D]
    bk = p["bqkv"][:, 0, D:2 * D]
    bv = p["bqkv"][:, 0, 2 * D:]
    pvec = jnp.stack([
        pad_d(p["ln1g"]), pad_d(p["ln1b"]), pad_d(bq), pad_d(bk), pad_d(bv),
        pad_d(p["bproj"]), pad_d(p["ln2g"]), pad_d(p["ln2b"]), pad_d(p["bfc2"]),
        p["bfc1"].reshape(DEPTH, MLP)], axis=1)                          # [DEPTH,10,MLP]

    # epilogue slab: bn_gamma, bn_beta, head_b (padded), head_w^T rows
    head_b = jnp.pad(p["head_b"].reshape(NUM_CLASS), (0, D - NUM_CLASS))
    epi = jnp.concatenate([p["bn_gamma"].reshape(1, D),
                           p["bn_beta"].reshape(1, D),
                           head_b.reshape(1, D),
                           p["head_w"].T], axis=0)                       # [3+NC, D]

    args = (xp_pad, p["patch_w"].astype(bf16), addend,
            w_attn, w_fc1, w_fc2, pvec, epi)

    return pl.pallas_call(
        fused_vit_kernel,
        out_shape=jax.ShapeDtypeStruct((B, NUM_CLASS), jnp.float32),
        grid=(1,),                                         # whole forward in one step
        in_specs=[_full_spec(a.shape) for a in args],
        out_specs=_full_spec((B, NUM_CLASS)),
        compiler_params=pltpu.CompilerParams(
            dimension_semantics=("arbitrary",)),           # tiny workload: single TC
    )(*args)


# ----------------------------- params -----------------------------
def init_params(key):
    keys = jax.random.split(key, 4 + DEPTH)
    p = {
        "patch_w": jax.random.normal(keys[0], (C * PATCH * PATCH, D), jnp.float32) * 0.02,
        "patch_b": jnp.zeros((1, D), jnp.float32),
        "cls": jax.random.normal(keys[1], (1, 1, D), jnp.float32) * 0.02,
        "pos": jax.random.normal(keys[2], (1, SEQ, D), jnp.float32) * 0.02,
        "bn_gamma": jnp.ones((1, D), jnp.float32),
        "bn_beta": jnp.zeros((1, D), jnp.float32),          # requires_grad_(False), stays 0
        "head_w": jax.random.normal(keys[3], (D, NUM_CLASS), jnp.float32) * 0.02,
        "head_b": jnp.zeros((1, NUM_CLASS), jnp.float32),
    }
    names = ("ln1g", "ln1b", "wqkv", "bqkv", "wproj", "bproj",
             "ln2g", "ln2b", "wfc1", "bfc1", "wfc2", "bfc2")
    blk = {n: [] for n in names}
    for l in range(DEPTH):
        k = jax.random.split(keys[4 + l], 4)
        blk["ln1g"].append(jnp.ones((1, D), jnp.float32))
        blk["ln1b"].append(jnp.zeros((1, D), jnp.float32))
        blk["wqkv"].append(jax.random.normal(k[0], (D, 3 * D), jnp.float32) * 0.02)
        blk["bqkv"].append(jnp.zeros((1, 3 * D), jnp.float32))
        blk["wproj"].append(jax.random.normal(k[1], (D, D), jnp.float32) * 0.02)
        blk["bproj"].append(jnp.zeros((1, D), jnp.float32))
        blk["ln2g"].append(jnp.ones((1, D), jnp.float32))
        blk["ln2b"].append(jnp.zeros((1, D), jnp.float32))
        blk["wfc1"].append(jax.random.normal(k[2], (D, MLP), jnp.float32) * 0.02)
        blk["bfc1"].append(jnp.zeros((1, MLP), jnp.float32))
        blk["wfc2"].append(jax.random.normal(k[3], (MLP, D), jnp.float32) * 0.02)
        blk["bfc2"].append(jnp.zeros((1, D), jnp.float32))
    for n in names:
        p[n] = jnp.stack(blk[n], axis=0)                    # leading DEPTH axis
    return p


if __name__ == "__main__":
    key = jax.random.PRNGKey(0)
    kx, kp = jax.random.split(key)
    x = jax.random.normal(kx, (B, C, IMG, IMG), jnp.float32)
    params = init_params(kp)

    # TODO(synk): timm pretrained vit_base_patch16_384 weights are not loadable here;
    # the backbone is randomly initialized at a scaled-down config.
    fwd = jax.jit(functools.partial(vit_bh_forward, p=params))
    out = fwd(x)
    jax.block_until_ready(out)
    assert out.shape == (B, NUM_CLASS) and out.dtype == jnp.float32
    assert bool(jnp.all(jnp.isfinite(out)))
    print("KERNEL_OK")
</pallas_src>

<mosaic_0001>
module attributes {stable_mosaic.version = 11 : i64} {
  func.func @fused_vit_kernel(%arg0: i32, %arg1: memref<16x768xbf16, #tpu.memory_space<vmem>>, %arg2: memref<768x32xbf16, #tpu.memory_space<vmem>>, %arg3: memref<16x32xf32, #tpu.memory_space<vmem>>, %arg4: memref<2x4x32x32xbf16, #tpu.memory_space<vmem>>, %arg5: memref<2x32x128xbf16, #tpu.memory_space<vmem>>, %arg6: memref<2x128x32xbf16, #tpu.memory_space<vmem>>, %arg7: memref<2x10x128xf32, #tpu.memory_space<vmem>>, %arg8: memref<5x32xf32, #tpu.memory_space<vmem>>, %arg9: memref<2x2xf32, #tpu.memory_space<vmem>>) attributes {dimension_semantics = [#tpu.dimension_semantics<arbitrary>], iteration_bounds = array<i64: 1>, scalar_prefetch = 0 : i64, scratch_operands = 0 : i64, tpu.core_type = #tpu.core_type<tc>, window_params = [{pipeline_mode = #tpu.pipeline_mode<synchronous>, transform_indices = @transform_0, window_bounds = array<i64: 16, 768>}, {pipeline_mode = #tpu.pipeline_mode<synchronous>, transform_indices = @transform_1, window_bounds = array<i64: 768, 32>}, {pipeline_mode = #tpu.pipeline_mode<synchronous>, transform_indices = @transform_2, window_bounds = array<i64: 16, 32>}, {pipeline_mode = #tpu.pipeline_mode<synchronous>, transform_indices = @transform_3, window_bounds = array<i64: 2, 4, 32, 32>}, {pipeline_mode = #tpu.pipeline_mode<synchronous>, transform_indices = @transform_4, window_bounds = array<i64: 2, 32, 128>}, {pipeline_mode = #tpu.pipeline_mode<synchronous>, transform_indices = @transform_5, window_bounds = array<i64: 2, 128, 32>}, {pipeline_mode = #tpu.pipeline_mode<synchronous>, transform_indices = @transform_6, window_bounds = array<i64: 2, 10, 128>}, {pipeline_mode = #tpu.pipeline_mode<synchronous>, transform_indices = @transform_7, window_bounds = array<i64: 5, 32>}, {pipeline_mode = #tpu.pipeline_mode<synchronous>, transform_indices = @transform_8, window_bounds = array<i64: 2, 2>}]} {
    %c0 = arith.constant 0 : index
    %c0_0 = arith.constant 0 : index
    %0 = vector.load %arg1[%c0, %c0_0] : memref<16x768xbf16, #tpu.memory_space<vmem>>, vector<16x768xbf16>
    %c0_1 = arith.constant 0 : index
    %c0_2 = arith.constant 0 : index
    %1 = vector.load %arg2[%c0_1, %c0_2] : memref<768x32xbf16, #tpu.memory_space<vmem>>, vector<768x32xbf16>
    %cst = arith.constant dense<0.000000e+00> : vector<16x32xf32>
    %2 = tpu.matmul %0, %1, %cst {dimension_numbers = #tpu.dot_dimension_numbers<[1], [0], [0], [1], [0, 0, 1, 1], [], []>} : vector<16x768xbf16>, vector<768x32xbf16>, vector<16x32xf32> -> vector<16x32xf32>
    %c0_3 = arith.constant 0 : index
    %c0_4 = arith.constant 0 : index
    %3 = vector.load %arg3[%c0_3, %c0_4] : memref<16x32xf32, #tpu.memory_space<vmem>>, vector<16x32xf32>
    %4 = arith.addf %2, %3 : vector<16x32xf32>
    %5 = tpu.iota {dimensions = array<i32: 1>} : vector<1x32xi32>
    %c0_i32 = arith.constant 0 : i32
    %6 = vector.broadcast %c0_i32 : i32 to vector<1x32xi32>
    %7 = arith.cmpi sge, %5, %6 : vector<1x32xi32>
    %c16_i32 = arith.constant 16 : i32
    %8 = vector.broadcast %c16_i32 : i32 to vector<1x32xi32>
    %9 = arith.cmpi slt, %5, %8 : vector<1x32xi32>
    %10 = arith.andi %7, %9 : vector<1x32xi1>
    %cst_5 = arith.constant 2.500000e-01 : f32
    %cst_6 = arith.constant 0.000000e+00 : f32
    %11 = vector.broadcast %cst_5 : f32 to vector<1x32xf32>
    %12 = vector.broadcast %cst_6 : f32 to vector<1x32xf32>
    %13 = arith.select %10, %11, %12 : vector<1x32xi1>, vector<1x32xf32>
    %cst_7 = arith.constant 1.000000e+00 : f32
    %cst_8 = arith.constant 0.000000e+00 : f32
    %14 = vector.broadcast %cst_7 : f32 to vector<1x32xf32>
    %15 = vector.broadcast %cst_8 : f32 to vector<1x32xf32>
    %16 = arith.select %10, %14, %15 : vector<1x32xi1>, vector<1x32xf32>
    %c16_i32_9 = arith.constant 16 : i32
    %17 = vector.broadcast %c16_i32_9 : i32 to vector<1x32xi32>
    %18 = arith.cmpi sge, %5, %17 : vector<1x32xi32>
    %c32_i32 = arith.constant 32 : i32
    %19 = vector.broadcast %c32_i32 : i32 to vector<1x32xi32>
    %20 = arith.cmpi slt, %5, %19 : vector<1x32xi32>
    %21 = arith.andi %18, %20 : vector<1x32xi1>
    %cst_10 = arith.constant 2.500000e-01 : f32
    %cst_11 = arith.constant 0.000000e+00 : f32
    %22 = vector.broadcast %cst_10 : f32 to vector<1x32xf32>
    %23 = vector.broadcast %cst_11 : f32 to vector<1x32xf32>
    %24 = arith.select %21, %22, %23 : vector<1x32xi1>, vector<1x32xf32>
    %cst_12 = arith.constant 1.000000e+00 : f32
    %cst_13 = arith.constant 0.000000e+00 : f32
    %25 = vector.broadcast %cst_12 : f32 to vector<1x32xf32>
    %26 = vector.broadcast %cst_13 : f32 to vector<1x32xf32>
    %27 = arith.select %21, %25, %26 : vector<1x32xi1>, vector<1x32xf32>
    %28 = tpu.iota {dimensions = array<i32: 0>} : vector<16x16xi32>
    %29 = tpu.iota {dimensions = array<i32: 1>} : vector<16x16xi32>
    %c0_i32_14 = arith.constant 0 : i32
    %30 = vector.broadcast %c0_i32_14 : i32 to vector<16x16xi32>
    %31 = arith.cmpi sge, %28, %30 : vector<16x16xi32>
    %c8_i32 = arith.constant 8 : i32
    %32 = vector.broadcast %c8_i32 : i32 to vector<16x16xi32>
    %33 = arith.cmpi slt, %28, %32 : vector<16x16xi32>
    %34 = arith.andi %31, %33 : vector<16x16xi1>
    %c0_i32_15 = arith.constant 0 : i32
    %35 = vector.broadcast %c0_i32_15 : i32 to vector<16x16xi32>
    %36 = arith.cmpi sge, %29, %35 : vector<16x16xi32>
    %c5_i32 = arith.constant 5 : i32
    %37 = vector.broadcast %c5_i32 : i32 to vector<16x16xi32>
    %38 = arith.cmpi slt, %29, %37 : vector<16x16xi32>
    %39 = arith.andi %36, %38 : vector<16x16xi1>
    %40 = arith.andi %34, %39 : vector<16x16xi1>
    %c8_i32_16 = arith.constant 8 : i32
    %41 = vector.broadcast %c8_i32_16 : i32 to vector<16x16xi32>
    %42 = arith.cmpi sge, %28, %41 : vector<16x16xi32>
    %c16_i32_17 = arith.constant 16 : i32
    %43 = vector.broadcast %c16_i32_17 : i32 to vector<16x16xi32>
    %44 = arith.cmpi slt, %28, %43 : vector<16x16xi32>
    %45 = arith.andi %42, %44 : vector<16x16xi1>
    %c8_i32_18 = arith.constant 8 : i32
    %46 = vector.broadcast %c8_i32_18 : i32 to vector<16x16xi32>
    %47 = arith.cmpi sge, %29, %46 : vector<16x16xi32>
    %c13_i32 = arith.constant 13 : i32
    %48 = vector.broadcast %c13_i32 : i32 to vector<16x16xi32>
    %49 = arith.cmpi slt, %29, %48 : vector<16x16xi32>
    %50 = arith.andi %47, %49 : vector<16x16xi1>
    %51 = arith.andi %45, %50 : vector<16x16xi1>
    %52 = arith.ori %40, %51 : vector<16x16xi1>
    %cst_19 = arith.constant 0.000000e+00 : f32
    %cst_20 = arith.constant -1.000000e+30 : f32
    %53 = vector.broadcast %cst_19 : f32 to vector<16x16xf32>
    %54 = vector.broadcast %cst_20 : f32 to vector<16x16xf32>
    %55 = arith.select %52, %53, %54 : vector<16x16xi1>, vector<16x16xf32>
    %c0_21 = arith.constant 0 : index
    %c0_22 = arith.constant 0 : index
    %c0_23 = arith.constant 0 : index
    %56 = vector.load %arg7[%c0_21, %c0_22, %c0_23] : memref<2x10x128xf32, #tpu.memory_space<vmem>>, vector<1x1x32xf32>
    %57 = vector.shape_cast %56 : vector<1x1x32xf32> to vector<1x32xf32>
    %c0_24 = arith.constant 0 : index
    %c1 = arith.constant 1 : index
    %c0_25 = arith.constant 0 : index
    %58 = vector.load %arg7[%c0_24, %c1, %c0_25] : memref<2x10x128xf32, #tpu.memory_space<vmem>>, vector<1x1x32xf32>
    %59 = vector.shape_cast %58 : vector<1x1x32xf32> to vector<1x32xf32>
    %c0_26 = arith.constant 0 : index
    %c2 = arith.constant 2 : index
    %c0_27 = arith.constant 0 : index
    %60 = vector.load %arg7[%c0_26, %c2, %c0_27] : memref<2x10x128xf32, #tpu.memory_space<vmem>>, vector<1x1x32xf32>
    %61 = vector.shape_cast %60 : vector<1x1x32xf32> to vector<1x32xf32>
    %c0_28 = arith.constant 0 : index
    %c3 = arith.constant 3 : index
    %c0_29 = arith.constant 0 : index
    %62 = vector.load %arg7[%c0_28, %c3, %c0_29] : memref<2x10x128xf32, #tpu.memory_space<vmem>>, vector<1x1x32xf32>
    %63 = vector.shape_cast %62 : vector<1x1x32xf32> to vector<1x32xf32>
    %c0_30 = arith.constant 0 : index
    %c4 = arith.constant 4 : index
    %c0_31 = arith.constant 0 : index
    %64 = vector.load %arg7[%c0_30, %c4, %c0_31] : memref<2x10x128xf32, #tpu.memory_space<vmem>>, vector<1x1x32xf32>
    %65 = vector.shape_cast %64 : vector<1x1x32xf32> to vector<1x32xf32>
    %c0_32 = arith.constant 0 : index
    %c5 = arith.constant 5 : index
    %c0_33 = arith.constant 0 : index
    %66 = vector.load %arg7[%c0_32, %c5, %c0_33] : memref<2x10x128xf32, #tpu.memory_space<vmem>>, vector<1x1x32xf32>
    %67 = vector.shape_cast %66 : vector<1x1x32xf32> to vector<1x32xf32>
    %c0_34 = arith.constant 0 : index
    %c6 = arith.constant 6 : index
    %c0_35 = arith.constant 0 : index
    %68 = vector.load %arg7[%c0_34, %c6, %c0_35] : memref<2x10x128xf32, #tpu.memory_space<vmem>>, vector<1x1x32xf32>
    %69 = vector.shape_cast %68 : vector<1x1x32xf32> to vector<1x32xf32>
    %c0_36 = arith.constant 0 : index
    %c7 = arith.constant 7 : index
    %c0_37 = arith.constant 0 : index
    %70 = vector.load %arg7[%c0_36, %c7, %c0_37] : memref<2x10x128xf32, #tpu.memory_space<vmem>>, vector<1x1x32xf32>
    %71 = vector.shape_cast %70 : vector<1x1x32xf32> to vector<1x32xf32>
    %c0_38 = arith.constant 0 : index
    %c8 = arith.constant 8 : index
    %c0_39 = arith.constant 0 : index
    %72 = vector.load %arg7[%c0_38, %c8, %c0_39] : memref<2x10x128xf32, #tpu.memory_space<vmem>>, vector<1x1x32xf32>
    %73 = vector.shape_cast %72 : vector<1x1x32xf32> to vector<1x32xf32>
    %c0_40 = arith.constant 0 : index
    %c9 = arith.constant 9 : index
    %c0_41 = arith.constant 0 : index
    %74 = vector.load %arg7[%c0_40, %c9, %c0_41] : memref<2x10x128xf32, #tpu.memory_space<vmem>>, vector<1x1x128xf32>
    %75 = vector.shape_cast %74 : vector<1x1x128xf32> to vector<1x128xf32>
    %cst_42 = arith.constant dense<0.000000e+00> : vector<16xf32>
    %76 = vector.multi_reduction <add>, %4, %cst_42 [1] : vector<16x32xf32> to vector<16xf32>
    %77 = vector.shape_cast %76 : vector<16xf32> to vector<16x1xf32>
    %cst_43 = arith.constant 3.200000e+01 : f32
    %78 = vector.broadcast %cst_43 : f32 to vector<16x1xf32>
    %79 = arith.divf %77, %78 : vector<16x1xf32>
    %80 = vector.broadcast %79 : vector<16x1xf32> to vector<16x32xf32>
    %81 = arith.subf %4, %80 : vector<16x32xf32>
    %82 = arith.mulf %81, %81 : vector<16x32xf32>
    %cst_44 = arith.constant dense<0.000000e+00> : vector<16xf32>
    %83 = vector.multi_reduction <add>, %82, %cst_44 [1] : vector<16x32xf32> to vector<16xf32>
    %84 = vector.shape_cast %83 : vector<16xf32> to vector<16x1xf32>
    %cst_45 = arith.constant 3.200000e+01 : f32
    %85 = vector.broadcast %cst_45 : f32 to vector<16x1xf32>
    %86 = arith.divf %84, %85 : vector<16x1xf32>
    %87 = vector.broadcast %79 : vector<16x1xf32> to vector<16x32xf32>
    %88 = arith.subf %4, %87 : vector<16x32xf32>
    %cst_46 = arith.constant 9.99999997E-7 : f32
    %89 = vector.broadcast %cst_46 : f32 to vector<16x1xf32>
    %90 = arith.addf %86, %89 : vector<16x1xf32>
    %91 = math.rsqrt %90 : vector<16x1xf32>
    %92 = vector.broadcast %91 : vector<16x1xf32> to vector<16x32xf32>
    %93 = arith.mulf %88, %92 : vector<16x32xf32>
    %94 = vector.broadcast %57 : vector<1x32xf32> to vector<16x32xf32>
    %95 = arith.mulf %93, %94 : vector<16x32xf32>
    %96 = vector.broadcast %59 : vector<1x32xf32> to vector<16x32xf32>
    %97 = arith.addf %95, %96 : vector<16x32xf32>
    %98 = arith.truncf %97 : vector<16x32xf32> to vector<16x32xbf16>
    %c0_47 = arith.constant 0 : index
    %c0_48 = arith.constant 0 : index
    %c0_49 = arith.constant 0 : index
    %c0_50 = arith.constant 0 : index
    %99 = vector.load %arg4[%c0_47, %c0_48, %c0_49, %c0_50] : memref<2x4x32x32xbf16, #tpu.memory_space<vmem>>, vector<1x1x32x32xbf16>
    %100 = vector.shape_cast %99 : vector<1x1x32x32xbf16> to vector<32x32xbf16>
    %cst_51 = arith.constant dense<0.000000e+00> : vector<16x32xf32>
    %101 = tpu.matmul %98, %100, %cst_51 {dimension_numbers = #tpu.dot_dimension_numbers<[1], [0], [0], [1], [0, 0, 1, 1], [], []>} : vector<16x32xbf16>, vector<32x32xbf16>, vector<16x32xf32> -> vector<16x32xf32>
    %102 = vector.broadcast %61 : vector<1x32xf32> to vector<16x32xf32>
    %103 = arith.addf %101, %102 : vector<16x32xf32>
    %c0_52 = arith.constant 0 : index
    %c1_53 = arith.constant 1 : index
    %c0_54 = arith.constant 0 : index
    %c0_55 = arith.constant 0 : index
    %104 = vector.load %arg4[%c0_52, %c1_53, %c0_54, %c0_55] : memref<2x4x32x32xbf16, #tpu.memory_space<vmem>>, vector<1x1x32x32xbf16>
    %105 = vector.shape_cast %104 : vector<1x1x32x32xbf16> to vector<32x32xbf16>
    %cst_56 = arith.constant dense<0.000000e+00> : vector<16x32xf32>
    %106 = tpu.matmul %98, %105, %cst_56 {dimension_numbers = #tpu.dot_dimension_numbers<[1], [0], [0], [1], [0, 0, 1, 1], [], []>} : vector<16x32xbf16>, vector<32x32xbf16>, vector<16x32xf32> -> vector<16x32xf32>
    %107 = vector.broadcast %63 : vector<1x32xf32> to vector<16x32xf32>
    %108 = arith.addf %106, %107 : vector<16x32xf32>
    %c0_57 = arith.constant 0 : index
    %c2_58 = arith.constant 2 : index
    %c0_59 = arith.constant 0 : index
    %c0_60 = arith.constant 0 : index
    %109 = vector.load %arg4[%c0_57, %c2_58, %c0_59, %c0_60] : memref<2x4x32x32xbf16, #tpu.memory_space<vmem>>, vector<1x1x32x32xbf16>
    %110 = vector.shape_cast %109 : vector<1x1x32x32xbf16> to vector<32x32xbf16>
    %cst_61 = arith.constant dense<0.000000e+00> : vector<16x32xf32>
    %111 = tpu.matmul %98, %110, %cst_61 {dimension_numbers = #tpu.dot_dimension_numbers<[1], [0], [0], [1], [0, 0, 1, 1], [], []>} : vector<16x32xbf16>, vector<32x32xbf16>, vector<16x32xf32> -> vector<16x32xf32>
    %112 = vector.broadcast %65 : vector<1x32xf32> to vector<16x32xf32>
    %113 = arith.addf %111, %112 : vector<16x32xf32>
    %114 = tpu.transpose %108, [1, 0] : vector<16x32xf32> -> vector<32x16xf32>
    %115 = arith.truncf %114 : vector<32x16xf32> to vector<32x16xbf16>
    %cst_62 = arith.constant 0.000000e+00 : f32
    %116 = vector.broadcast %cst_62 : f32 to vector<16x32xf32>
    %117 = vector.broadcast %13 : vector<1x32xf32> to vector<16x32xf32>
    %118 = arith.mulf %103, %117 : vector<16x32xf32>
    %119 = arith.truncf %118 : vector<16x32xf32> to vector<16x32xbf16>
    %cst_63 = arith.constant dense<0.000000e+00> : vector<16x16xf32>
    %120 = tpu.matmul %119, %115, %cst_63 {dimension_numbers = #tpu.dot_dimension_numbers<[1], [0], [0], [1], [0, 0, 1, 1], [], []>} : vector<16x32xbf16>, vector<32x16xbf16>, vector<16x16xf32> -> vector<16x16xf32>
    %121 = arith.addf %120, %55 : vector<16x16xf32>
    %cst_64 = arith.constant dense<0xFF800000> : vector<16xf32>
    %122 = vector.multi_reduction <maximumf>, %121, %cst_64 [1] : vector<16x16xf32> to vector<16xf32>
    %123 = vector.shape_cast %122 : vector<16xf32> to vector<16x1xf32>
    %124 = vector.broadcast %123 : vector<16x1xf32> to vector<16x16xf32>
    %125 = arith.subf %121, %124 : vector<16x16xf32>
    %126 = math.exp %125 : vector<16x16xf32>
    %cst_65 = arith.constant dense<0.000000e+00> : vector<16xf32>
    %127 = vector.multi_reduction <add>, %126, %cst_65 [1] : vector<16x16xf32> to vector<16xf32>
    %128 = vector.shape_cast %127 : vector<16xf32> to vector<16x1xf32>
    %129 = tpu.reciprocal %128 : vector<16x1xf32> -> vector<16x1xf32>
    %130 = vector.broadcast %129 : vector<16x1xf32> to vector<16x16xf32>
    %131 = arith.mulf %126, %130 : vector<16x16xf32>
    %132 = vector.broadcast %16 : vector<1x32xf32> to vector<16x32xf32>
    %133 = arith.mulf %113, %132 : vector<16x32xf32>
    %134 = arith.truncf %133 : vector<16x32xf32> to vector<16x32xbf16>
    %135 = arith.truncf %131 : vector<16x16xf32> to vector<16x16xbf16>
    %cst_66 = arith.constant dense<0.000000e+00> : vector<16x32xf32>
    %136 = tpu.matmul %135, %134, %cst_66 {dimension_numbers = #tpu.dot_dimension_numbers<[1], [0], [0], [1], [0, 0, 1, 1], [], []>} : vector<16x16xbf16>, vector<16x32xbf16>, vector<16x32xf32> -> vector<16x32xf32>
    %137 = arith.addf %116, %136 : vector<16x32xf32>
    %138 = vector.broadcast %24 : vector<1x32xf32> to vector<16x32xf32>
    %139 = arith.mulf %103, %138 : vector<16x32xf32>
    %140 = arith.truncf %139 : vector<16x32xf32> to vector<16x32xbf16>
    %cst_67 = arith.constant dense<0.000000e+00> : vector<16x16xf32>
    %141 = tpu.matmul %140, %115, %cst_67 {dimension_numbers = #tpu.dot_dimension_numbers<[1], [0], [0], [1], [0, 0, 1, 1], [], []>} : vector<16x32xbf16>, vector<32x16xbf16>, vector<16x16xf32> -> vector<16x16xf32>
    %142 = arith.addf %141, %55 : vector<16x16xf32>
    %cst_68 = arith.constant dense<0xFF800000> : vector<16xf32>
    %143 = vector.multi_reduction <maximumf>, %142, %cst_68 [1] : vector<16x16xf32> to vector<16xf32>
    %144 = vector.shape_cast %143 : vector<16xf32> to vector<16x1xf32>
    %145 = vector.broadcast %144 : vector<16x1xf32> to vector<16x16xf32>
    %146 = arith.subf %142, %145 : vector<16x16xf32>
    %147 = math.exp %146 : vector<16x16xf32>
    %cst_69 = arith.constant dense<0.000000e+00> : vector<16xf32>
    %148 = vector.multi_reduction <add>, %147, %cst_69 [1] : vector<16x16xf32> to vector<16xf32>
    %149 = vector.shape_cast %148 : vector<16xf32> to vector<16x1xf32>
    %150 = tpu.reciprocal %149 : vector<16x1xf32> -> vector<16x1xf32>
    %151 = vector.broadcast %150 : vector<16x1xf32> to vector<16x16xf32>
    %152 = arith.mulf %147, %151 : vector<16x16xf32>
    %153 = vector.broadcast %27 : vector<1x32xf32> to vector<16x32xf32>
    %154 = arith.mulf %113, %153 : vector<16x32xf32>
    %155 = arith.truncf %154 : vector<16x32xf32> to vector<16x32xbf16>
    %156 = arith.truncf %152 : vector<16x16xf32> to vector<16x16xbf16>
    %cst_70 = arith.constant dense<0.000000e+00> : vector<16x32xf32>
    %157 = tpu.matmul %156, %155, %cst_70 {dimension_numbers = #tpu.dot_dimension_numbers<[1], [0], [0], [1], [0, 0, 1, 1], [], []>} : vector<16x16xbf16>, vector<16x32xbf16>, vector<16x32xf32> -> vector<16x32xf32>
    %158 = arith.addf %137, %157 : vector<16x32xf32>
    %159 = arith.truncf %158 : vector<16x32xf32> to vector<16x32xbf16>
    %c0_71 = arith.constant 0 : index
    %c3_72 = arith.constant 3 : index
    %c0_73 = arith.constant 0 : index
    %c0_74 = arith.constant 0 : index
    %160 = vector.load %arg4[%c0_71, %c3_72, %c0_73, %c0_74] : memref<2x4x32x32xbf16, #tpu.memory_space<vmem>>, vector<1x1x32x32xbf16>
    %161 = vector.shape_cast %160 : vector<1x1x32x32xbf16> to vector<32x32xbf16>
    %cst_75 = arith.constant dense<0.000000e+00> : vector<16x32xf32>
    %162 = tpu.matmul %159, %161, %cst_75 {dimension_numbers = #tpu.dot_dimension_numbers<[1], [0], [0], [1], [0, 0, 1, 1], [], []>} : vector<16x32xbf16>, vector<32x32xbf16>, vector<16x32xf32> -> vector<16x32xf32>
    %163 = arith.addf %4, %162 : vector<16x32xf32>
    %164 = vector.broadcast %67 : vector<1x32xf32> to vector<16x32xf32>
    %165 = arith.addf %163, %164 : vector<16x32xf32>
    %cst_76 = arith.constant dense<0.000000e+00> : vector<16xf32>
    %166 = vector.multi_reduction <add>, %165, %cst_76 [1] : vector<16x32xf32> to vector<16xf32>
    %167 = vector.shape_cast %166 : vector<16xf32> to vector<16x1xf32>
    %cst_77 = arith.constant 3.200000e+01 : f32
    %168 = vector.broadcast %cst_77 : f32 to vector<16x1xf32>
    %169 = arith.divf %167, %168 : vector<16x1xf32>
    %170 = vector.broadcast %169 : vector<16x1xf32> to vector<16x32xf32>
    %171 = arith.subf %165, %170 : vector<16x32xf32>
    %172 = arith.mulf %171, %171 : vector<16x32xf32>
    %cst_78 = arith.constant dense<0.000000e+00> : vector<16xf32>
    %173 = vector.multi_reduction <add>, %172, %cst_78 [1] : vector<16x32xf32> to vector<16xf32>
    %174 = vector.shape_cast %173 : vector<16xf32> to vector<16x1xf32>
    %cst_79 = arith.constant 3.200000e+01 : f32
    %175 = vector.broadcast %cst_79 : f32 to vector<16x1xf32>
    %176 = arith.divf %174, %175 : vector<16x1xf32>
    %177 = vector.broadcast %169 : vector<16x1xf32> to vector<16x32xf32>
    %178 = arith.subf %165, %177 : vector<16x32xf32>
    %cst_80 = arith.constant 9.99999997E-7 : f32
    %179 = vector.broadcast %cst_80 : f32 to vector<16x1xf32>
    %180 = arith.addf %176, %179 : vector<16x1xf32>
    %181 = math.rsqrt %180 : vector<16x1xf32>
    %182 = vector.broadcast %181 : vector<16x1xf32> to vector<16x32xf32>
    %183 = arith.mulf %178, %182 : vector<16x32xf32>
    %184 = vector.broadcast %69 : vector<1x32xf32> to vector<16x32xf32>
    %185 = arith.mulf %183, %184 : vector<16x32xf32>
    %186 = vector.broadcast %71 : vector<1x32xf32> to vector<16x32xf32>
    %187 = arith.addf %185, %186 : vector<16x32xf32>
    %188 = arith.truncf %187 : vector<16x32xf32> to vector<16x32xbf16>
    %c0_81 = arith.constant 0 : index
    %c0_82 = arith.constant 0 : index
    %c0_83 = arith.constant 0 : index
    %189 = vector.load %arg5[%c0_81, %c0_82, %c0_83] : memref<2x32x128xbf16, #tpu.memory_space<vmem>>, vector<1x32x128xbf16>
    %190 = vector.shape_cast %189 : vector<1x32x128xbf16> to vector<32x128xbf16>
    %cst_84 = arith.constant dense<0.000000e+00> : vector<16x128xf32>
    %191 = tpu.matmul %188, %190, %cst_84 {dimension_numbers = #tpu.dot_dimension_numbers<[1], [0], [0], [1], [0, 0, 1, 1], [], []>} : vector<16x32xbf16>, vector<32x128xbf16>, vector<16x128xf32> -> vector<16x128xf32>
    %192 = vector.broadcast %75 : vector<1x128xf32> to vector<16x128xf32>
    %193 = arith.addf %191, %192 : vector<16x128xf32>
    %cst_85 = arith.constant 5.000000e-01 : f32
    %194 = vector.broadcast %cst_85 : f32 to vector<16x128xf32>
    %195 = arith.mulf %194, %193 : vector<16x128xf32>
    %cst_86 = arith.constant 0.707106769 : f32
    %196 = vector.broadcast %cst_86 : f32 to vector<16x128xf32>
    %197 = arith.mulf %193, %196 : vector<16x128xf32>
    %198 = math.erf %197 : vector<16x128xf32>
    %cst_87 = arith.constant 1.000000e+00 : f32
    %199 = vector.broadcast %cst_87 : f32 to vector<16x128xf32>
    %200 = arith.addf %199, %198 : vector<16x128xf32>
    %201 = arith.mulf %195, %200 : vector<16x128xf32>
    %202 = arith.truncf %201 : vector<16x128xf32> to vector<16x128xbf16>
    %c0_88 = arith.constant 0 : index
    %c0_89 = arith.constant 0 : index
    %c0_90 = arith.constant 0 : index
    %203 = vector.load %arg6[%c0_88, %c0_89, %c0_90] : memref<2x128x32xbf16, #tpu.memory_space<vmem>>, vector<1x128x32xbf16>
    %204 = vector.shape_cast %203 : vector<1x128x32xbf16> to vector<128x32xbf16>
    %cst_91 = arith.constant dense<0.000000e+00> : vector<16x32xf32>
    %205 = tpu.matmul %202, %204, %cst_91 {dimension_numbers = #tpu.dot_dimension_numbers<[1], [0], [0], [1], [0, 0, 1, 1], [], []>} : vector<16x128xbf16>, vector<128x32xbf16>, vector<16x32xf32> -> vector<16x32xf32>
    %206 = arith.addf %165, %205 : vector<16x32xf32>
    %207 = vector.broadcast %73 : vector<1x32xf32> to vector<16x32xf32>
    %208 = arith.addf %206, %207 : vector<16x32xf32>
    %c1_92 = arith.constant 1 : index
    %c0_93 = arith.constant 0 : index
    %c0_94 = arith.constant 0 : index
    %209 = vector.load %arg7[%c1_92, %c0_93, %c0_94] : memref<2x10x128xf32, #tpu.memory_space<vmem>>, vector<1x1x32xf32>
    %210 = vector.shape_cast %209 : vector<1x1x32xf32> to vector<1x32xf32>
    %c1_95 = arith.constant 1 : index
    %c1_96 = arith.constant 1 : index
    %c0_97 = arith.constant 0 : index
    %211 = vector.load %arg7[%c1_95, %c1_96, %c0_97] : memref<2x10x128xf32, #tpu.memory_space<vmem>>, vector<1x1x32xf32>
    %212 = vector.shape_cast %211 : vector<1x1x32xf32> to vector<1x32xf32>
    %c1_98 = arith.constant 1 : index
    %c2_99 = arith.constant 2 : index
    %c0_100 = arith.constant 0 : index
    %213 = vector.load %arg7[%c1_98, %c2_99, %c0_100] : memref<2x10x128xf32, #tpu.memory_space<vmem>>, vector<1x1x32xf32>
    %214 = vector.shape_cast %213 : vector<1x1x32xf32> to vector<1x32xf32>
    %c1_101 = arith.constant 1 : index
    %c3_102 = arith.constant 3 : index
    %c0_103 = arith.constant 0 : index
    %215 = vector.load %arg7[%c1_101, %c3_102, %c0_103] : memref<2x10x128xf32, #tpu.memory_space<vmem>>, vector<1x1x32xf32>
    %216 = vector.shape_cast %215 : vector<1x1x32xf32> to vector<1x32xf32>
    %c1_104 = arith.constant 1 : index
    %c4_105 = arith.constant 4 : index
    %c0_106 = arith.constant 0 : index
    %217 = vector.load %arg7[%c1_104, %c4_105, %c0_106] : memref<2x10x128xf32, #tpu.memory_space<vmem>>, vector<1x1x32xf32>
    %218 = vector.shape_cast %217 : vector<1x1x32xf32> to vector<1x32xf32>
    %c1_107 = arith.constant 1 : index
    %c5_108 = arith.constant 5 : index
    %c0_109 = arith.constant 0 : index
    %219 = vector.load %arg7[%c1_107, %c5_108, %c0_109] : memref<2x10x128xf32, #tpu.memory_space<vmem>>, vector<1x1x32xf32>
    %220 = vector.shape_cast %219 : vector<1x1x32xf32> to vector<1x32xf32>
    %c1_110 = arith.constant 1 : index
    %c6_111 = arith.constant 6 : index
    %c0_112 = arith.constant 0 : index
    %221 = vector.load %arg7[%c1_110, %c6_111, %c0_112] : memref<2x10x128xf32, #tpu.memory_space<vmem>>, vector<1x1x32xf32>
    %222 = vector.shape_cast %221 : vector<1x1x32xf32> to vector<1x32xf32>
    %c1_113 = arith.constant 1 : index
    %c7_114 = arith.constant 7 : index
    %c0_115 = arith.constant 0 : index
    %223 = vector.load %arg7[%c1_113, %c7_114, %c0_115] : memref<2x10x128xf32, #tpu.memory_space<vmem>>, vector<1x1x32xf32>
    %224 = vector.shape_cast %223 : vector<1x1x32xf32> to vector<1x32xf32>
    %c1_116 = arith.constant 1 : index
    %c8_117 = arith.constant 8 : index
    %c0_118 = arith.constant 0 : index
    %225 = vector.load %arg7[%c1_116, %c8_117, %c0_118] : memref<2x10x128xf32, #tpu.memory_space<vmem>>, vector<1x1x32xf32>
    %226 = vector.shape_cast %225 : vector<1x1x32xf32> to vector<1x32xf32>
    %c1_119 = arith.constant 1 : index
    %c9_120 = arith.constant 9 : index
    %c0_121 = arith.constant 0 : index
    %227 = vector.load %arg7[%c1_119, %c9_120, %c0_121] : memref<2x10x128xf32, #tpu.memory_space<vmem>>, vector<1x1x128xf32>
    %228 = vector.shape_cast %227 : vector<1x1x128xf32> to vector<1x128xf32>
    %cst_122 = arith.constant dense<0.000000e+00> : vector<16xf32>
    %229 = vector.multi_reduction <add>, %208, %cst_122 [1] : vector<16x32xf32> to vector<16xf32>
    %230 = vector.shape_cast %229 : vector<16xf32> to vector<16x1xf32>
    %cst_123 = arith.constant 3.200000e+01 : f32
    %231 = vector.broadcast %cst_123 : f32 to vector<16x1xf32>
    %232 = arith.divf %230, %231 : vector<16x1xf32>
    %233 = vector.broadcast %232 : vector<16x1xf32> to vector<16x32xf32>
    %234 = arith.subf %208, %233 : vector<16x32xf32>
    %235 = arith.mulf %234, %234 : vector<16x32xf32>
    %cst_124 = arith.constant dense<0.000000e+00> : vector<16xf32>
    %236 = vector.multi_reduction <add>, %235, %cst_124 [1] : vector<16x32xf32> to vector<16xf32>
    %237 = vector.shape_cast %236 : vector<16xf32> to vector<16x1xf32>
    %cst_125 = arith.constant 3.200000e+01 : f32
    %238 = vector.broadcast %cst_125 : f32 to vector<16x1xf32>
    %239 = arith.divf %237, %238 : vector<16x1xf32>
    %240 = vector.broadcast %232 : vector<16x1xf32> to vector<16x32xf32>
    %241 = arith.subf %208, %240 : vector<16x32xf32>
    %cst_126 = arith.constant 9.99999997E-7 : f32
    %242 = vector.broadcast %cst_126 : f32 to vector<16x1xf32>
    %243 = arith.addf %239, %242 : vector<16x1xf32>
    %244 = math.rsqrt %243 : vector<16x1xf32>
    %245 = vector.broadcast %244 : vector<16x1xf32> to vector<16x32xf32>
    %246 = arith.mulf %241, %245 : vector<16x32xf32>
    %247 = vector.broadcast %210 : vector<1x32xf32> to vector<16x32xf32>
    %248 = arith.mulf %246, %247 : vector<16x32xf32>
    %249 = vector.broadcast %212 : vector<1x32xf32> to vector<16x32xf32>
    %250 = arith.addf %248, %249 : vector<16x32xf32>
    %251 = arith.truncf %250 : vector<16x32xf32> to vector<16x32xbf16>
    %c1_127 = arith.constant 1 : index
    %c0_128 = arith.constant 0 : index
    %c0_129 = arith.constant 0 : index
    %c0_130 = arith.constant 0 : index
    %252 = vector.load %arg4[%c1_127, %c0_128, %c0_129, %c0_130] : memref<2x4x32x32xbf16, #tpu.memory_space<vmem>>, vector<1x1x32x32xbf16>
    %253 = vector.shape_cast %252 : vector<1x1x32x32xbf16> to vector<32x32xbf16>
    %cst_131 = arith.constant dense<0.000000e+00> : vector<16x32xf32>
    %254 = tpu.matmul %251, %253, %cst_131 {dimension_numbers = #tpu.dot_dimension_numbers<[1], [0], [0], [1], [0, 0, 1, 1], [], []>} : vector<16x32xbf16>, vector<32x32xbf16>, vector<16x32xf32> -> vector<16x32xf32>
    %255 = vector.broadcast %214 : vector<1x32xf32> to vector<16x32xf32>
    %256 = arith.addf %254, %255 : vector<16x32xf32>
    %c1_132 = arith.constant 1 : index
    %c1_133 = arith.constant 1 : index
    %c0_134 = arith.constant 0 : index
    %c0_135 = arith.constant 0 : index
    %257 = vector.load %arg4[%c1_132, %c1_133, %c0_134, %c0_135] : memref<2x4x32x32xbf16, #tpu.memory_space<vmem>>, vector<1x1x32x32xbf16>
    %258 = vector.shape_cast %257 : vector<1x1x32x32xbf16> to vector<32x32xbf16>
    %cst_136 = arith.constant dense<0.000000e+00> : vector<16x32xf32>
    %259 = tpu.matmul %251, %258, %cst_136 {dimension_numbers = #tpu.dot_dimension_numbers<[1], [0], [0], [1], [0, 0, 1, 1], [], []>} : vector<16x32xbf16>, vector<32x32xbf16>, vector<16x32xf32> -> vector<16x32xf32>
    %260 = vector.broadcast %216 : vector<1x32xf32> to vector<16x32xf32>
    %261 = arith.addf %259, %260 : vector<16x32xf32>
    %c1_137 = arith.constant 1 : index
    %c2_138 = arith.constant 2 : index
    %c0_139 = arith.constant 0 : index
    %c0_140 = arith.constant 0 : index
    %262 = vector.load %arg4[%c1_137, %c2_138, %c0_139, %c0_140] : memref<2x4x32x32xbf16, #tpu.memory_space<vmem>>, vector<1x1x32x32xbf16>
    %263 = vector.shape_cast %262 : vector<1x1x32x32xbf16> to vector<32x32xbf16>
    %cst_141 = arith.constant dense<0.000000e+00> : vector<16x32xf32>
    %264 = tpu.matmul %251, %263, %cst_141 {dimension_numbers = #tpu.dot_dimension_numbers<[1], [0], [0], [1], [0, 0, 1, 1], [], []>} : vector<16x32xbf16>, vector<32x32xbf16>, vector<16x32xf32> -> vector<16x32xf32>
    %265 = vector.broadcast %218 : vector<1x32xf32> to vector<16x32xf32>
    %266 = arith.addf %264, %265 : vector<16x32xf32>
    %267 = tpu.transpose %261, [1, 0] : vector<16x32xf32> -> vector<32x16xf32>
    %268 = arith.truncf %267 : vector<32x16xf32> to vector<32x16xbf16>
    %cst_142 = arith.constant 0.000000e+00 : f32
    %269 = vector.broadcast %cst_142 : f32 to vector<16x32xf32>
    %270 = vector.broadcast %13 : vector<1x32xf32> to vector<16x32xf32>
    %271 = arith.mulf %256, %270 : vector<16x32xf32>
    %272 = arith.truncf %271 : vector<16x32xf32> to vector<16x32xbf16>
    %cst_143 = arith.constant dense<0.000000e+00> : vector<16x16xf32>
    %273 = tpu.matmul %272, %268, %cst_143 {dimension_numbers = #tpu.dot_dimension_numbers<[1], [0], [0], [1], [0, 0, 1, 1], [], []>} : vector<16x32xbf16>, vector<32x16xbf16>, vector<16x16xf32> -> vector<16x16xf32>
    %274 = arith.addf %273, %55 : vector<16x16xf32>
    %cst_144 = arith.constant dense<0xFF800000> : vector<16xf32>
    %275 = vector.multi_reduction <maximumf>, %274, %cst_144 [1] : vector<16x16xf32> to vector<16xf32>
    %276 = vector.shape_cast %275 : vector<16xf32> to vector<16x1xf32>
    %277 = vector.broadcast %276 : vector<16x1xf32> to vector<16x16xf32>
    %278 = arith.subf %274, %277 : vector<16x16xf32>
    %279 = math.exp %278 : vector<16x16xf32>
    %cst_145 = arith.constant dense<0.000000e+00> : vector<16xf32>
    %280 = vector.multi_reduction <add>, %279, %cst_145 [1] : vector<16x16xf32> to vector<16xf32>
    %281 = vector.shape_cast %280 : vector<16xf32> to vector<16x1xf32>
    %282 = tpu.reciprocal %281 : vector<16x1xf32> -> vector<16x1xf32>
    %283 = vector.broadcast %282 : vector<16x1xf32> to vector<16x16xf32>
    %284 = arith.mulf %279, %283 : vector<16x16xf32>
    %285 = vector.broadcast %16 : vector<1x32xf32> to vector<16x32xf32>
    %286 = arith.mulf %266, %285 : vector<16x32xf32>
    %287 = arith.truncf %286 : vector<16x32xf32> to vector<16x32xbf16>
    %288 = arith.truncf %284 : vector<16x16xf32> to vector<16x16xbf16>
    %cst_146 = arith.constant dense<0.000000e+00> : vector<16x32xf32>
    %289 = tpu.matmul %288, %287, %cst_146 {dimension_numbers = #tpu.dot_dimension_numbers<[1], [0], [0], [1], [0, 0, 1, 1], [], []>} : vector<16x16xbf16>, vector<16x32xbf16>, vector<16x32xf32> -> vector<16x32xf32>
    %290 = arith.addf %269, %289 : vector<16x32xf32>
    %291 = vector.broadcast %24 : vector<1x32xf32> to vector<16x32xf32>
    %292 = arith.mulf %256, %291 : vector<16x32xf32>
    %293 = arith.truncf %292 : vector<16x32xf32> to vector<16x32xbf16>
    %cst_147 = arith.constant dense<0.000000e+00> : vector<16x16xf32>
    %294 = tpu.matmul %293, %268, %cst_147 {dimension_numbers = #tpu.dot_dimension_numbers<[1], [0], [0], [1], [0, 0, 1, 1], [], []>} : vector<16x32xbf16>, vector<32x16xbf16>, vector<16x16xf32> -> vector<16x16xf32>
    %295 = arith.addf %294, %55 : vector<16x16xf32>
    %cst_148 = arith.constant dense<0xFF800000> : vector<16xf32>
    %296 = vector.multi_reduction <maximumf>, %295, %cst_148 [1] : vector<16x16xf32> to vector<16xf32>
    %297 = vector.shape_cast %296 : vector<16xf32> to vector<16x1xf32>
    %298 = vector.broadcast %297 : vector<16x1xf32> to vector<16x16xf32>
    %299 = arith.subf %295, %298 : vector<16x16xf32>
    %300 = math.exp %299 : vector<16x16xf32>
    %cst_149 = arith.constant dense<0.000000e+00> : vector<16xf32>
    %301 = vector.multi_reduction <add>, %300, %cst_149 [1] : vector<16x16xf32> to vector<16xf32>
    %302 = vector.shape_cast %301 : vector<16xf32> to vector<16x1xf32>
    %303 = tpu.reciprocal %302 : vector<16x1xf32> -> vector<16x1xf32>
    %304 = vector.broadcast %303 : vector<16x1xf32> to vector<16x16xf32>
    %305 = arith.mulf %300, %304 : vector<16x16xf32>
    %306 = vector.broadcast %27 : vector<1x32xf32> to vector<16x32xf32>
    %307 = arith.mulf %266, %306 : vector<16x32xf32>
    %308 = arith.truncf %307 : vector<16x32xf32> to vector<16x32xbf16>
    %309 = arith.truncf %305 : vector<16x16xf32> to vector<16x16xbf16>
    %cst_150 = arith.constant dense<0.000000e+00> : vector<16x32xf32>
    %310 = tpu.matmul %309, %308, %cst_150 {dimension_numbers = #tpu.dot_dimension_numbers<[1], [0], [0], [1], [0, 0, 1, 1], [], []>} : vector<16x16xbf16>, vector<16x32xbf16>, vector<16x32xf32> -> vector<16x32xf32>
    %311 = arith.addf %290, %310 : vector<16x32xf32>
    %312 = arith.truncf %311 : vector<16x32xf32> to vector<16x32xbf16>
    %c1_151 = arith.constant 1 : index
    %c3_152 = arith.constant 3 : index
    %c0_153 = arith.constant 0 : index
    %c0_154 = arith.constant 0 : index
    %313 = vector.load %arg4[%c1_151, %c3_152, %c0_153, %c0_154] : memref<2x4x32x32xbf16, #tpu.memory_space<vmem>>, vector<1x1x32x32xbf16>
    %314 = vector.shape_cast %313 : vector<1x1x32x32xbf16> to vector<32x32xbf16>
    %cst_155 = arith.constant dense<0.000000e+00> : vector<16x32xf32>
    %315 = tpu.matmul %312, %314, %cst_155 {dimension_numbers = #tpu.dot_dimension_numbers<[1], [0], [0], [1], [0, 0, 1, 1], [], []>} : vector<16x32xbf16>, vector<32x32xbf16>, vector<16x32xf32> -> vector<16x32xf32>
    %316 = arith.addf %208, %315 : vector<16x32xf32>
    %317 = vector.broadcast %220 : vector<1x32xf32> to vector<16x32xf32>
    %318 = arith.addf %316, %317 : vector<16x32xf32>
    %cst_156 = arith.constant dense<0.000000e+00> : vector<16xf32>
    %319 = vector.multi_reduction <add>, %318, %cst_156 [1] : vector<16x32xf32> to vector<16xf32>
    %320 = vector.shape_cast %319 : vector<16xf32> to vector<16x1xf32>
    %cst_157 = arith.constant 3.200000e+01 : f32
    %321 = vector.broadcast %cst_157 : f32 to vector<16x1xf32>
    %322 = arith.divf %320, %321 : vector<16x1xf32>
    %323 = vector.broadcast %322 : vector<16x1xf32> to vector<16x32xf32>
    %324 = arith.subf %318, %323 : vector<16x32xf32>
    %325 = arith.mulf %324, %324 : vector<16x32xf32>
    %cst_158 = arith.constant dense<0.000000e+00> : vector<16xf32>
    %326 = vector.multi_reduction <add>, %325, %cst_158 [1] : vector<16x32xf32> to vector<16xf32>
    %327 = vector.shape_cast %326 : vector<16xf32> to vector<16x1xf32>
    %cst_159 = arith.constant 3.200000e+01 : f32
    %328 = vector.broadcast %cst_159 : f32 to vector<16x1xf32>
    %329 = arith.divf %327, %328 : vector<16x1xf32>
    %330 = vector.broadcast %322 : vector<16x1xf32> to vector<16x32xf32>
    %331 = arith.subf %318, %330 : vector<16x32xf32>
    %cst_160 = arith.constant 9.99999997E-7 : f32
    %332 = vector.broadcast %cst_160 : f32 to vector<16x1xf32>
    %333 = arith.addf %329, %332 : vector<16x1xf32>
    %334 = math.rsqrt %333 : vector<16x1xf32>
    %335 = vector.broadcast %334 : vector<16x1xf32> to vector<16x32xf32>
    %336 = arith.mulf %331, %335 : vector<16x32xf32>
    %337 = vector.broadcast %222 : vector<1x32xf32> to vector<16x32xf32>
    %338 = arith.mulf %336, %337 : vector<16x32xf32>
    %339 = vector.broadcast %224 : vector<1x32xf32> to vector<16x32xf32>
    %340 = arith.addf %338, %339 : vector<16x32xf32>
    %341 = arith.truncf %340 : vector<16x32xf32> to vector<16x32xbf16>
    %c1_161 = arith.constant 1 : index
    %c0_162 = arith.constant 0 : index
    %c0_163 = arith.constant 0 : index
    %342 = vector.load %arg5[%c1_161, %c0_162, %c0_163] : memref<2x32x128xbf16, #tpu.memory_space<vmem>>, vector<1x32x128xbf16>
    %343 = vector.shape_cast %342 : vector<1x32x128xbf16> to vector<32x128xbf16>
    %cst_164 = arith.constant dense<0.000000e+00> : vector<16x128xf32>
    %344 = tpu.matmul %341, %343, %cst_164 {dimension_numbers = #tpu.dot_dimension_numbers<[1], [0], [0], [1], [0, 0, 1, 1], [], []>} : vector<16x32xbf16>, vector<32x128xbf16>, vector<16x128xf32> -> vector<16x128xf32>
    %345 = vector.broadcast %228 : vector<1x128xf32> to vector<16x128xf32>
    %346 = arith.addf %344, %345 : vector<16x128xf32>
    %cst_165 = arith.constant 5.000000e-01 : f32
    %347 = vector.broadcast %cst_165 : f32 to vector<16x128xf32>
    %348 = arith.mulf %347, %346 : vector<16x128xf32>
    %cst_166 = arith.constant 0.707106769 : f32
    %349 = vector.broadcast %cst_166 : f32 to vector<16x128xf32>
    %350 = arith.mulf %346, %349 : vector<16x128xf32>
    %351 = math.erf %350 : vector<16x128xf32>
    %cst_167 = arith.constant 1.000000e+00 : f32
    %352 = vector.broadcast %cst_167 : f32 to vector<16x128xf32>
    %353 = arith.addf %352, %351 : vector<16x128xf32>
    %354 = arith.mulf %348, %353 : vector<16x128xf32>
    %355 = arith.truncf %354 : vector<16x128xf32> to vector<16x128xbf16>
    %c1_168 = arith.constant 1 : index
    %c0_169 = arith.constant 0 : index
    %c0_170 = arith.constant 0 : index
    %356 = vector.load %arg6[%c1_168, %c0_169, %c0_170] : memref<2x128x32xbf16, #tpu.memory_space<vmem>>, vector<1x128x32xbf16>
    %357 = vector.shape_cast %356 : vector<1x128x32xbf16> to vector<128x32xbf16>
    %cst_171 = arith.constant dense<0.000000e+00> : vector<16x32xf32>
    %358 = tpu.matmul %355, %357, %cst_171 {dimension_numbers = #tpu.dot_dimension_numbers<[1], [0], [0], [1], [0, 0, 1, 1], [], []>} : vector<16x128xbf16>, vector<128x32xbf16>, vector<16x32xf32> -> vector<16x32xf32>
    %359 = arith.addf %318, %358 : vector<16x32xf32>
    %360 = vector.broadcast %226 : vector<1x32xf32> to vector<16x32xf32>
    %361 = arith.addf %359, %360 : vector<16x32xf32>
    %362 = vector.extract_strided_slice %361 {offsets = [0, 0], sizes = [1, 32], strides = [1, 1]} : vector<16x32xf32> to vector<1x32xf32>
    %363 = vector.extract_strided_slice %361 {offsets = [8, 0], sizes = [1, 32], strides = [1, 1]} : vector<16x32xf32> to vector<1x32xf32>
    %364 = tpu.concatenate %362, %363 in 0 : vector<1x32xf32>, vector<1x32xf32> -> vector<2x32xf32>
    %c0_172 = arith.constant 0 : index
    %c0_173 = arith.constant 0 : index
    %365 = vector.load %arg8[%c0_172, %c0_173] : memref<5x32xf32, #tpu.memory_space<vmem>>, vector<1x32xf32>
    %c1_174 = arith.constant 1 : index
    %c0_175 = arith.constant 0 : index
    %366 = vector.load %arg8[%c1_174, %c0_175] : memref<5x32xf32, #tpu.memory_space<vmem>>, vector<1x32xf32>
    %cst_176 = arith.constant dense<0.000000e+00> : vector<32xf32>
    %367 = vector.multi_reduction <add>, %364, %cst_176 [0] : vector<2x32xf32> to vector<32xf32>
    %368 = vector.shape_cast %367 : vector<32xf32> to vector<1x32xf32>
    %cst_177 = arith.constant 2.000000e+00 : f32
    %369 = vector.broadcast %cst_177 : f32 to vector<1x32xf32>
    %370 = arith.divf %368, %369 : vector<1x32xf32>
    %371 = vector.broadcast %370 : vector<1x32xf32> to vector<2x32xf32>
    %372 = arith.subf %364, %371 : vector<2x32xf32>
    %373 = arith.mulf %372, %372 : vector<2x32xf32>
    %cst_178 = arith.constant dense<0.000000e+00> : vector<32xf32>
    %374 = vector.multi_reduction <add>, %373, %cst_178 [0] : vector<2x32xf32> to vector<32xf32>
    %375 = vector.shape_cast %374 : vector<32xf32> to vector<1x32xf32>
    %cst_179 = arith.constant 2.000000e+00 : f32
    %376 = vector.broadcast %cst_179 : f32 to vector<1x32xf32>
    %377 = arith.divf %375, %376 : vector<1x32xf32>
    %378 = vector.broadcast %370 : vector<1x32xf32> to vector<2x32xf32>
    %379 = arith.subf %364, %378 : vector<2x32xf32>
    %cst_180 = arith.constant 9.99999974E-6 : f32
    %380 = vector.broadcast %cst_180 : f32 to vector<1x32xf32>
    %381 = arith.addf %377, %380 : vector<1x32xf32>
    %382 = math.rsqrt %381 : vector<1x32xf32>
    %383 = vector.broadcast %382 : vector<1x32xf32> to vector<2x32xf32>
    %384 = arith.mulf %379, %383 : vector<2x32xf32>
    %385 = vector.broadcast %365 : vector<1x32xf32> to vector<2x32xf32>
    %386 = arith.mulf %384, %385 : vector<2x32xf32>
    %387 = vector.broadcast %366 : vector<1x32xf32> to vector<2x32xf32>
    %388 = arith.addf %386, %387 : vector<2x32xf32>
    %389 = arith.mulf %388, %388 : vector<2x32xf32>
    %cst_181 = arith.constant dense<0.000000e+00> : vector<2xf32>
    %390 = vector.multi_reduction <add>, %389, %cst_181 [1] : vector<2x32xf32> to vector<2xf32>
    %391 = vector.shape_cast %390 : vector<2xf32> to vector<2x1xf32>
    %392 = math.rsqrt %391 : vector<2x1xf32>
    %393 = vector.broadcast %392 : vector<2x1xf32> to vector<2x32xf32>
    %394 = arith.mulf %388, %393 : vector<2x32xf32>
    %c2_182 = arith.constant 2 : index
    %c0_183 = arith.constant 0 : index
    %395 = vector.load %arg8[%c2_182, %c0_183] : memref<5x32xf32, #tpu.memory_space<vmem>>, vector<1x2xf32>
    %c3_184 = arith.constant 3 : index
    %c0_185 = arith.constant 0 : index
    %396 = vector.load %arg8[%c3_184, %c0_185] : memref<5x32xf32, #tpu.memory_space<vmem>>, vector<1x32xf32>
    %397 = vector.broadcast %396 : vector<1x32xf32> to vector<2x32xf32>
    %398 = arith.mulf %394, %397 : vector<2x32xf32>
    %cst_186 = arith.constant dense<0.000000e+00> : vector<2xf32>
    %399 = vector.multi_reduction <add>, %398, %cst_186 [1] : vector<2x32xf32> to vector<2xf32>
    %400 = vector.shape_cast %399 : vector<2xf32> to vector<2x1xf32>
    %c4_187 = arith.constant 4 : index
    %c0_188 = arith.constant 0 : index
    %401 = vector.load %arg8[%c4_187, %c0_188] : memref<5x32xf32, #tpu.memory_space<vmem>>, vector<1x32xf32>
    %402 = vector.broadcast %401 : vector<1x32xf32> to vector<2x32xf32>
    %403 = arith.mulf %394, %402 : vector<2x32xf32>
    %cst_189 = arith.constant dense<0.000000e+00> : vector<2xf32>
    %404 = vector.multi_reduction <add>, %403, %cst_189 [1] : vector<2x32xf32> to vector<2xf32>
    %405 = vector.shape_cast %404 : vector<2xf32> to vector<2x1xf32>
    %406 = tpu.concatenate %400, %405 in 1 : vector<2x1xf32>, vector<2x1xf32> -> vector<2x2xf32>
    %407 = vector.broadcast %395 : vector<1x2xf32> to vector<2x2xf32>
    %408 = arith.addf %406, %407 : vector<2x2xf32>
    %cst_190 = arith.constant 1.000000e+00 : f32
    %409 = vector.broadcast %cst_190 : f32 to vector<2x2xf32>
    %410 = arith.mulf %408, %409 : vector<2x2xf32>
    %c0_191 = arith.constant 0 : index
    %c0_192 = arith.constant 0 : index
    %411 = vector.load %arg9[%c0_191, %c0_192] : memref<2x2xf32, #tpu.memory_space<vmem>>, vector<2x2xf32>
    tpu.vector_store %arg9[%c0_191, %c0_192], %410 {strides = array<i32>} : memref<2x2xf32, #tpu.memory_space<vmem>>, vector<2x2xf32>,
    return
  }
  func.func @transform_0(%arg0: i32) -> (i32, i32) {
    %c0_i32 = arith.constant 0 : i32
    %c0_i32_0 = arith.constant 0 : i32
    %c0_i32_1 = arith.constant 0 : i32
    return %c0_i32, %c0_i32_0 : i32, i32
  }
  func.func @transform_1(%arg0: i32) -> (i32, i32) {
    %c0_i32 = arith.constant 0 : i32
    %c0_i32_0 = arith.constant 0 : i32
    %c0_i32_1 = arith.constant 0 : i32
    return %c0_i32, %c0_i32_0 : i32, i32
  }
  func.func @transform_2(%arg0: i32) -> (i32, i32) {
    %c0_i32 = arith.constant 0 : i32
    %c0_i32_0 = arith.constant 0 : i32
    %c0_i32_1 = arith.constant 0 : i32
    return %c0_i32, %c0_i32_0 : i32, i32
  }
  func.func @transform_3(%arg0: i32) -> (i32, i32, i32, i32) {
    %c0_i32 = arith.constant 0 : i32
    %c0_i32_0 = arith.constant 0 : i32
    %c0_i32_1 = arith.constant 0 : i32
    %c0_i32_2 = arith.constant 0 : i32
    %c0_i32_3 = arith.constant 0 : i32
    return %c0_i32, %c0_i32_0, %c0_i32_1, %c0_i32_2 : i32, i32, i32, i32
  }
  func.func @transform_4(%arg0: i32) -> (i32, i32, i32) {
    %c0_i32 = arith.constant 0 : i32
    %c0_i32_0 = arith.constant 0 : i32
    %c0_i32_1 = arith.constant 0 : i32
    %c0_i32_2 = arith.constant 0 : i32
    return %c0_i32, %c0_i32_0, %c0_i32_1 : i32, i32, i32
  }
  func.func @transform_5(%arg0: i32) -> (i32, i32, i32) {
    %c0_i32 = arith.constant 0 : i32
    %c0_i32_0 = arith.constant 0 : i32
    %c0_i32_1 = arith.constant 0 : i32
    %c0_i32_2 = arith.constant 0 : i32
    return %c0_i32, %c0_i32_0, %c0_i32_1 : i32, i32, i32
  }
  func.func @transform_6(%arg0: i32) -> (i32, i32, i32) {
    %c0_i32 = arith.constant 0 : i32
    %c0_i32_0 = arith.constant 0 : i32
    %c0_i32_1 = arith.constant 0 : i32
    %c0_i32_2 = arith.constant 0 : i32
    return %c0_i32, %c0_i32_0, %c0_i32_1 : i32, i32, i32
  }
  func.func @transform_7(%arg0: i32) -> (i32, i32) {
    %c0_i32 = arith.constant 0 : i32
    %c0_i32_0 = arith.constant 0 : i32
    %c0_i32_1 = arith.constant 0 : i32
    return %c0_i32, %c0_i32_0 : i32, i32
  }
  func.func @transform_8(%arg0: i32) -> (i32, i32) {
    %c0_i32 = arith.constant 0 : i32
    %c0_i32_0 = arith.constant 0 : i32
    %c0_i32_1 = arith.constant 0 : i32
    return %c0_i32, %c0_i32_0 : i32, i32
  }
}

</mosaic_0001>

<llo_original>
// kernel: vit_bh_forward.1
$region0: #{vit_bh_forward.1}
  #allocation0 [shape = 'u32[]', space=smem, size = 0x4, offset = 0x4, fixed_abs, tag = 'smem constant byte address 0x4 - core index']
  #allocation1 [shape = 'u32[144,128]{1,0:T(1,128)}', space=vmem, size = 0x12000, scoped, tag = 'internal scratch']
  %s0 = inlined_call_operand.vmem [shape: bf16[16,768], index: 0, kind: input, shape index: {}]
  %s1 = inlined_call_operand.vmem [shape: bf16[768,32], index: 1, kind: input, shape index: {}]
  %s2 = inlined_call_operand.vmem [shape: f32[16,32], index: 2, kind: input, shape index: {}]
  %s3 = inlined_call_operand.vmem [shape: bf16[2,4,32,32], index: 3, kind: input, shape index: {}]
  %s4 = inlined_call_operand.vmem [shape: bf16[2,32,128], index: 4, kind: input, shape index: {}]
  %s5 = inlined_call_operand.vmem [shape: bf16[2,128,32], index: 5, kind: input, shape index: {}]
  %s6 = inlined_call_operand.vmem [shape: f32[2,10,128], index: 6, kind: input, shape index: {}]
  %s7 = inlined_call_operand.vmem [shape: f32[5,32], index: 7, kind: input, shape index: {}]
  %s8 = inlined_call_operand.hbm [shape: f32[2,2], index: 8, kind: output, shape index: {}]
  %s9 = sld [smem:[#allocation0]]
  $region42: #{vit_bh_forward.1} parent=0
    _
  %s11 = ssub.s32 1, %s9
  %s12 = scalar_select 0, %s11, %s9
  $region1: #{vit_bh_forward.1} parent=0
    #allocation2 [shape = 'u8[1024]{0}', space=vmem, size = 0x400, scoped, tag = 'output window, operand 0, single buffered']
    #allocation3 [shape = 's32[1]{0}', space=sflag, size = 0x4, scoped, tag = 'scoped memory for vit_bh_forward.1']
    %13 = vsyncpa [#allocation3], 0
    // Predicated region
    $region2: #{vit_bh_forward.1} parent=1 // pred_check
      _
    $region3: #{vit_bh_forward.1} parent=1 // pred_check_branch
      %15 = sbr.rel (0) target = $region5
    $region4: #{vit_bh_forward.1} parent=1 // pred_region
      _
    $region5: #{vit_bh_forward.1} parent=1 // pred_fallthru
      _
    // Predicated region
    $region6: #{vit_bh_forward.1} parent=1 // pred_check
      _
    $region7: #{vit_bh_forward.1} parent=1 // pred_check_branch
      %17 = sbr.rel (0) target = $region9
    $region8: #{vit_bh_forward.1} parent=1 // pred_region
      _
    $region9: #{vit_bh_forward.1} parent=1 // pred_fallthru
      _
    // Predicated region
    $region10: #{vit_bh_forward.1} parent=1 // pred_check
      _
    $region11: #{vit_bh_forward.1} parent=1 // pred_check_branch
      %19 = sbr.rel (0) target = $region13
    $region12: #{vit_bh_forward.1} parent=1 // pred_region
      _
    $region13: #{vit_bh_forward.1} parent=1 // pred_fallthru
      _
    // Predicated region
    $region14: #{vit_bh_forward.1} parent=1 // pred_check
      _
    $region15: #{vit_bh_forward.1} parent=1 // pred_check_branch
      %21 = sbr.rel (0) target = $region17
    $region16: #{vit_bh_forward.1} parent=1 // pred_region
      _
    $region17: #{vit_bh_forward.1} parent=1 // pred_fallthru
      _
    // Predicated region
    $region18: #{vit_bh_forward.1} parent=1 // pred_check
      _
    $region19: #{vit_bh_forward.1} parent=1 // pred_check_branch
      %23 = sbr.rel (0) target = $region21
    $region20: #{vit_bh_forward.1} parent=1 // pred_region
      _
    $region21: #{vit_bh_forward.1} parent=1 // pred_fallthru
      _
    // Predicated region
    $region22: #{vit_bh_forward.1} parent=1 // pred_check
      _
    $region23: #{vit_bh_forward.1} parent=1 // pred_check_branch
      %25 = sbr.rel (0) target = $region25
    $region24: #{vit_bh_forward.1} parent=1 // pred_region
      _
    $region25: #{vit_bh_forward.1} parent=1 // pred_fallthru
      _
    // Predicated region
    $region26: #{vit_bh_forward.1} parent=1 // pred_check
      _
    $region27: #{vit_bh_forward.1} parent=1 // pred_check_branch
      %27 = sbr.rel (0) target = $region29
    $region28: #{vit_bh_forward.1} parent=1 // pred_region
      _
    $region29: #{vit_bh_forward.1} parent=1 // pred_fallthru
      _
    // Predicated region
    $region30: #{vit_bh_forward.1} parent=1 // pred_check
      _
    $region31: #{vit_bh_forward.1} parent=1 // pred_check_branch
      %29 = sbr.rel (0) target = $region33
    $region32: #{vit_bh_forward.1} parent=1 // pred_region
      _
    $region33: #{vit_bh_forward.1} parent=1 // pred_fallthru
      _
    %v31 = vld [vmem:[%s0] sm:$0xff]
    %v32 = vld [vmem:[%s0 + $0x8] sm:$0xff]
    %v33 = vld [vmem:[%s0 + $0x10] sm:$0xff]
    %v34 = vld [vmem:[%s0 + $0x18] sm:$0xff]
    %v35 = vld [vmem:[%s0 + $0x20] sm:$0xff]
    %v36 = vld [vmem:[%s0 + $0x28] sm:$0xff]
    %v37 = vld [vmem:[%s1] sm:$0xf]
    %v38 = vld [vmem:[%s1 + $0x4] sm:$0xf]
    %v39 = vld [vmem:[%s1 + $0x8] sm:$0xf]
    %v40 = vld [vmem:[%s1 + $0xc] sm:$0xf]
    %v41 = vld [vmem:[%s1 + $0x10] sm:$0xf]
    %v42 = vld [vmem:[%s1 + $0x14] sm:$0xf]
    %v43 = vld [vmem:[%s1 + $0x18] sm:$0xf]
    %v44 = vld [vmem:[%s1 + $0x1c] sm:$0xf]
    %v45 = vld [vmem:[%s1 + $0x20] sm:$0xf]
    %v46 = vld [vmem:[%s1 + $0x24] sm:$0xf]
    %v47 = vld [vmem:[%s1 + $0x28] sm:$0xf]
    %v48 = vld [vmem:[%s1 + $0x2c] sm:$0xf]
    %v49 = vld [vmem:[%s1 + $0x30] sm:$0xf]
    %v50 = vld [vmem:[%s1 + $0x34] sm:$0xf]
    %v51 = vld [vmem:[%s1 + $0x38] sm:$0xf]
    %v52 = vld [vmem:[%s1 + $0x3c] sm:$0xf]
    %v53 = vld [vmem:[%s1 + $0x40] sm:$0xf]
    %v54 = vld [vmem:[%s1 + $0x44] sm:$0xf]
    %v55 = vld [vmem:[%s1 + $0x48] sm:$0xf]
    %v56 = vld [vmem:[%s1 + $0x4c] sm:$0xf]
    %v57 = vld [vmem:[%s1 + $0x50] sm:$0xf]
    %v58 = vld [vmem:[%s1 + $0x54] sm:$0xf]
    %v59 = vld [vmem:[%s1 + $0x58] sm:$0xf]
    %v60 = vld [vmem:[%s1 + $0x5c] sm:$0xf]
    %v61 = vld [vmem:[%s1 + $0x60] sm:$0xf]
    %v62 = vld [vmem:[%s1 + $0x64] sm:$0xf]
    %v63 = vld [vmem:[%s1 + $0x68] sm:$0xf]
    %v64 = vld [vmem:[%s1 + $0x6c] sm:$0xf]
    %v65 = vld [vmem:[%s1 + $0x70] sm:$0xf]
    %v66 = vld [vmem:[%s1 + $0x74] sm:$0xf]
    %v67 = vld [vmem:[%s1 + $0x78] sm:$0xf]
    %v68 = vld [vmem:[%s1 + $0x7c] sm:$0xf]
    %v69 = vld [vmem:[%s1 + $0x80] sm:$0xf]
    %v70 = vld [vmem:[%s1 + $0x84] sm:$0xf]
    %v71 = vld [vmem:[%s1 + $0x88] sm:$0xf]
    %v72 = vld [vmem:[%s1 + $0x8c] sm:$0xf]
    %v73 = vld [vmem:[%s1 + $0x90] sm:$0xf]
    %v74 = vld [vmem:[%s1 + $0x94] sm:$0xf]
    %v75 = vld [vmem:[%s1 + $0x98] sm:$0xf]
    %v76 = vld [vmem:[%s1 + $0x9c] sm:$0xf]
    %v77 = vld [vmem:[%s1 + $0xa0] sm:$0xf]
    %v78 = vld [vmem:[%s1 + $0xa4] sm:$0xf]
    %v79 = vld [vmem:[%s1 + $0xa8] sm:$0xf]
    %v80 = vld [vmem:[%s1 + $0xac] sm:$0xf]
    %v81 = vld [vmem:[%s1 + $0xb0] sm:$0xf]
    %v82 = vld [vmem:[%s1 + $0xb4] sm:$0xf]
    %v83 = vld [vmem:[%s1 + $0xb8] sm:$0xf]
    %v84 = vld [vmem:[%s1 + $0xbc] sm:$0xf]
    %v85 = vld [vmem:[%s1 + $0xc0] sm:$0xf]
    %v86 = vld [vmem:[%s1 + $0xc4] sm:$0xf]
    %v87 = vld [vmem:[%s1 + $0xc8] sm:$0xf]
    %v88 = vld [vmem:[%s1 + $0xcc] sm:$0xf]
    %v89 = vld [vmem:[%s1 + $0xd0] sm:$0xf]
    %v90 = vld [vmem:[%s1 + $0xd4] sm:$0xf]
    %v91 = vld [vmem:[%s1 + $0xd8] sm:$0xf]
    %v92 = vld [vmem:[%s1 + $0xdc] sm:$0xf]
    %v93 = vld [vmem:[%s1 + $0xe0] sm:$0xf]
    %v94 = vld [vmem:[%s1 + $0xe4] sm:$0xf]
    %v95 = vld [vmem:[%s1 + $0xe8] sm:$0xf]
    %v96 = vld [vmem:[%s1 + $0xec] sm:$0xf]
    %v97 = vld [vmem:[%s1 + $0xf0] sm:$0xf]
    %v98 = vld [vmem:[%s1 + $0xf4] sm:$0xf]
    %v99 = vld [vmem:[%s1 + $0xf8] sm:$0xf]
    %v100 = vld [vmem:[%s1 + $0xfc] sm:$0xf]
    %v101 = vld [vmem:[%s1 + $0x100] sm:$0xf]
    %v102 = vld [vmem:[%s1 + $0x104] sm:$0xf]
    %v103 = vld [vmem:[%s1 + $0x108] sm:$0xf]
    %v104 = vld [vmem:[%s1 + $0x10c] sm:$0xf]
    %v105 = vld [vmem:[%s1 + $0x110] sm:$0xf]
    %v106 = vld [vmem:[%s1 + $0x114] sm:$0xf]
    %v107 = vld [vmem:[%s1 + $0x118] sm:$0xf]
    %v108 = vld [vmem:[%s1 + $0x11c] sm:$0xf]
    %v109 = vld [vmem:[%s1 + $0x120] sm:$0xf]
    %v110 = vld [vmem:[%s1 + $0x124] sm:$0xf]
    %v111 = vld [vmem:[%s1 + $0x128] sm:$0xf]
    %v112 = vld [vmem:[%s1 + $0x12c] sm:$0xf]
    %v113 = vld [vmem:[%s1 + $0x130] sm:$0xf]
    %v114 = vld [vmem:[%s1 + $0x134] sm:$0xf]
    %v115 = vld [vmem:[%s1 + $0x138] sm:$0xf]
    %v116 = vld [vmem:[%s1 + $0x13c] sm:$0xf]
    %v117 = vld [vmem:[%s1 + $0x140] sm:$0xf]
    %v118 = vld [vmem:[%s1 + $0x144] sm:$0xf]
    %v119 = vld [vmem:[%s1 + $0x148] sm:$0xf]
    %v120 = vld [vmem:[%s1 + $0x14c] sm:$0xf]
    %v121 = vld [vmem:[%s1 + $0x150] sm:$0xf]
    %v122 = vld [vmem:[%s1 + $0x154] sm:$0xf]
    %v123 = vld [vmem:[%s1 + $0x158] sm:$0xf]
    %v124 = vld [vmem:[%s1 + $0x15c] sm:$0xf]
    %v125 = vld [vmem:[%s1 + $0x160] sm:$0xf]
    %v126 = vld [vmem:[%s1 + $0x164] sm:$0xf]
    %v127 = vld [vmem:[%s1 + $0x168] sm:$0xf]
    %v128 = vld [vmem:[%s1 + $0x16c] sm:$0xf]
    %v129 = vld [vmem:[%s1 + $0x170] sm:$0xf]
    %v130 = vld [vmem:[%s1 + $0x174] sm:$0xf]
    %v131 = vld [vmem:[%s1 + $0x178] sm:$0xf]
    %v132 = vld [vmem:[%s1 + $0x17c] sm:$0xf]
    %v133 = vld [vmem:[%s2] sm:$0xff]
    %v134 = vld [vmem:[%s2 + $0x8] sm:$0xff]
    %v141 = vunpack.c.l.b16 %v31
    %v142 = vunpack.c.h.b16 %v31
    %v143 = vunpack.c.l.b16 %v32
    %v144 = vunpack.c.h.b16 %v32
    %v145 = vunpack.c.l.b16 %v33
    %v146 = vunpack.c.h.b16 %v33
    %v147 = vunpack.c.l.b16 %v34
    %v148 = vunpack.c.h.b16 %v34
    %v149 = vunpack.c.l.b16 %v35
    %v150 = vunpack.c.h.b16 %v35
    %v151 = vunpack.c.l.b16 %v36
    %v152 = vunpack.c.h.b16 %v36
    %v153 = vpack.c.b16 %v147, %v141
    %v154 = vpack.c.b16 %v148, %v142
    %v155 = vpack.c.b16 %v149, %v143
    %v156 = vpack.c.b16 %v150, %v144
    %v157 = vpack.c.b16 %v151, %v145
    %v158 = vpack.c.b16 %v152, %v146
    %v261 = vunpack.c.l.b16 %v37
    %v262 = vunpack.c.l.b16 %v38
    %v263 = vunpack.c.l.b16 %v39
    %v264 = vunpack.c.l.b16 %v40
    %v265 = vunpack.c.l.b16 %v41
    %v266 = vunpack.c.l.b16 %v42
    %v267 = vunpack.c.l.b16 %v43
    %v268 = vunpack.c.l.b16 %v44
    %v269 = vunpack.c.l.b16 %v45
    %v270 = vunpack.c.l.b16 %v46
    %v271 = vunpack.c.l.b16 %v47
    %v272 = vunpack.c.l.b16 %v48
    %v273 = vunpack.c.l.b16 %v49
    %v274 = vunpack.c.l.b16 %v50
    %v275 = vunpack.c.l.b16 %v51
    %v276 = vunpack.c.l.b16 %v52
    %v277 = vunpack.c.l.b16 %v53
    %v278 = vunpack.c.l.b16 %v54
    %v279 = vunpack.c.l.b16 %v55
    %v280 = vunpack.c.l.b16 %v56
    %v281 = vunpack.c.l.b16 %v57
    %v282 = vunpack.c.l.b16 %v58
    %v283 = vunpack.c.l.b16 %v59
    %v284 = vunpack.c.l.b16 %v60
    %v285 = vunpack.c.l.b16 %v61
    %v286 = vunpack.c.l.b16 %v62
    %v287 = vunpack.c.l.b16 %v63
    %v288 = vunpack.c.l.b16 %v64
    %v289 = vunpack.c.l.b16 %v65
    %v290 = vunpack.c.l.b16 %v66
    %v291 = vunpack.c.l.b16 %v67
    %v292 = vunpack.c.l.b16 %v68
    %v293 = vunpack.c.l.b16 %v69
    %v294 = vunpack.c.l.b16 %v70
    %v295 = vunpack.c.l.b16 %v71
    %v296 = vunpack.c.l.b16 %v72
    %v297 = vunpack.c.l.b16 %v73
    %v298 = vunpack.c.l.b16 %v74
    %v299 = vunpack.c.l.b16 %v75
    %v300 = vunpack.c.l.b16 %v76
    %v301 = vunpack.c.l.b16 %v77
    %v302 = vunpack.c.l.b16 %v78
    %v303 = vunpack.c.l.b16 %v79
    %v304 = vunpack.c.l.b16 %v80
    %v305 = vunpack.c.l.b16 %v81
    %v306 = vunpack.c.l.b16 %v82
    %v307 = vunpack.c.l.b16 %v83
    %v308 = vunpack.c.l.b16 %v84
    %v309 = vunpack.c.l.b16 %v85
    %v310 = vunpack.c.l.b16 %v86
    %v311 = vunpack.c.l.b16 %v87
    %v312 = vunpack.c.l.b16 %v88
    %v313 = vunpack.c.l.b16 %v89
    %v314 = vunpack.c.l.b16 %v90
    %v315 = vunpack.c.l.b16 %v91
    %v316 = vunpack.c.l.b16 %v92
    %v317 = vunpack.c.l.b16 %v93
    %v318 = vunpack.c.l.b16 %v94
    %v319 = vunpack.c.l.b16 %v95
    %v320 = vunpack.c.l.b16 %v96
    %v321 = vunpack.c.l.b16 %v97
    %v322 = vunpack.c.l.b16 %v98
    %v323 = vunpack.c.l.b16 %v99
    %v324 = vunpack.c.l.b16 %v100
    %v325 = vunpack.c.l.b16 %v101
    %v326 = vunpack.c.l.b16 %v102
    %v327 = vunpack.c.l.b16 %v103
    %v328 = vunpack.c.l.b16 %v104
    %v329 = vunpack.c.l.b16 %v105
    %v330 = vunpack.c.l.b16 %v106
    %v331 = vunpack.c.l.b16 %v107
    %v332 = vunpack.c.l.b16 %v108
    %v333 = vunpack.c.l.b16 %v109
    %v334 = vunpack.c.l.b16 %v110
    %v335 = vunpack.c.l.b16 %v111
    %v336 = vunpack.c.l.b16 %v112
    %v337 = vunpack.c.l.b16 %v113
    %v338 = vunpack.c.l.b16 %v114
    %v339 = vunpack.c.l.b16 %v115
    %v340 = vunpack.c.l.b16 %v116
    %v341 = vunpack.c.l.b16 %v117
    %v342 = vunpack.c.l.b16 %v118
    %v343 = vunpack.c.l.b16 %v119
    %v344 = vunpack.c.l.b16 %v120
    %v345 = vunpack.c.l.b16 %v121
    %v346 = vunpack.c.l.b16 %v122
    %v347 = vunpack.c.l.b16 %v123
    %v348 = vunpack.c.l.b16 %v124
    %v349 = vunpack.c.l.b16 %v125
    %v350 = vunpack.c.l.b16 %v126
    %v351 = vunpack.c.l.b16 %v127
    %v352 = vunpack.c.l.b16 %v128
    %v353 = vunpack.c.l.b16 %v129
    %v354 = vunpack.c.l.b16 %v130
    %v355 = vunpack.c.l.b16 %v131
    %v356 = vunpack.c.l.b16 %v132
    %v357 = vpack.c.b16 %v262, %v261
    %v358 = vpack.c.b16 %v264, %v263
    %v359 = vpack.c.b16 %v266, %v265
    %v360 = vpack.c.b16 %v268, %v267
    %v361 = vpack.c.b16 %v270, %v269
    %v362 = vpack.c.b16 %v272, %v271
    %v363 = vpack.c.b16 %v274, %v273
    %v364 = vpack.c.b16 %v276, %v275
    %v365 = vpack.c.b16 %v278, %v277
    %v366 = vpack.c.b16 %v280, %v279
    %v367 = vpack.c.b16 %v282, %v281
    %v368 = vpack.c.b16 %v284, %v283
    %v369 = vpack.c.b16 %v286, %v285
    %v370 = vpack.c.b16 %v288, %v287
    %v371 = vpack.c.b16 %v290, %v289
    %v372 = vpack.c.b16 %v292, %v291
    %v373 = vpack.c.b16 %v294, %v293
    %v374 = vpack.c.b16 %v296, %v295
    %v375 = vpack.c.b16 %v298, %v297
    %v376 = vpack.c.b16 %v300, %v299
    %v377 = vpack.c.b16 %v302, %v301
    %v378 = vpack.c.b16 %v304, %v303
    %v379 = vpack.c.b16 %v306, %v305
    %v380 = vpack.c.b16 %v308, %v307
    %v381 = vpack.c.b16 %v310, %v309
    %v382 = vpack.c.b16 %v312, %v311
    %v383 = vpack.c.b16 %v314, %v313
    %v384 = vpack.c.b16 %v316, %v315
    %v385 = vpack.c.b16 %v318, %v317
    %v386 = vpack.c.b16 %v320, %v319
    %v387 = vpack.c.b16 %v322, %v321
    %v388 = vpack.c.b16 %v324, %v323
    %v389 = vpack.c.b16 %v326, %v325
    %v390 = vpack.c.b16 %v328, %v327
    %v391 = vpack.c.b16 %v330, %v329
    %v392 = vpack.c.b16 %v332, %v331
    %v393 = vpack.c.b16 %v334, %v333
    %v394 = vpack.c.b16 %v336, %v335
    %v395 = vpack.c.b16 %v338, %v337
    %v396 = vpack.c.b16 %v340, %v339
    %v397 = vpack.c.b16 %v342, %v341
    %v398 = vpack.c.b16 %v344, %v343
    %v399 = vpack.c.b16 %v346, %v345
    %v400 = vpack.c.b16 %v348, %v347
    %v401 = vpack.c.b16 %v350, %v349
    %v402 = vpack.c.b16 %v352, %v351
    %v403 = vpack.c.b16 %v354, %v353
    %v404 = vpack.c.b16 %v356, %v355
    %453 = vmatprep.subr.bf16.mxu0 0
    %454 = vmatpush1.bf16.msra.mxu0 %v357
    %455 = vmatprep.subr.bf16.mxu0 0
    %456 = vmatpush1.bf16.msra.mxu0 %v358
    %457 = vmatprep.subr.bf16.mxu0 0
    %458 = vmatpush1.bf16.msra.mxu0 %v359
    %459 = vmatprep.subr.bf16.mxu0 0
    %460 = vmatpush1.bf16.msra.mxu0 %v360
    %461 = vmatprep.subr.bf16.mxu0 0
    %462 = vmatpush1.bf16.msra.mxu0 %v361
    %463 = vmatprep.subr.bf16.mxu0 0
    %464 = vmatpush1.bf16.msra.mxu0 %v362
    %465 = vmatprep.subr.bf16.mxu0 0
    %466 = vmatpush1.bf16.msra.mxu0 %v363
    %467 = vmatprep.subr.bf16.mxu0 0
    %468 = vmatpush1.bf16.msra.mxu0 %v364
    %469 = vmatprep.subr.bf16.mxu0 0
    %470 = vmatpush1.bf16.msra.mxu0 %v365
    %471 = vmatprep.subr.bf16.mxu0 0
    %472 = vmatpush1.bf16.msra.mxu0 %v366
    %473 = vmatprep.subr.bf16.mxu0 0
    %474 = vmatpush1.bf16.msra.mxu0 %v367
    %475 = vmatprep.subr.bf16.mxu0 0
    %476 = vmatpush1.bf16.msra.mxu0 %v368
    %477 = vmatprep.subr.bf16.mxu0 0
    %478 = vmatpush1.bf16.msra.mxu0 %v369
    %479 = vmatprep.subr.bf16.mxu0 0
    %480 = vmatpush1.bf16.msra.mxu0 %v370
    %481 = vmatprep.subr.bf16.mxu0 0
    %482 = vmatpush1.bf16.msra.mxu0 %v371
    %483 = vmatprep.subr.bf16.mxu0 0
    %484 = vmatpush1.bf16.msra.mxu0 %v372
    %485 = vmatprep.mubr.bf16.mxu0 %v154
    %486 = vmatmul.mubr.bf16.gmra.mrb[0].mxu0 %v153
    %v487 = vpop.f32.mrb[0].mxu0
    %v488 = vadd.f32 %v133, %v487
    %v489 = vpop.f32.mrb[0].mxu0
    %v490 = vpop.f32.mrb[0].mxu0
    %v491 = vadd.f32 %v134, %v490
    %v492 = vpop.f32.mrb[0].mxu0
    %493 = vdwg.mxu0
    %494 = vmatprep.subr.bf16.mxu0 0
    %495 = vmatpush1.bf16.msra.mxu0 %v373
    %496 = vmatprep.subr.bf16.mxu0 0
    %497 = vmatpush1.bf16.msra.mxu0 %v374
    %498 = vmatprep.subr.bf16.mxu0 0
    %499 = vmatpush1.bf16.msra.mxu0 %v375
    %500 = vmatprep.subr.bf16.mxu0 0
    %501 = vmatpush1.bf16.msra.mxu0 %v376
    %502 = vmatprep.subr.bf16.mxu0 0
    %503 = vmatpush1.bf16.msra.mxu0 %v377
    %504 = vmatprep.subr.bf16.mxu0 0
    %505 = vmatpush1.bf16.msra.mxu0 %v378
    %506 = vmatprep.subr.bf16.mxu0 0
    %507 = vmatpush1.bf16.msra.mxu0 %v379
    %508 = vmatprep.subr.bf16.mxu0 0
    %509 = vmatpush1.bf16.msra.mxu0 %v380
    %510 = vmatprep.subr.bf16.mxu0 0
    %511 = vmatpush1.bf16.msra.mxu0 %v381
    %512 = vmatprep.subr.bf16.mxu0 0
    %513 = vmatpush1.bf16.msra.mxu0 %v382
    %514 = vmatprep.subr.bf16.mxu0 0
    %515 = vmatpush1.bf16.msra.mxu0 %v383
    %516 = vmatprep.subr.bf16.mxu0 0
    %517 = vmatpush1.bf16.msra.mxu0 %v384
    %518 = vmatprep.subr.bf16.mxu0 0
    %519 = vmatpush1.bf16.msra.mxu0 %v385
    %520 = vmatprep.subr.bf16.mxu0 0
    %521 = vmatpush1.bf16.msra.mxu0 %v386
    %522 = vmatprep.subr.bf16.mxu0 0
    %523 = vmatpush1.bf16.msra.mxu0 %v387
    %524 = vmatprep.subr.bf16.mxu0 0
    %525 = vmatpush1.bf16.msra.mxu0 %v388
    %526 = vmatprep.mubr.bf16.mxu0 %v156
    %527 = vmatmul.mubr.bf16.gmra.mrb[0].mxu0 %v155
    %v528 = vpop.f32.mrb[0].mxu0
    %v529 = vadd.f32 %v488, %v528
    %v530 = vpop.f32.mrb[0].mxu0
    %v531 = vpop.f32.mrb[0].mxu0
    %v532 = vadd.f32 %v491, %v531
    %v533 = vpop.f32.mrb[0].mxu0
    %534 = vdwg.mxu0
    %535 = vmatprep.subr.bf16.mxu0 0
    %536 = vmatpush1.bf16.msra.mxu0 %v389
    %537 = vmatprep.subr.bf16.mxu0 0
    %538 = vmatpush1.bf16.msra.mxu0 %v390
    %539 = vmatprep.subr.bf16.mxu0 0
    %540 = vmatpush1.bf16.msra.mxu0 %v391
    %541 = vmatprep.subr.bf16.mxu0 0
    %542 = vmatpush1.bf16.msra.mxu0 %v392
    %543 = vmatprep.subr.bf16.mxu0 0
    %544 = vmatpush1.bf16.msra.mxu0 %v393
    %545 = vmatprep.subr.bf16.mxu0 0
    %546 = vmatpush1.bf16.msra.mxu0 %v394
    %547 = vmatprep.subr.bf16.mxu0 0
    %548 = vmatpush1.bf16.msra.mxu0 %v395
    %549 = vmatprep.subr.bf16.mxu0 0
    %550 = vmatpush1.bf16.msra.mxu0 %v396
    %551 = vmatprep.subr.bf16.mxu0 0
    %552 = vmatpush1.bf16.msra.mxu0 %v397
    %553 = vmatprep.subr.bf16.mxu0 0
    %554 = vmatpush1.bf16.msra.mxu0 %v398
    %555 = vmatprep.subr.bf16.mxu0 0
    %556 = vmatpush1.bf16.msra.mxu0 %v399
    %557 = vmatprep.subr.bf16.mxu0 0
    %558 = vmatpush1.bf16.msra.mxu0 %v400
    %559 = vmatprep.subr.bf16.mxu0 0
    %560 = vmatpush1.bf16.msra.mxu0 %v401
    %561 = vmatprep.subr.bf16.mxu0 0
    %562 = vmatpush1.bf16.msra.mxu0 %v402
    %563 = vmatprep.subr.bf16.mxu0 0
    %564 = vmatpush1.bf16.msra.mxu0 %v403
    %565 = vmatprep.subr.bf16.mxu0 0
    %566 = vmatpush1.bf16.msra.mxu0 %v404
    %567 = vmatprep.mubr.bf16.mxu0 %v158
    %568 = vmatmul.mubr.bf16.gmra.mrb[0].mxu0 %v157
    %v569 = vpop.f32.mrb[0].mxu0
    %v570 = vadd.f32 %v529, %v569
    %v571 = vpop.f32.mrb[0].mxu0
    %v572 = vpop.f32.mrb[0].mxu0
    %v573 = vadd.f32 %v532, %v572
    %v574 = vpop.f32.mrb[0].mxu0
    %575 = vdwg.mxu0
    %v576 = vlaneseq
    %v577 = vand.u32 %v576, 127
    %vm578 = vcmp.ge.s32.totalorder %v577, 0
    %vm579 = vcmp.lt.s32.totalorder %v577, 16
    %vm580 = vmand %vm578, %vm579
    %v581 = vsel %vm580, 0.25, 0.0
    %v582 = vsel %vm580, 1.0, 0.0
    %vm583 = vcmp.ge.s32.totalorder %v577, 16
    %vm584 = vcmp.lt.s32.totalorder %v577, 32
    %vm585 = vmand %vm583, %vm584
    %v586 = vsel %vm585, 0.25, 0.0
    %v587 = vsel %vm585, 1.0, 0.0
    %v588 = vlaneseq
    %v589 = vshrl.u32 %v588, 7
    %v590 = vadd.s32 %v589, 8
    %vm591 = vcmp.ge.s32.totalorder %v589, 0
    %vm592 = vcmp.ge.s32.totalorder %v590, 0
    %vm593 = vcmp.lt.s32.totalorder %v589, 8
    %vm594 = vcmp.lt.s32.totalorder %v590, 8
    %vm595 = vmand %vm591, %vm593
    %vm596 = vmand %vm592, %vm594
    %vm597 = vcmp.lt.s32.totalorder %v577, 5
    %vm598 = vmand %vm578, %vm597
    %vm599 = vmand %vm595, %vm598
    %vm600 = vmand %vm596, %vm598
    %vm601 = vcmp.ge.s32.totalorder %v589, 8
    %vm602 = vcmp.ge.s32.totalorder %v590, 8
    %vm603 = vcmp.lt.s32.totalorder %v589, 16
    %vm604 = vcmp.lt.s32.totalorder %v590, 16
    %vm605 = vmand %vm601, %vm603
    %vm606 = vmand %vm602, %vm604
    %vm607 = vcmp.ge.s32.totalorder %v577, 8
    %vm608 = vcmp.lt.s32.totalorder %v577, 13
    %vm609 = vmand %vm607, %vm608
    %vm610 = vmand %vm605, %vm609
    %vm611 = vmand %vm606, %vm609
    %vm612 = vmor %vm599, %vm610
    %vm613 = vmor %vm600, %vm611
    %v614 = vsel %vm612, 0.0, -1e+30
    %v615 = vsel %vm613, 0.0, -1e+30
    %v616 = vld [vmem:[%s6] sm:$0x1]
    %v617 = vld [vmem:[%s6 + $0x1] sm:$0x1]
    %v618 = vld [vmem:[%s6 + $0x2] sm:$0x1]
    %v619 = vld [vmem:[%s6 + $0x3] sm:$0x1]
    %v620 = vld [vmem:[%s6 + $0x4] sm:$0x1]
    %v621 = vld [vmem:[%s6 + $0x5] sm:$0x1]
    %v622 = vld [vmem:[%s6 + $0x6] sm:$0x1]
    %v623 = vld [vmem:[%s6 + $0x7] sm:$0x1]
    %v624 = vld [vmem:[%s6 + $0x8] sm:$0x1]
    %v625 = vld [vmem:[%s6 + $0x9] sm:$0x1]
    %vm626 = vcmask 261120
    %v627 = vsel %vm626, %v570, 0.0
    %628 = vadd.xlane.f32.xlu0 %v627
    %v629 = vpop.xlane.xlu0 %628
    %v630 = vsel %vm626, %v573, 0.0
    %631 = vadd.xlane.f32.xlu0 %v630
    %v632 = vpop.xlane.xlu0 %631
    %v633 = vrcp.pop 32.0
    %v634 = vmul.f32 %v629, %v633
    %v635 = vmul.f32 %v632, %v633
    %v636 = vsub.f32 %v570, %v634
    %v637 = vsub.f32 %v573, %v635
    %v638 = vmul.f32 %v636, %v636
    %v639 = vmul.f32 %v637, %v637
    %v640 = vsel %vm626, %v638, 0.0
    %641 = vadd.xlane.f32.xlu0 %v640
    %v642 = vpop.xlane.xlu0 %641
    %v643 = vsel %vm626, %v639, 0.0
    %644 = vadd.xlane.f32.xlu0 %v643
    %v645 = vpop.xlane.xlu0 %644
    %v646 = vmul.f32 %v642, %v633
    %v647 = vmul.f32 %v645, %v633
    %v648 = vadd.f32 %v646, 1e-06
    %v649 = vadd.f32 %v647, 1e-06
    %v650 = vrsqrt.pop %v648
    %v651 = vrsqrt.pop %v649
    %v652 = vmul.f32 %v636, %v650
    %v653 = vmul.f32 %v637, %v651
    %v654 = vlaneseq
    %v655 = vshrl.u32 %v654, 7
    %v656 = vsub.s32 0, %v655
    %v657 = vrot.slane %v616, %v656
    %v658 = vmul.f32 %v652, %v657
    %v659 = vmul.f32 %v653, %v657
    %v660 = vlaneseq
    %v661 = vshrl.u32 %v660, 7
    %v662 = vsub.s32 0, %v661
    %v663 = vrot.slane %v617, %v662
    %v664 = vadd.f32 %v658, %v663
    %v665 = vadd.f32 %v659, %v663
    %v666 = vpack.c.bf16 %v665, %v664
    %v667 = vld [vmem:[%s3] sm:$0xf]
    %v668 = vld [vmem:[%s3 + $0x4] sm:$0xf]
    %v669 = vld [vmem:[%s3 + $0x8] sm:$0xf]
    %v670 = vld [vmem:[%s3 + $0xc] sm:$0xf]
    %v671 = vlaneseq
    %v672 = vshrl.u32 %v671, 7
    %v673 = vsub.s32 0, %v672
    %v674 = vrot.slane %v618, %v673
    %v679 = vunpack.c.l.b16 %v667
    %v680 = vunpack.c.l.b16 %v668
    %v681 = vunpack.c.l.b16 %v669
    %v682 = vunpack.c.l.b16 %v670
    %v683 = vpack.c.b16 %v680, %v679
    %v684 = vpack.c.b16 %v682, %v681
    %v688 = vsel %vm626, %v666, 0
    %690 = vmatprep.subr.bf16.mxu0 0
    %691 = vmatpush1.bf16.msra.mxu0 %v683
    %692 = vmatprep.subr.bf16.mxu0 0
    %693 = vmatpush1.bf16.msra.mxu0 %v684
    %694 = vmatprep.subr.bf16.mxu0 0
    %695 = vmatpush1.bf16.msra.mxu0 0
    %696 = vmatprep.subr.bf16.mxu0 0
    %697 = vmatpush1.bf16.msra.mxu0 0
    %698 = vmatprep.subr.bf16.mxu0 0
    %699 = vmatpush1.bf16.msra.mxu0 0
    %700 = vmatprep.subr.bf16.mxu0 0
    %701 = vmatpush1.bf16.msra.mxu0 0
    %702 = vmatprep.subr.bf16.mxu0 0
    %703 = vmatpush1.bf16.msra.mxu0 0
    %704 = vmatprep.subr.bf16.mxu0 0
    %705 = vmatpush1.bf16.msra.mxu0 0
    %706 = vmatprep.subr.bf16.mxu0 0
    %707 = vmatpush1.bf16.msra.mxu0 0
    %708 = vmatprep.subr.bf16.mxu0 0
    %709 = vmatpush1.bf16.msra.mxu0 0
    %710 = vmatprep.subr.bf16.mxu0 0
    %711 = vmatpush1.bf16.msra.mxu0 0
    %712 = vmatprep.subr.bf16.mxu0 0
    %713 = vmatpush1.bf16.msra.mxu0 0
    %714 = vmatprep.subr.bf16.mxu0 0
    %715 = vmatpush1.bf16.msra.mxu0 0
    %716 = vmatprep.subr.bf16.mxu0 0
    %717 = vmatpush1.bf16.msra.mxu0 0
    %718 = vmatprep.subr.bf16.mxu0 0
    %719 = vmatpush1.bf16.msra.mxu0 0
    %720 = vmatprep.subr.bf16.mxu0 0
    %721 = vmatpush1.bf16.msra.mxu0 0
    %722 = vmatprep.mubr.bf16.mxu0 0
    %723 = vmatmul.mubr.bf16.gmra.mrb[0].mxu0 %v688
    %v724 = vpop.f32.mrb[0].mxu0
    %v725 = vadd.f32 %v674, %v724
    %v726 = vpop.f32.mrb[0].mxu0
    %v727 = vpop.f32.mrb[0].mxu0
    %v728 = vadd.f32 %v674, %v727
    %v729 = vpop.f32.mrb[0].mxu0
    %730 = vdwg.mxu0
    %s731 = scalar_lea.vmem %s3, 16
    %v732 = vld [vmem:[%s731] sm:$0xf]
    %v733 = vld [vmem:[%s731 + $0x4] sm:$0xf]
    %v734 = vld [vmem:[%s731 + $0x8] sm:$0xf]
    %v735 = vld [vmem:[%s731 + $0xc] sm:$0xf]
    %v736 = vlaneseq
    %v737 = vshrl.u32 %v736, 7
    %v738 = vsub.s32 0, %v737
    %v739 = vrot.slane %v619, %v738
    %v744 = vunpack.c.l.b16 %v732
    %v745 = vunpack.c.l.b16 %v733
    %v746 = vunpack.c.l.b16 %v734
    %v747 = vunpack.c.l.b16 %v735
    %v748 = vpack.c.b16 %v745, %v744
    %v749 = vpack.c.b16 %v747, %v746
    %752 = vmatprep.subr.bf16.mxu0 0
    %753 = vmatpush1.bf16.msra.mxu0 %v748
    %754 = vmatprep.subr.bf16.mxu0 0
    %755 = vmatpush1.bf16.msra.mxu0 %v749
    %756 = vmatprep.subr.bf16.mxu0 0
    %757 = vmatpush1.bf16.msra.mxu0 0
    %758 = vmatprep.subr.bf16.mxu0 0
    %759 = vmatpush1.bf16.msra.mxu0 0
    %760 = vmatprep.subr.bf16.mxu0 0
    %761 = vmatpush1.bf16.msra.mxu0 0
    %762 = vmatprep.subr.bf16.mxu0 0
    %763 = vmatpush1.bf16.msra.mxu0 0
    %764 = vmatprep.subr.bf16.mxu0 0
    %765 = vmatpush1.bf16.msra.mxu0 0
    %766 = vmatprep.subr.bf16.mxu0 0
    %767 = vmatpush1.bf16.msra.mxu0 0
    %768 = vmatprep.subr.bf16.mxu0 0
    %769 = vmatpush1.bf16.msra.mxu0 0
    %770 = vmatprep.subr.bf16.mxu0 0
    %771 = vmatpush1.bf16.msra.mxu0 0
    %772 = vmatprep.subr.bf16.mxu0 0
    %773 = vmatpush1.bf16.msra.mxu0 0
    %774 = vmatprep.subr.bf16.mxu0 0
    %775 = vmatpush1.bf16.msra.mxu0 0
    %776 = vmatprep.subr.bf16.mxu0 0
    %777 = vmatpush1.bf16.msra.mxu0 0
    %778 = vmatprep.subr.bf16.mxu0 0
    %779 = vmatpush1.bf16.msra.mxu0 0
    %780 = vmatprep.subr.bf16.mxu0 0
    %781 = vmatpush1.bf16.msra.mxu0 0
    %782 = vmatprep.subr.bf16.mxu0 0
    %783 = vmatpush1.bf16.msra.mxu0 0
    %784 = vmatprep.mubr.bf16.mxu0 0
    %785 = vmatmul.mubr.bf16.gmra.mrb[0].mxu0 %v688
    %v786 = vpop.f32.mrb[0].mxu0
    %v787 = vadd.f32 %v739, %v786
    %v788 = vpop.f32.mrb[0].mxu0
    %v789 = vpop.f32.mrb[0].mxu0
    %v790 = vadd.f32 %v739, %v789
    %v791 = vpop.f32.mrb[0].mxu0
    %792 = vdwg.mxu0
    %s793 = scalar_lea.vmem %s3, 32
    %v794 = vld [vmem:[%s793] sm:$0xf]
    %v795 = vld [vmem:[%s793 + $0x4] sm:$0xf]
    %v796 = vld [vmem:[%s793 + $0x8] sm:$0xf]
    %v797 = vld [vmem:[%s793 + $0xc] sm:$0xf]
    %v798 = vlaneseq
    %v799 = vshrl.u32 %v798, 7
    %v800 = vsub.s32 0, %v799
    %v801 = vrot.slane %v620, %v800
    %v806 = vunpack.c.l.b16 %v794
    %v807 = vunpack.c.l.b16 %v795
    %v808 = vunpack.c.l.b16 %v796
    %v809 = vunpack.c.l.b16 %v797
    %v810 = vpack.c.b16 %v807, %v806
    %v811 = vpack.c.b16 %v809, %v808
    %814 = vmatprep.subr.bf16.mxu0 0
    %815 = vmatpush1.bf16.msra.mxu0 %v810
    %816 = vmatprep.subr.bf16.mxu0 0
    %817 = vmatpush1.bf16.msra.mxu0 %v811
    %818 = vmatprep.subr.bf16.mxu0 0
    %819 = vmatpush1.bf16.msra.mxu0 0
    %820 = vmatprep.subr.bf16.mxu0 0
    %821 = vmatpush1.bf16.msra.mxu0 0
    %822 = vmatprep.subr.bf16.mxu0 0
    %823 = vmatpush1.bf16.msra.mxu0 0
    %824 = vmatprep.subr.bf16.mxu0 0
    %825 = vmatpush1.bf16.msra.mxu0 0
    %826 = vmatprep.subr.bf16.mxu0 0
    %827 = vmatpush1.bf16.msra.mxu0 0
    %828 = vmatprep.subr.bf16.mxu0 0
    %829 = vmatpush1.bf16.msra.mxu0 0
    %830 = vmatprep.subr.bf16.mxu0 0
    %831 = vmatpush1.bf16.msra.mxu0 0
    %832 = vmatprep.subr.bf16.mxu0 0
    %833 = vmatpush1.bf16.msra.mxu0 0
    %834 = vmatprep.subr.bf16.mxu0 0
    %835 = vmatpush1.bf16.msra.mxu0 0
    %836 = vmatprep.subr.bf16.mxu0 0
    %837 = vmatpush1.bf16.msra.mxu0 0
    %838 = vmatprep.subr.bf16.mxu0 0
    %839 = vmatpush1.bf16.msra.mxu0 0
    %840 = vmatprep.subr.bf16.mxu0 0
    %841 = vmatpush1.bf16.msra.mxu0 0
    %842 = vmatprep.subr.bf16.mxu0 0
    %843 = vmatpush1.bf16.msra.mxu0 0
    %844 = vmatprep.subr.bf16.mxu0 0
    %845 = vmatpush1.bf16.msra.mxu0 0
    %846 = vmatprep.mubr.bf16.mxu0 0
    %847 = vmatmul.mubr.bf16.gmra.mrb[0].mxu0 %v688
    %v848 = vpop.f32.mrb[0].mxu0
    %v849 = vadd.f32 %v801, %v848
    %v850 = vpop.f32.mrb[0].mxu0
    %v851 = vpop.f32.mrb[0].mxu0
    %v852 = vadd.f32 %v801, %v851
    %v853 = vpop.f32.mrb[0].mxu0
    %854 = vdwg.mxu0
    %855 = vxpose.xlu0.b32.start [1/16] %v787, 128
    %856 = vxpose.xlu0.b32.cont [2/16] %v790, 128
    %857 = vxpose.xlu0.b32.cont [3/16] 0.0, 128
    %858 = vxpose.xlu0.b32.cont [4/16] 0.0, 128
    %859 = vxpose.xlu0.b32.cont [5/16] 0.0, 128
    %860 = vxpose.xlu0.b32.cont [6/16] 0.0, 128
    %861 = vxpose.xlu0.b32.cont [7/16] 0.0, 128
    %862 = vxpose.xlu0.b32.cont [8/16] 0.0, 128
    %863 = vxpose.xlu0.b32.cont [9/16] 0.0, 128
    %864 = vxpose.xlu0.b32.cont [10/16] 0.0, 128
    %865 = vxpose.xlu0.b32.cont [11/16] 0.0, 128
    %866 = vxpose.xlu0.b32.cont [12/16] 0.0, 128
    %867 = vxpose.xlu0.b32.cont [13/16] 0.0, 128
    %868 = vxpose.xlu0.b32.cont [14/16] 0.0, 128
    %869 = vxpose.xlu0.b32.cont [15/16] 0.0, 128
    %870 = vxpose.xlu0.b32.end [16/16] 0.0, 128
    %v871 = vpop.trf.xlu0
    %v872 = vpop.trf.xlu0
    %v873 = vpop.trf.xlu0
    %v874 = vpop.trf.xlu0
    %v875 = vpop.trf.xlu0
    %v876 = vpop.trf.xlu0
    %v877 = vpop.trf.xlu0
    %v878 = vpop.trf.xlu0
    %v879 = vpop.trf.xlu0
    %v880 = vpop.trf.xlu0
    %v881 = vpop.trf.xlu0
    %v882 = vpop.trf.xlu0
    %v883 = vpop.trf.xlu0
    %v884 = vpop.trf.xlu0
    %v885 = vpop.trf.xlu0
    %v886 = vpop.trf.xlu0
    %v887 = vpack.c.bf16 %v872, %v871
    %v888 = vpack.c.bf16 %v874, %v873
    %v889 = vmul.f32 %v725, %v581
    %v890 = vmul.f32 %v728, %v581
    %v891 = vpack.c.bf16 %v890, %v889
    %v893 = vsel %vm626, %v891, 0
    %895 = vmatprep.subr.bf16.mxu0 0
    %896 = vmatpush1.bf16.msra.mxu0 %v887
    %897 = vmatprep.subr.bf16.mxu0 0
    %898 = vmatpush1.bf16.msra.mxu0 %v888
    %899 = vmatprep.subr.bf16.mxu0 0
    %900 = vmatpush1.bf16.msra.mxu0 0
    %901 = vmatprep.subr.bf16.mxu0 0
    %902 = vmatpush1.bf16.msra.mxu0 0
    %903 = vmatprep.subr.bf16.mxu0 0
    %904 = vmatpush1.bf16.msra.mxu0 0
    %905 = vmatprep.subr.bf16.mxu0 0
    %906 = vmatpush1.bf16.msra.mxu0 0
    %907 = vmatprep.subr.bf16.mxu0 0
    %908 = vmatpush1.bf16.msra.mxu0 0
    %909 = vmatprep.subr.bf16.mxu0 0
    %910 = vmatpush1.bf16.msra.mxu0 0
    %911 = vmatprep.subr.bf16.mxu0 0
    %912 = vmatpush1.bf16.msra.mxu0 0
    %913 = vmatprep.subr.bf16.mxu0 0
    %914 = vmatpush1.bf16.msra.mxu0 0
    %915 = vmatprep.subr.bf16.mxu0 0
    %916 = vmatpush1.bf16.msra.mxu0 0
    %917 = vmatprep.subr.bf16.mxu0 0
    %918 = vmatpush1.bf16.msra.mxu0 0
    %919 = vmatprep.subr.bf16.mxu0 0
    %920 = vmatpush1.bf16.msra.mxu0 0
    %921 = vmatprep.subr.bf16.mxu0 0
    %922 = vmatpush1.bf16.msra.mxu0 0
    %923 = vmatprep.subr.bf16.mxu0 0
    %924 = vmatpush1.bf16.msra.mxu0 0
    %925 = vmatprep.subr.bf16.mxu0 0
    %926 = vmatpush1.bf16.msra.mxu0 0
    %927 = vmatprep.mubr.bf16.mxu0 0
    %928 = vmatmul.mubr.bf16.gmra.mrb[0].mxu0 %v893
    %v929 = vpop.f32.mrb[0].mxu0
    %v930 = vadd.f32 %v614, %v929
    %v931 = vpop.f32.mrb[0].mxu0
    %v932 = vpop.f32.mrb[0].mxu0
    %v933 = vadd.f32 %v615, %v932
    %v934 = vpop.f32.mrb[0].mxu0
    %935 = vdwg.mxu0
    %vm936 = vcmask 130048
    %v937 = vsel %vm936, %v930, -inf
    %938 = vmax.xlane.f32.xlu0 %v937
    %v939 = vpop.xlane.xlu0 %938
    %v940 = vsel %vm936, %v933, -inf
    %941 = vmax.xlane.f32.xlu0 %v940
    %v942 = vpop.xlane.xlu0 %941
    %v943 = vsub.f32 %v930, %v939
    %v944 = vsub.f32 %v933, %v942
    %v945 = vmul.f32 %v943, 1.442695
    %v946 = vpow.pop %v945
    %v947 = vmul.f32 %v944, 1.442695
    %v948 = vpow.pop %v947
    %v949 = vsel %vm936, %v946, 0.0
    %950 = vadd.xlane.f32.xlu0 %v949
    %v951 = vpop.xlane.xlu0 %950
    %v952 = vsel %vm936, %v948, 0.0
    %953 = vadd.xlane.f32.xlu0 %v952
    %v954 = vpop.xlane.xlu0 %953
    %v955 = vrcp.pop %v951
    %v956 = vrcp.pop %v954
    %v957 = vmul.f32 %v946, %v955
    %v958 = vmul.f32 %v948, %v956
    %v959 = vmul.f32 %v849, %v582
    %v960 = vmul.f32 %v852, %v582
    %v961 = vpack.c.bf16 %v960, %v959
    %v962 = vpack.c.bf16 %v958, %v957
    %v963 = vmul.f32 %v725, %v586
    %v964 = vmul.f32 %v728, %v586
    %v965 = vpack.c.bf16 %v964, %v963
    %v967 = vsel %vm626, %v965, 0
    %969 = vmatprep.subr.bf16.mxu0 0
    %970 = vmatpush1.bf16.msra.mxu0 %v887
    %971 = vmatprep.subr.bf16.mxu0 0
    %972 = vmatpush1.bf16.msra.mxu0 %v888
    %973 = vmatprep.subr.bf16.mxu0 0
    %974 = vmatpush1.bf16.msra.mxu0 0
    %975 = vmatprep.subr.bf16.mxu0 0
    %976 = vmatpush1.bf16.msra.mxu0 0
    %977 = vmatprep.subr.bf16.mxu0 0
    %978 = vmatpush1.bf16.msra.mxu0 0
    %979 = vmatprep.subr.bf16.mxu0 0
    %980 = vmatpush1.bf16.msra.mxu0 0
    %981 = vmatprep.subr.bf16.mxu0 0
    %982 = vmatpush1.bf16.msra.mxu0 0
    %983 = vmatprep.subr.bf16.mxu0 0
    %984 = vmatpush1.bf16.msra.mxu0 0
    %985 = vmatprep.subr.bf16.mxu0 0
    %986 = vmatpush1.bf16.msra.mxu0 0
    %987 = vmatprep.subr.bf16.mxu0 0
    %988 = vmatpush1.bf16.msra.mxu0 0
    %989 = vmatprep.subr.bf16.mxu0 0
    %990 = vmatpush1.bf16.msra.mxu0 0
    %991 = vmatprep.subr.bf16.mxu0 0
    %992 = vmatpush1.bf16.msra.mxu0 0
    %993 = vmatprep.subr.bf16.mxu0 0
    %994 = vmatpush1.bf16.msra.mxu0 0
    %995 = vmatprep.subr.bf16.mxu0 0
    %996 = vmatpush1.bf16.msra.mxu0 0
    %997 = vmatprep.subr.bf16.mxu0 0
    %998 = vmatpush1.bf16.msra.mxu0 0
    %999 = vmatprep.subr.bf16.mxu0 0
    %1000 = vmatpush1.bf16.msra.mxu0 0
    %1001 = vmatprep.mubr.bf16.mxu0 0
    %1002 = vmatmul.mubr.bf16.gmra.mrb[0].mxu0 %v967
    %v1003 = vpop.f32.mrb[0].mxu0
    %v1004 = vadd.f32 %v614, %v1003
    %v1005 = vpop.f32.mrb[0].mxu0
    %v1006 = vpop.f32.mrb[0].mxu0
    %v1007 = vadd.f32 %v615, %v1006
    %v1008 = vpop.f32.mrb[0].mxu0
    %1009 = vdwg.mxu0
    %v1010 = vsel %vm936, %v1004, -inf
    %1011 = vmax.xlane.f32.xlu0 %v1010
    %v1012 = vpop.xlane.xlu0 %1011
    %v1013 = vsel %vm936, %v1007, -inf
    %1014 = vmax.xlane.f32.xlu0 %v1013
    %v1015 = vpop.xlane.xlu0 %1014
    %v1016 = vsub.f32 %v1004, %v1012
    %v1017 = vsub.f32 %v1007, %v1015
    %v1018 = vmul.f32 %v1016, 1.442695
    %v1019 = vpow.pop %v1018
    %v1020 = vmul.f32 %v1017, 1.442695
    %v1021 = vpow.pop %v1020
    %v1022 = vsel %vm936, %v1019, 0.0
    %1023 = vadd.xlane.f32.xlu0 %v1022
    %v1024 = vpop.xlane.xlu0 %1023
    %v1025 = vsel %vm936, %v1021, 0.0
    %1026 = vadd.xlane.f32.xlu0 %v1025
    %v1027 = vpop.xlane.xlu0 %1026
    %v1028 = vrcp.pop %v1024
    %v1029 = vrcp.pop %v1027
    %v1030 = vmul.f32 %v1019, %v1028
    %v1031 = vmul.f32 %v1021, %v1029
    %v1032 = vmul.f32 %v849, %v587
    %v1033 = vmul.f32 %v852, %v587
    %v1034 = vpack.c.bf16 %v1033, %v1032
    %v1035 = vpack.c.bf16 %v1031, %v1030
    %v1037 = vsel %vm936, %v1035, 0
    %1039 = vmatprep.subr.bf16.mxu0 0
    %1040 = vmatpush1.bf16.msra.mxu0 %v1034
    %1041 = vmatprep.subr.bf16.mxu0 0
    %1042 = vmatpush1.bf16.msra.mxu0 0
    %1043 = vmatprep.subr.bf16.mxu0 0
    %1044 = vmatpush1.bf16.msra.mxu0 0
    %1045 = vmatprep.subr.bf16.mxu0 0
    %1046 = vmatpush1.bf16.msra.mxu0 0
    %1047 = vmatprep.subr.bf16.mxu0 0
    %1048 = vmatpush1.bf16.msra.mxu0 0
    %1049 = vmatprep.subr.bf16.mxu0 0
    %1050 = vmatpush1.bf16.msra.mxu0 0
    %1051 = vmatprep.subr.bf16.mxu0 0
    %1052 = vmatpush1.bf16.msra.mxu0 0
    %1053 = vmatprep.subr.bf16.mxu0 0
    %1054 = vmatpush1.bf16.msra.mxu0 0
    %1055 = vmatprep.subr.bf16.mxu0 0
    %1056 = vmatpush1.bf16.msra.mxu0 0
    %1057 = vmatprep.subr.bf16.mxu0 0
    %1058 = vmatpush1.bf16.msra.mxu0 0
    %1059 = vmatprep.subr.bf16.mxu0 0
    %1060 = vmatpush1.bf16.msra.mxu0 0
    %1061 = vmatprep.subr.bf16.mxu0 0
    %1062 = vmatpush1.bf16.msra.mxu0 0
    %1063 = vmatprep.subr.bf16.mxu0 0
    %1064 = vmatpush1.bf16.msra.mxu0 0
    %1065 = vmatprep.subr.bf16.mxu0 0
    %1066 = vmatpush1.bf16.msra.mxu0 0
    %1067 = vmatprep.subr.bf16.mxu0 0
    %1068 = vmatpush1.bf16.msra.mxu0 0
    %1069 = vmatprep.subr.bf16.mxu0 0
    %1070 = vmatpush1.bf16.msra.mxu0 0
    %1071 = vmatprep.mubr.bf16.mxu0 0
    %1072 = vmatmul.mubr.bf16.gmra.mrb[0].mxu0 %v1037
    %v1073 = vpop.f32.mrb[0].mxu0
    %v1074 = vadd.f32 0.0, %v1073
    %v1075 = vpop.f32.mrb[0].mxu0
    %v1076 = vpop.f32.mrb[0].mxu0
    %v1077 = vadd.f32 0.0, %v1076
    %v1078 = vpop.f32.mrb[0].mxu0
    %1079 = vdwg.mxu0
    %v1081 = vsel %vm936, %v962, 0
    %1083 = vmatprep.subr.bf16.mxu0 0
    %1084 = vmatpush1.bf16.msra.mxu0 %v961
    %1085 = vmatprep.subr.bf16.mxu0 0
    %1086 = vmatpush1.bf16.msra.mxu0 0
    %1087 = vmatprep.subr.bf16.mxu0 0
    %1088 = vmatpush1.bf16.msra.mxu0 0
    %1089 = vmatprep.subr.bf16.mxu0 0
    %1090 = vmatpush1.bf16.msra.mxu0 0
    %1091 = vmatprep.subr.bf16.mxu0 0
    %1092 = vmatpush1.bf16.msra.mxu0 0
    %1093 = vmatprep.subr.bf16.mxu0 0
    %1094 = vmatpush1.bf16.msra.mxu0 0
    %1095 = vmatprep.subr.bf16.mxu0 0
    %1096 = vmatpush1.bf16.msra.mxu0 0
    %1097 = vmatprep.subr.bf16.mxu0 0
    %1098 = vmatpush1.bf16.msra.mxu0 0
    %1099 = vmatprep.subr.bf16.mxu0 0
    %1100 = vmatpush1.bf16.msra.mxu0 0
    %1101 = vmatprep.subr.bf16.mxu0 0
    %1102 = vmatpush1.bf16.msra.mxu0 0
    %1103 = vmatprep.subr.bf16.mxu0 0
    %1104 = vmatpush1.bf16.msra.mxu0 0
    %1105 = vmatprep.subr.bf16.mxu0 0
    %1106 = vmatpush1.bf16.msra.mxu0 0
    %1107 = vmatprep.subr.bf16.mxu0 0
    %1108 = vmatpush1.bf16.msra.mxu0 0
    %1109 = vmatprep.subr.bf16.mxu0 0
    %1110 = vmatpush1.bf16.msra.mxu0 0
    %1111 = vmatprep.subr.bf16.mxu0 0
    %1112 = vmatpush1.bf16.msra.mxu0 0
    %1113 = vmatprep.subr.bf16.mxu0 0
    %1114 = vmatpush1.bf16.msra.mxu0 0
    %1115 = vmatprep.mubr.bf16.mxu0 0
    %1116 = vmatmul.mubr.bf16.gmra.mrb[0].mxu0 %v1081
    %v1117 = vpop.f32.mrb[0].mxu0
    %v1118 = vadd.f32 %v1074, %v1117
    %v1119 = vpop.f32.mrb[0].mxu0
    %v1120 = vpop.f32.mrb[0].mxu0
    %v1121 = vadd.f32 %v1077, %v1120
    %v1122 = vpop.f32.mrb[0].mxu0
    %1123 = vdwg.mxu0
    %v1124 = vpack.c.bf16 %v1121, %v1118
    %s1125 = scalar_lea.vmem %s3, 48
    %v1126 = vld [vmem:[%s1125] sm:$0xf]
    %v1127 = vld [vmem:[%s1125 + $0x4] sm:$0xf]
    %v1128 = vld [vmem:[%s1125 + $0x8] sm:$0xf]
    %v1129 = vld [vmem:[%s1125 + $0xc] sm:$0xf]
    %v1134 = vunpack.c.l.b16 %v1126
    %v1135 = vunpack.c.l.b16 %v1127
    %v1136 = vunpack.c.l.b16 %v1128
    %v1137 = vunpack.c.l.b16 %v1129
    %v1138 = vpack.c.b16 %v1135, %v1134
    %v1139 = vpack.c.b16 %v1137, %v1136
    %v1143 = vsel %vm626, %v1124, 0
    %1145 = vmatprep.subr.bf16.mxu0 0
    %1146 = vmatpush1.bf16.msra.mxu0 %v1138
    %1147 = vmatprep.subr.bf16.mxu0 0
    %1148 = vmatpush1.bf16.msra.mxu0 %v1139
    %1149 = vmatprep.subr.bf16.mxu0 0
    %1150 = vmatpush1.bf16.msra.mxu0 0
    %1151 = vmatprep.subr.bf16.mxu0 0
    %1152 = vmatpush1.bf16.msra.mxu0 0
    %1153 = vmatprep.subr.bf16.mxu0 0
    %1154 = vmatpush1.bf16.msra.mxu0 0
    %1155 = vmatprep.subr.bf16.mxu0 0
    %1156 = vmatpush1.bf16.msra.mxu0 0
    %1157 = vmatprep.subr.bf16.mxu0 0
    %1158 = vmatpush1.bf16.msra.mxu0 0
    %1159 = vmatprep.subr.bf16.mxu0 0
    %1160 = vmatpush1.bf16.msra.mxu0 0
    %1161 = vmatprep.subr.bf16.mxu0 0
    %1162 = vmatpush1.bf16.msra.mxu0 0
    %1163 = vmatprep.subr.bf16.mxu0 0
    %1164 = vmatpush1.bf16.msra.mxu0 0
    %1165 = vmatprep.subr.bf16.mxu0 0
    %1166 = vmatpush1.bf16.msra.mxu0 0
    %1167 = vmatprep.subr.bf16.mxu0 0
    %1168 = vmatpush1.bf16.msra.mxu0 0
    %1169 = vmatprep.subr.bf16.mxu0 0
    %1170 = vmatpush1.bf16.msra.mxu0 0
    %1171 = vmatprep.subr.bf16.mxu0 0
    %1172 = vmatpush1.bf16.msra.mxu0 0
    %1173 = vmatprep.subr.bf16.mxu0 0
    %1174 = vmatpush1.bf16.msra.mxu0 0
    %1175 = vmatprep.subr.bf16.mxu0 0
    %1176 = vmatpush1.bf16.msra.mxu0 0
    %1177 = vmatprep.mubr.bf16.mxu0 0
    %1178 = vmatmul.mubr.bf16.gmra.mrb[0].mxu0 %v1143
    %v1179 = vpop.f32.mrb[0].mxu0
    %v1180 = vadd.f32 0.0, %v1179
    %v1181 = vpop.f32.mrb[0].mxu0
    %v1182 = vpop.f32.mrb[0].mxu0
    %v1183 = vadd.f32 0.0, %v1182
    %v1184 = vpop.f32.mrb[0].mxu0
    %1185 = vdwg.mxu0
    %v1186 = vadd.f32 %v570, %v1180
    %v1187 = vadd.f32 %v573, %v1183
    %v1188 = vlaneseq
    %v1189 = vshrl.u32 %v1188, 7
    %v1190 = vsub.s32 0, %v1189
    %v1191 = vrot.slane %v621, %v1190
    %v1192 = vadd.f32 %v1186, %v1191
    %v1193 = vadd.f32 %v1187, %v1191
    %v1194 = vsel %vm626, %v1192, 0.0
    %1195 = vadd.xlane.f32.xlu0 %v1194
    %v1196 = vpop.xlane.xlu0 %1195
    %v1197 = vsel %vm626, %v1193, 0.0
    %1198 = vadd.xlane.f32.xlu0 %v1197
    %v1199 = vpop.xlane.xlu0 %1198
    %v1200 = vmul.f32 %v1196, %v633
    %v1201 = vmul.f32 %v1199, %v633
    %v1202 = vsub.f32 %v1192, %v1200
    %v1203 = vsub.f32 %v1193, %v1201
    %v1204 = vmul.f32 %v1202, %v1202
    %v1205 = vmul.f32 %v1203, %v1203
    %v1206 = vsel %vm626, %v1204, 0.0
    %1207 = vadd.xlane.f32.xlu0 %v1206
    %v1208 = vpop.xlane.xlu0 %1207
    %v1209 = vsel %vm626, %v1205, 0.0
    %1210 = vadd.xlane.f32.xlu0 %v1209
    %v1211 = vpop.xlane.xlu0 %1210
    %v1212 = vmul.f32 %v1208, %v633
    %v1213 = vmul.f32 %v1211, %v633
    %v1214 = vadd.f32 %v1212, 1e-06
    %v1215 = vadd.f32 %v1213, 1e-06
    %v1216 = vrsqrt.pop %v1214
    %v1217 = vrsqrt.pop %v1215
    %v1218 = vmul.f32 %v1202, %v1216
    %v1219 = vmul.f32 %v1203, %v1217
    %v1220 = vlaneseq
    %v1221 = vshrl.u32 %v1220, 7
    %v1222 = vsub.s32 0, %v1221
    %v1223 = vrot.slane %v622, %v1222
    %v1224 = vmul.f32 %v1218, %v1223
    %v1225 = vmul.f32 %v1219, %v1223
    %v1226 = vlaneseq
    %v1227 = vshrl.u32 %v1226, 7
    %v1228 = vsub.s32 0, %v1227
    %v1229 = vrot.slane %v623, %v1228
    %v1230 = vadd.f32 %v1224, %v1229
    %v1231 = vadd.f32 %v1225, %v1229
    %v1232 = vpack.c.bf16 %v1231, %v1230
    %v1233 = vld [vmem:[%s4] sm:$0xf]
    %v1234 = vld [vmem:[%s4 + $0x4] sm:$0xf]
    %v1235 = vld [vmem:[%s4 + $0x8] sm:$0xf]
    %v1236 = vld [vmem:[%s4 + $0xc] sm:$0xf]
    %v1237 = vlaneseq
    %v1238 = vshrl.u32 %v1237, 7
    %v1239 = vsub.s32 0, %v1238
    %v1240 = vrot.slane %v625, %v1239
    %v1245 = vunpack.c.l.b16 %v1233
    %v1246 = vunpack.c.l.b16 %v1234
    %v1247 = vunpack.c.l.b16 %v1235
    %v1248 = vunpack.c.l.b16 %v1236
    %v1249 = vpack.c.b16 %v1246, %v1245
    %v1250 = vpack.c.b16 %v1248, %v1247
    %v1254 = vsel %vm626, %v1232, 0
    %1256 = vmatprep.subr.bf16.mxu0 0
    %1257 = vmatpush1.bf16.msra.mxu0 %v1249
    %1258 = vmatprep.subr.bf16.mxu0 0
    %1259 = vmatpush1.bf16.msra.mxu0 %v1250
    %1260 = vmatprep.subr.bf16.mxu0 0
    %1261 = vmatpush1.bf16.msra.mxu0 0
    %1262 = vmatprep.subr.bf16.mxu0 0
    %1263 = vmatpush1.bf16.msra.mxu0 0
    %1264 = vmatprep.subr.bf16.mxu0 0
    %1265 = vmatpush1.bf16.msra.mxu0 0
    %1266 = vmatprep.subr.bf16.mxu0 0
    %1267 = vmatpush1.bf16.msra.mxu0 0
    %1268 = vmatprep.subr.bf16.mxu0 0
    %1269 = vmatpush1.bf16.msra.mxu0 0
    %1270 = vmatprep.subr.bf16.mxu0 0
    %1271 = vmatpush1.bf16.msra.mxu0 0
    %1272 = vmatprep.subr.bf16.mxu0 0
    %1273 = vmatpush1.bf16.msra.mxu0 0
    %1274 = vmatprep.subr.bf16.mxu0 0
    %1275 = vmatpush1.bf16.msra.mxu0 0
    %1276 = vmatprep.subr.bf16.mxu0 0
    %1277 = vmatpush1.bf16.msra.mxu0 0
    %1278 = vmatprep.subr.bf16.mxu0 0
    %1279 = vmatpush1.bf16.msra.mxu0 0
    %1280 = vmatprep.subr.bf16.mxu0 0
    %1281 = vmatpush1.bf16.msra.mxu0 0
    %1282 = vmatprep.subr.bf16.mxu0 0
    %1283 = vmatpush1.bf16.msra.mxu0 0
    %1284 = vmatprep.subr.bf16.mxu0 0
    %1285 = vmatpush1.bf16.msra.mxu0 0
    %1286 = vmatprep.subr.bf16.mxu0 0
    %1287 = vmatpush1.bf16.msra.mxu0 0
    %1288 = vmatprep.mubr.bf16.mxu0 0
    %1289 = vmatmul.mubr.bf16.gmra.mrb[0].mxu0 %v1254
    %v1290 = vpop.f32.mrb[0].mxu0
    %v1291 = vadd.f32 %v1240, %v1290
    %v1292 = vpop.f32.mrb[0].mxu0
    %v1293 = vpop.f32.mrb[0].mxu0
    %v1294 = vadd.f32 %v1240, %v1293
    %v1295 = vpop.f32.mrb[0].mxu0
    %1296 = vdwg.mxu0
    %v1297 = vmul.f32 %v1291, 0.5
    %v1298 = vmul.f32 %v1294, 0.5
    %v1299 = vmul.f32 %v1291, 0.70710677
    %v1300 = vmul.f32 %v1294, 0.70710677
    %v1301 = verf.f32.pop %v1299
    %v1302 = verf.f32.pop %v1300
    %v1303 = vadd.f32 %v1301, 1.0
    %v1304 = vadd.f32 %v1302, 1.0
    %v1305 = vmul.f32 %v1297, %v1303
    %v1306 = vmul.f32 %v1298, %v1304
    %v1307 = vpack.c.bf16 %v1306, %v1305
    %v1308 = vld [vmem:[%s5] sm:$0xf]
    %v1309 = vld [vmem:[%s5 + $0x4] sm:$0xf]
    %v1310 = vld [vmem:[%s5 + $0x8] sm:$0xf]
    %v1311 = vld [vmem:[%s5 + $0xc] sm:$0xf]
    %v1312 = vld [vmem:[%s5 + $0x10] sm:$0xf]
    %v1313 = vld [vmem:[%s5 + $0x14] sm:$0xf]
    %v1314 = vld [vmem:[%s5 + $0x18] sm:$0xf]
    %v1315 = vld [vmem:[%s5 + $0x1c] sm:$0xf]
    %v1316 = vld [vmem:[%s5 + $0x20] sm:$0xf]
    %v1317 = vld [vmem:[%s5 + $0x24] sm:$0xf]
    %v1318 = vld [vmem:[%s5 + $0x28] sm:$0xf]
    %v1319 = vld [vmem:[%s5 + $0x2c] sm:$0xf]
    %v1320 = vld [vmem:[%s5 + $0x30] sm:$0xf]
    %v1321 = vld [vmem:[%s5 + $0x34] sm:$0xf]
    %v1322 = vld [vmem:[%s5 + $0x38] sm:$0xf]
    %v1323 = vld [vmem:[%s5 + $0x3c] sm:$0xf]
    %v1340 = vunpack.c.l.b16 %v1308
    %v1341 = vunpack.c.l.b16 %v1309
    %v1342 = vunpack.c.l.b16 %v1310
    %v1343 = vunpack.c.l.b16 %v1311
    %v1344 = vunpack.c.l.b16 %v1312
    %v1345 = vunpack.c.l.b16 %v1313
    %v1346 = vunpack.c.l.b16 %v1314
    %v1347 = vunpack.c.l.b16 %v1315
    %v1348 = vunpack.c.l.b16 %v1316
    %v1349 = vunpack.c.l.b16 %v1317
    %v1350 = vunpack.c.l.b16 %v1318
    %v1351 = vunpack.c.l.b16 %v1319
    %v1352 = vunpack.c.l.b16 %v1320
    %v1353 = vunpack.c.l.b16 %v1321
    %v1354 = vunpack.c.l.b16 %v1322
    %v1355 = vunpack.c.l.b16 %v1323
    %v1356 = vpack.c.b16 %v1341, %v1340
    %v1357 = vpack.c.b16 %v1343, %v1342
    %v1358 = vpack.c.b16 %v1345, %v1344
    %v1359 = vpack.c.b16 %v1347, %v1346
    %v1360 = vpack.c.b16 %v1349, %v1348
    %v1361 = vpack.c.b16 %v1351, %v1350
    %v1362 = vpack.c.b16 %v1353, %v1352
    %v1363 = vpack.c.b16 %v1355, %v1354
    %1372 = vmatprep.subr.bf16.mxu0 0
    %1373 = vmatpush1.bf16.msra.mxu0 %v1356
    %1374 = vmatprep.subr.bf16.mxu0 0
    %1375 = vmatpush1.bf16.msra.mxu0 %v1357
    %1376 = vmatprep.subr.bf16.mxu0 0
    %1377 = vmatpush1.bf16.msra.mxu0 %v1358
    %1378 = vmatprep.subr.bf16.mxu0 0
    %1379 = vmatpush1.bf16.msra.mxu0 %v1359
    %1380 = vmatprep.subr.bf16.mxu0 0
    %1381 = vmatpush1.bf16.msra.mxu0 %v1360
    %1382 = vmatprep.subr.bf16.mxu0 0
    %1383 = vmatpush1.bf16.msra.mxu0 %v1361
    %1384 = vmatprep.subr.bf16.mxu0 0
    %1385 = vmatpush1.bf16.msra.mxu0 %v1362
    %1386 = vmatprep.subr.bf16.mxu0 0
    %1387 = vmatpush1.bf16.msra.mxu0 %v1363
    %1388 = vmatprep.subr.bf16.mxu0 0
    %1389 = vmatpush1.bf16.msra.mxu0 0
    %1390 = vmatprep.subr.bf16.mxu0 0
    %1391 = vmatpush1.bf16.msra.mxu0 0
    %1392 = vmatprep.subr.bf16.mxu0 0
    %1393 = vmatpush1.bf16.msra.mxu0 0
    %1394 = vmatprep.subr.bf16.mxu0 0
    %1395 = vmatpush1.bf16.msra.mxu0 0
    %1396 = vmatprep.subr.bf16.mxu0 0
    %1397 = vmatpush1.bf16.msra.mxu0 0
    %1398 = vmatprep.subr.bf16.mxu0 0
    %1399 = vmatpush1.bf16.msra.mxu0 0
    %1400 = vmatprep.subr.bf16.mxu0 0
    %1401 = vmatpush1.bf16.msra.mxu0 0
    %1402 = vmatprep.subr.bf16.mxu0 0
    %1403 = vmatpush1.bf16.msra.mxu0 0
    %1404 = vmatprep.mubr.bf16.mxu0 0
    %1405 = vmatmul.mubr.bf16.gmra.mrb[0].mxu0 %v1307
    %v1406 = vpop.f32.mrb[0].mxu0
    %v1407 = vadd.f32 0.0, %v1406
    %v1408 = vpop.f32.mrb[0].mxu0
    %v1409 = vpop.f32.mrb[0].mxu0
    %v1410 = vadd.f32 0.0, %v1409
    %v1411 = vpop.f32.mrb[0].mxu0
    %1412 = vdwg.mxu0
    %v1413 = vadd.f32 %v1192, %v1407
    %v1414 = vadd.f32 %v1193, %v1410
    %v1415 = vlaneseq
    %v1416 = vshrl.u32 %v1415, 7
    %v1417 = vsub.s32 0, %v1416
    %v1418 = vrot.slane %v624, %v1417
    %v1419 = vadd.f32 %v1413, %v1418
    %v1420 = vadd.f32 %v1414, %v1418
    %s1421 = scalar_lea.vmem %s6, 16
    %v1422 = vld [vmem:[%s1421] sm:$0x1]
    %v1423 = vld [vmem:[%s1421 + $0x1] sm:$0x1]
    %v1424 = vld [vmem:[%s1421 + $0x2] sm:$0x1]
    %v1425 = vld [vmem:[%s1421 + $0x3] sm:$0x1]
    %v1426 = vld [vmem:[%s1421 + $0x4] sm:$0x1]
    %v1427 = vld [vmem:[%s1421 + $0x5] sm:$0x1]
    %v1428 = vld [vmem:[%s1421 + $0x6] sm:$0x1]
    %v1429 = vld [vmem:[%s1421 + $0x7] sm:$0x1]
    %v1430 = vld [vmem:[%s1421 + $0x8] sm:$0x1]
    %v1431 = vld [vmem:[%s1421 + $0x9] sm:$0x1]
    %v1432 = vsel %vm626, %v1419, 0.0
    %1433 = vadd.xlane.f32.xlu0 %v1432
    %v1434 = vpop.xlane.xlu0 %1433
    %v1435 = vsel %vm626, %v1420, 0.0
    %1436 = vadd.xlane.f32.xlu0 %v1435
    %v1437 = vpop.xlane.xlu0 %1436
    %v1438 = vmul.f32 %v1434, %v633
    %v1439 = vmul.f32 %v1437, %v633
    %v1440 = vsub.f32 %v1419, %v1438
    %v1441 = vsub.f32 %v1420, %v1439
    %v1442 = vmul.f32 %v1440, %v1440
    %v1443 = vmul.f32 %v1441, %v1441
    %v1444 = vsel %vm626, %v1442, 0.0
    %1445 = vadd.xlane.f32.xlu0 %v1444
    %v1446 = vpop.xlane.xlu0 %1445
    %v1447 = vsel %vm626, %v1443, 0.0
    %1448 = vadd.xlane.f32.xlu0 %v1447
    %v1449 = vpop.xlane.xlu0 %1448
    %v1450 = vmul.f32 %v1446, %v633
    %v1451 = vmul.f32 %v1449, %v633
    %v1452 = vadd.f32 %v1450, 1e-06
    %v1453 = vadd.f32 %v1451, 1e-06
    %v1454 = vrsqrt.pop %v1452
    %v1455 = vrsqrt.pop %v1453
    %v1456 = vmul.f32 %v1440, %v1454
    %v1457 = vmul.f32 %v1441, %v1455
    %v1458 = vlaneseq
    %v1459 = vshrl.u32 %v1458, 7
    %v1460 = vsub.s32 0, %v1459
    %v1461 = vrot.slane %v1422, %v1460
    %v1462 = vmul.f32 %v1456, %v1461
    %v1463 = vmul.f32 %v1457, %v1461
    %v1464 = vlaneseq
    %v1465 = vshrl.u32 %v1464, 7
    %v1466 = vsub.s32 0, %v1465
    %v1467 = vrot.slane %v1423, %v1466
    %v1468 = vadd.f32 %v1462, %v1467
    %v1469 = vadd.f32 %v1463, %v1467
    %v1470 = vpack.c.bf16 %v1469, %v1468
    %s1471 = scalar_lea.vmem %s3, 64
    %v1472 = vld [vmem:[%s1471] sm:$0xf]
    %v1473 = vld [vmem:[%s1471 + $0x4] sm:$0xf]
    %v1474 = vld [vmem:[%s1471 + $0x8] sm:$0xf]
    %v1475 = vld [vmem:[%s1471 + $0xc] sm:$0xf]
    %v1476 = vlaneseq
    %v1477 = vshrl.u32 %v1476, 7
    %v1478 = vsub.s32 0, %v1477
    %v1479 = vrot.slane %v1424, %v1478
    %v1484 = vunpack.c.l.b16 %v1472
    %v1485 = vunpack.c.l.b16 %v1473
    %v1486 = vunpack.c.l.b16 %v1474
    %v1487 = vunpack.c.l.b16 %v1475
    %v1488 = vpack.c.b16 %v1485, %v1484
    %v1489 = vpack.c.b16 %v1487, %v1486
    %v1493 = vsel %vm626, %v1470, 0
    %1495 = vmatprep.subr.bf16.mxu0 0
    %1496 = vmatpush1.bf16.msra.mxu0 %v1488
    %1497 = vmatprep.subr.bf16.mxu0 0
    %1498 = vmatpush1.bf16.msra.mxu0 %v1489
    %1499 = vmatprep.subr.bf16.mxu0 0
    %1500 = vmatpush1.bf16.msra.mxu0 0
    %1501 = vmatprep.subr.bf16.mxu0 0
    %1502 = vmatpush1.bf16.msra.mxu0 0
    %1503 = vmatprep.subr.bf16.mxu0 0
    %1504 = vmatpush1.bf16.msra.mxu0 0
    %1505 = vmatprep.subr.bf16.mxu0 0
    %1506 = vmatpush1.bf16.msra.mxu0 0
    %1507 = vmatprep.subr.bf16.mxu0 0
    %1508 = vmatpush1.bf16.msra.mxu0 0
    %1509 = vmatprep.subr.bf16.mxu0 0
    %1510 = vmatpush1.bf16.msra.mxu0 0
    %1511 = vmatprep.subr.bf16.mxu0 0
    %1512 = vmatpush1.bf16.msra.mxu0 0
    %1513 = vmatprep.subr.bf16.mxu0 0
    %1514 = vmatpush1.bf16.msra.mxu0 0
    %1515 = vmatprep.subr.bf16.mxu0 0
    %1516 = vmatpush1.bf16.msra.mxu0 0
    %1517 = vmatprep.subr.bf16.mxu0 0
    %1518 = vmatpush1.bf16.msra.mxu0 0
    %1519 = vmatprep.subr.bf16.mxu0 0
    %1520 = vmatpush1.bf16.msra.mxu0 0
    %1521 = vmatprep.subr.bf16.mxu0 0
    %1522 = vmatpush1.bf16.msra.mxu0 0
    %1523 = vmatprep.subr.bf16.mxu0 0
    %1524 = vmatpush1.bf16.msra.mxu0 0
    %1525 = vmatprep.subr.bf16.mxu0 0
    %1526 = vmatpush1.bf16.msra.mxu0 0
    %1527 = vmatprep.mubr.bf16.mxu0 0
    %1528 = vmatmul.mubr.bf16.gmra.mrb[0].mxu0 %v1493
    %v1529 = vpop.f32.mrb[0].mxu0
    %v1530 = vadd.f32 %v1479, %v1529
    %v1531 = vpop.f32.mrb[0].mxu0
    %v1532 = vpop.f32.mrb[0].mxu0
    %v1533 = vadd.f32 %v1479, %v1532
    %v1534 = vpop.f32.mrb[0].mxu0
    %1535 = vdwg.mxu0
    %s1536 = scalar_lea.vmem %s3, 80
    %v1537 = vld [vmem:[%s1536] sm:$0xf]
    %v1538 = vld [vmem:[%s1536 + $0x4] sm:$0xf]
    %v1539 = vld [vmem:[%s1536 + $0x8] sm:$0xf]
    %v1540 = vld [vmem:[%s1536 + $0xc] sm:$0xf]
    %v1541 = vlaneseq
    %v1542 = vshrl.u32 %v1541, 7
    %v1543 = vsub.s32 0, %v1542
    %v1544 = vrot.slane %v1425, %v1543
    %v1549 = vunpack.c.l.b16 %v1537
    %v1550 = vunpack.c.l.b16 %v1538
    %v1551 = vunpack.c.l.b16 %v1539
    %v1552 = vunpack.c.l.b16 %v1540
    %v1553 = vpack.c.b16 %v1550, %v1549
    %v1554 = vpack.c.b16 %v1552, %v1551
    %1557 = vmatprep.subr.bf16.mxu0 0
    %1558 = vmatpush1.bf16.msra.mxu0 %v1553
    %1559 = vmatprep.subr.bf16.mxu0 0
    %1560 = vmatpush1.bf16.msra.mxu0 %v1554
    %1561 = vmatprep.subr.bf16.mxu0 0
    %1562 = vmatpush1.bf16.msra.mxu0 0
    %1563 = vmatprep.subr.bf16.mxu0 0
    %1564 = vmatpush1.bf16.msra.mxu0 0
    %1565 = vmatprep.subr.bf16.mxu0 0
    %1566 = vmatpush1.bf16.msra.mxu0 0
    %1567 = vmatprep.subr.bf16.mxu0 0
    %1568 = vmatpush1.bf16.msra.mxu0 0
    %1569 = vmatprep.subr.bf16.mxu0 0
    %1570 = vmatpush1.bf16.msra.mxu0 0
    %1571 = vmatprep.subr.bf16.mxu0 0
    %1572 = vmatpush1.bf16.msra.mxu0 0
    %1573 = vmatprep.subr.bf16.mxu0 0
    %1574 = vmatpush1.bf16.msra.mxu0 0
    %1575 = vmatprep.subr.bf16.mxu0 0
    %1576 = vmatpush1.bf16.msra.mxu0 0
    %1577 = vmatprep.subr.bf16.mxu0 0
    %1578 = vmatpush1.bf16.msra.mxu0 0
    %1579 = vmatprep.subr.bf16.mxu0 0
    %1580 = vmatpush1.bf16.msra.mxu0 0
    %1581 = vmatprep.subr.bf16.mxu0 0
    %1582 = vmatpush1.bf16.msra.mxu0 0
    %1583 = vmatprep.subr.bf16.mxu0 0
    %1584 = vmatpush1.bf16.msra.mxu0 0
    %1585 = vmatprep.subr.bf16.mxu0 0
    %1586 = vmatpush1.bf16.msra.mxu0 0
    %1587 = vmatprep.subr.bf16.mxu0 0
    %1588 = vmatpush1.bf16.msra.mxu0 0
    %1589 = vmatprep.mubr.bf16.mxu0 0
    %1590 = vmatmul.mubr.bf16.gmra.mrb[0].mxu0 %v1493
    %v1591 = vpop.f32.mrb[0].mxu0
    %v1592 = vadd.f32 %v1544, %v1591
    %v1593 = vpop.f32.mrb[0].mxu0
    %v1594 = vpop.f32.mrb[0].mxu0
    %v1595 = vadd.f32 %v1544, %v1594
    %v1596 = vpop.f32.mrb[0].mxu0
    %1597 = vdwg.mxu0
    %s1598 = scalar_lea.vmem %s3, 96
    %v1599 = vld [vmem:[%s1598] sm:$0xf]
    %v1600 = vld [vmem:[%s1598 + $0x4] sm:$0xf]
    %v1601 = vld [vmem:[%s1598 + $0x8] sm:$0xf]
    %v1602 = vld [vmem:[%s1598 + $0xc] sm:$0xf]
    %v1603 = vlaneseq
    %v1604 = vshrl.u32 %v1603, 7
    %v1605 = vsub.s32 0, %v1604
    %v1606 = vrot.slane %v1426, %v1605
    %v1611 = vunpack.c.l.b16 %v1599
    %v1612 = vunpack.c.l.b16 %v1600
    %v1613 = vunpack.c.l.b16 %v1601
    %v1614 = vunpack.c.l.b16 %v1602
    %v1615 = vpack.c.b16 %v1612, %v1611
    %v1616 = vpack.c.b16 %v1614, %v1613
    %1619 = vmatprep.subr.bf16.mxu0 0
    %1620 = vmatpush1.bf16.msra.mxu0 %v1615
    %1621 = vmatprep.subr.bf16.mxu0 0
    %1622 = vmatpush1.bf16.msra.mxu0 %v1616
    %1623 = vmatprep.subr.bf16.mxu0 0
    %1624 = vmatpush1.bf16.msra.mxu0 0
    %1625 = vmatprep.subr.bf16.mxu0 0
    %1626 = vmatpush1.bf16.msra.mxu0 0
    %1627 = vmatprep.subr.bf16.mxu0 0
    %1628 = vmatpush1.bf16.msra.mxu0 0
    %1629 = vmatprep.subr.bf16.mxu0 0
    %1630 = vmatpush1.bf16.msra.mxu0 0
    %1631 = vmatprep.subr.bf16.mxu0 0
    %1632 = vmatpush1.bf16.msra.mxu0 0
    %1633 = vmatprep.subr.bf16.mxu0 0
    %1634 = vmatpush1.bf16.msra.mxu0 0
    %1635 = vmatprep.subr.bf16.mxu0 0
    %1636 = vmatpush1.bf16.msra.mxu0 0
    %1637 = vmatprep.subr.bf16.mxu0 0
    %1638 = vmatpush1.bf16.msra.mxu0 0
    %1639 = vmatprep.subr.bf16.mxu0 0
    %1640 = vmatpush1.bf16.msra.mxu0 0
    %1641 = vmatprep.subr.bf16.mxu0 0
    %1642 = vmatpush1.bf16.msra.mxu0 0
    %1643 = vmatprep.subr.bf16.mxu0 0
    %1644 = vmatpush1.bf16.msra.mxu0 0
    %1645 = vmatprep.subr.bf16.mxu0 0
    %1646 = vmatpush1.bf16.msra.mxu0 0
    %1647 = vmatprep.subr.bf16.mxu0 0
    %1648 = vmatpush1.bf16.msra.mxu0 0
    %1649 = vmatprep.subr.bf16.mxu0 0
    %1650 = vmatpush1.bf16.msra.mxu0 0
    %1651 = vmatprep.mubr.bf16.mxu0 0
    %1652 = vmatmul.mubr.bf16.gmra.mrb[0].mxu0 %v1493
    %v1653 = vpop.f32.mrb[0].mxu0
    %v1654 = vadd.f32 %v1606, %v1653
    %v1655 = vpop.f32.mrb[0].mxu0
    %v1656 = vpop.f32.mrb[0].mxu0
    %v1657 = vadd.f32 %v1606, %v1656
    %v1658 = vpop.f32.mrb[0].mxu0
    %1659 = vdwg.mxu0
    %1660 = vxpose.xlu0.b32.start [1/16] %v1592, 128
    %1661 = vxpose.xlu0.b32.cont [2/16] %v1595, 128
    %1662 = vxpose.xlu0.b32.cont [3/16] 0.0, 128
    %1663 = vxpose.xlu0.b32.cont [4/16] 0.0, 128
    %1664 = vxpose.xlu0.b32.cont [5/16] 0.0, 128
    %1665 = vxpose.xlu0.b32.cont [6/16] 0.0, 128
    %1666 = vxpose.xlu0.b32.cont [7/16] 0.0, 128
    %1667 = vxpose.xlu0.b32.cont [8/16] 0.0, 128
    %1668 = vxpose.xlu0.b32.cont [9/16] 0.0, 128
    %1669 = vxpose.xlu0.b32.cont [10/16] 0.0, 128
    %1670 = vxpose.xlu0.b32.cont [11/16] 0.0, 128
    %1671 = vxpose.xlu0.b32.cont [12/16] 0.0, 128
    %1672 = vxpose.xlu0.b32.cont [13/16] 0.0, 128
    %1673 = vxpose.xlu0.b32.cont [14/16] 0.0, 128
    %1674 = vxpose.xlu0.b32.cont [15/16] 0.0, 128
    %1675 = vxpose.xlu0.b32.end [16/16] 0.0, 128
    %v1676 = vpop.trf.xlu0
    %v1677 = vpop.trf.xlu0
    %v1678 = vpop.trf.xlu0
    %v1679 = vpop.trf.xlu0
    %v1680 = vpop.trf.xlu0
    %v1681 = vpop.trf.xlu0
    %v1682 = vpop.trf.xlu0
    %v1683 = vpop.trf.xlu0
    %v1684 = vpop.trf.xlu0
    %v1685 = vpop.trf.xlu0
    %v1686 = vpop.trf.xlu0
    %v1687 = vpop.trf.xlu0
    %v1688 = vpop.trf.xlu0
    %v1689 = vpop.trf.xlu0
    %v1690 = vpop.trf.xlu0
    %v1691 = vpop.trf.xlu0
    %v1692 = vpack.c.bf16 %v1677, %v1676
    %v1693 = vpack.c.bf16 %v1679, %v1678
    %v1694 = vmul.f32 %v1530, %v581
    %v1695 = vmul.f32 %v1533, %v581
    %v1696 = vpack.c.bf16 %v1695, %v1694
    %v1698 = vsel %vm626, %v1696, 0
    %1700 = vmatprep.subr.bf16.mxu0 0
    %1701 = vmatpush1.bf16.msra.mxu0 %v1692
    %1702 = vmatprep.subr.bf16.mxu0 0
    %1703 = vmatpush1.bf16.msra.mxu0 %v1693
    %1704 = vmatprep.subr.bf16.mxu0 0
    %1705 = vmatpush1.bf16.msra.mxu0 0
    %1706 = vmatprep.subr.bf16.mxu0 0
    %1707 = vmatpush1.bf16.msra.mxu0 0
    %1708 = vmatprep.subr.bf16.mxu0 0
    %1709 = vmatpush1.bf16.msra.mxu0 0
    %1710 = vmatprep.subr.bf16.mxu0 0
    %1711 = vmatpush1.bf16.msra.mxu0 0
    %1712 = vmatprep.subr.bf16.mxu0 0
    %1713 = vmatpush1.bf16.msra.mxu0 0
    %1714 = vmatprep.subr.bf16.mxu0 0
    %1715 = vmatpush1.bf16.msra.mxu0 0
    %1716 = vmatprep.subr.bf16.mxu0 0
    %1717 = vmatpush1.bf16.msra.mxu0 0
    %1718 = vmatprep.subr.bf16.mxu0 0
    %1719 = vmatpush1.bf16.msra.mxu0 0
    %1720 = vmatprep.subr.bf16.mxu0 0
    %1721 = vmatpush1.bf16.msra.mxu0 0
    %1722 = vmatprep.subr.bf16.mxu0 0
    %1723 = vmatpush1.bf16.msra.mxu0 0
    %1724 = vmatprep.subr.bf16.mxu0 0
    %1725 = vmatpush1.bf16.msra.mxu0 0
    %1726 = vmatprep.subr.bf16.mxu0 0
    %1727 = vmatpush1.bf16.msra.mxu0 0
    %1728 = vmatprep.subr.bf16.mxu0 0
    %1729 = vmatpush1.bf16.msra.mxu0 0
    %1730 = vmatprep.subr.bf16.mxu0 0
    %1731 = vmatpush1.bf16.msra.mxu0 0
    %1732 = vmatprep.mubr.bf16.mxu0 0
    %1733 = vmatmul.mubr.bf16.gmra.mrb[0].mxu0 %v1698
    %v1734 = vpop.f32.mrb[0].mxu0
    %v1735 = vadd.f32 %v614, %v1734
    %v1736 = vpop.f32.mrb[0].mxu0
    %v1737 = vpop.f32.mrb[0].mxu0
    %v1738 = vadd.f32 %v615, %v1737
    %v1739 = vpop.f32.mrb[0].mxu0
    %1740 = vdwg.mxu0
    %v1741 = vsel %vm936, %v1735, -inf
    %1742 = vmax.xlane.f32.xlu0 %v1741
    %v1743 = vpop.xlane.xlu0 %1742
    %v1744 = vsel %vm936, %v1738, -inf
    %1745 = vmax.xlane.f32.xlu0 %v1744
    %v1746 = vpop.xlane.xlu0 %1745
    %v1747 = vsub.f32 %v1735, %v1743
    %v1748 = vsub.f32 %v1738, %v1746
    %v1749 = vmul.f32 %v1747, 1.442695
    %v1750 = vpow.pop %v1749
    %v1751 = vmul.f32 %v1748, 1.442695
    %v1752 = vpow.pop %v1751
    %v1753 = vsel %vm936, %v1750, 0.0
    %1754 = vadd.xlane.f32.xlu0 %v1753
    %v1755 = vpop.xlane.xlu0 %1754
    %v1756 = vsel %vm936, %v1752, 0.0
    %1757 = vadd.xlane.f32.xlu0 %v1756
    %v1758 = vpop.xlane.xlu0 %1757
    %v1759 = vrcp.pop %v1755
    %v1760 = vrcp.pop %v1758
    %v1761 = vmul.f32 %v1750, %v1759
    %v1762 = vmul.f32 %v1752, %v1760
    %v1763 = vmul.f32 %v1654, %v582
    %v1764 = vmul.f32 %v1657, %v582
    %v1765 = vpack.c.bf16 %v1764, %v1763
    %v1766 = vpack.c.bf16 %v1762, %v1761
    %v1767 = vmul.f32 %v1530, %v586
    %v1768 = vmul.f32 %v1533, %v586
    %v1769 = vpack.c.bf16 %v1768, %v1767
    %v1771 = vsel %vm626, %v1769, 0
    %1773 = vmatprep.subr.bf16.mxu0 0
    %1774 = vmatpush1.bf16.msra.mxu0 %v1692
    %1775 = vmatprep.subr.bf16.mxu0 0
    %1776 = vmatpush1.bf16.msra.mxu0 %v1693
    %1777 = vmatprep.subr.bf16.mxu0 0
    %1778 = vmatpush1.bf16.msra.mxu0 0
    %1779 = vmatprep.subr.bf16.mxu0 0
    %1780 = vmatpush1.bf16.msra.mxu0 0
    %1781 = vmatprep.subr.bf16.mxu0 0
    %1782 = vmatpush1.bf16.msra.mxu0 0
    %1783 = vmatprep.subr.bf16.mxu0 0
    %1784 = vmatpush1.bf16.msra.mxu0 0
    %1785 = vmatprep.subr.bf16.mxu0 0
    %1786 = vmatpush1.bf16.msra.mxu0 0
    %1787 = vmatprep.subr.bf16.mxu0 0
    %1788 = vmatpush1.bf16.msra.mxu0 0
    %1789 = vmatprep.subr.bf16.mxu0 0
    %1790 = vmatpush1.bf16.msra.mxu0 0
    %1791 = vmatprep.subr.bf16.mxu0 0
    %1792 = vmatpush1.bf16.msra.mxu0 0
    %1793 = vmatprep.subr.bf16.mxu0 0
    %1794 = vmatpush1.bf16.msra.mxu0 0
    %1795 = vmatprep.subr.bf16.mxu0 0
    %1796 = vmatpush1.bf16.msra.mxu0 0
    %1797 = vmatprep.subr.bf16.mxu0 0
    %1798 = vmatpush1.bf16.msra.mxu0 0
    %1799 = vmatprep.subr.bf16.mxu0 0
    %1800 = vmatpush1.bf16.msra.mxu0 0
    %1801 = vmatprep.subr.bf16.mxu0 0
    %1802 = vmatpush1.bf16.msra.mxu0 0
    %1803 = vmatprep.subr.bf16.mxu0 0
    %1804 = vmatpush1.bf16.msra.mxu0 0
    %1805 = vmatprep.mubr.bf16.mxu0 0
    %1806 = vmatmul.mubr.bf16.gmra.mrb[0].mxu0 %v1771
    %v1807 = vpop.f32.mrb[0].mxu0
    %v1808 = vadd.f32 %v614, %v1807
    %v1809 = vpop.f32.mrb[0].mxu0
    %v1810 = vpop.f32.mrb[0].mxu0
    %v1811 = vadd.f32 %v615, %v1810
    %v1812 = vpop.f32.mrb[0].mxu0
    %1813 = vdwg.mxu0
    %v1814 = vsel %vm936, %v1808, -inf
    %1815 = vmax.xlane.f32.xlu0 %v1814
    %v1816 = vpop.xlane.xlu0 %1815
    %v1817 = vsel %vm936, %v1811, -inf
    %1818 = vmax.xlane.f32.xlu0 %v1817
    %v1819 = vpop.xlane.xlu0 %1818
    %v1820 = vsub.f32 %v1808, %v1816
    %v1821 = vsub.f32 %v1811, %v1819
    %v1822 = vmul.f32 %v1820, 1.442695
    %v1823 = vpow.pop %v1822
    %v1824 = vmul.f32 %v1821, 1.442695
    %v1825 = vpow.pop %v1824
    %v1826 = vsel %vm936, %v1823, 0.0
    %1827 = vadd.xlane.f32.xlu0 %v1826
    %v1828 = vpop.xlane.xlu0 %1827
    %v1829 = vsel %vm936, %v1825, 0.0
    %1830 = vadd.xlane.f32.xlu0 %v1829
    %v1831 = vpop.xlane.xlu0 %1830
    %v1832 = vrcp.pop %v1828
    %v1833 = vrcp.pop %v1831
    %v1834 = vmul.f32 %v1823, %v1832
    %v1835 = vmul.f32 %v1825, %v1833
    %v1836 = vmul.f32 %v1654, %v587
    %v1837 = vmul.f32 %v1657, %v587
    %v1838 = vpack.c.bf16 %v1837, %v1836
    %v1839 = vpack.c.bf16 %v1835, %v1834
    %v1841 = vsel %vm936, %v1839, 0
    %1843 = vmatprep.subr.bf16.mxu0 0
    %1844 = vmatpush1.bf16.msra.mxu0 %v1838
    %1845 = vmatprep.subr.bf16.mxu0 0
    %1846 = vmatpush1.bf16.msra.mxu0 0
    %1847 = vmatprep.subr.bf16.mxu0 0
    %1848 = vmatpush1.bf16.msra.mxu0 0
    %1849 = vmatprep.subr.bf16.mxu0 0
    %1850 = vmatpush1.bf16.msra.mxu0 0
    %1851 = vmatprep.subr.bf16.mxu0 0
    %1852 = vmatpush1.bf16.msra.mxu0 0
    %1853 = vmatprep.subr.bf16.mxu0 0
    %1854 = vmatpush1.bf16.msra.mxu0 0
    %1855 = vmatprep.subr.bf16.mxu0 0
    %1856 = vmatpush1.bf16.msra.mxu0 0
    %1857 = vmatprep.subr.bf16.mxu0 0
    %1858 = vmatpush1.bf16.msra.mxu0 0
    %1859 = vmatprep.subr.bf16.mxu0 0
    %1860 = vmatpush1.bf16.msra.mxu0 0
    %1861 = vmatprep.subr.bf16.mxu0 0
    %1862 = vmatpush1.bf16.msra.mxu0 0
    %1863 = vmatprep.subr.bf16.mxu0 0
    %1864 = vmatpush1.bf16.msra.mxu0 0
    %1865 = vmatprep.subr.bf16.mxu0 0
    %1866 = vmatpush1.bf16.msra.mxu0 0
    %1867 = vmatprep.subr.bf16.mxu0 0
    %1868 = vmatpush1.bf16.msra.mxu0 0
    %1869 = vmatprep.subr.bf16.mxu0 0
    %1870 = vmatpush1.bf16.msra.mxu0 0
    %1871 = vmatprep.subr.bf16.mxu0 0
    %1872 = vmatpush1.bf16.msra.mxu0 0
    %1873 = vmatprep.subr.bf16.mxu0 0
    %1874 = vmatpush1.bf16.msra.mxu0 0
    %1875 = vmatprep.mubr.bf16.mxu0 0
    %1876 = vmatmul.mubr.bf16.gmra.mrb[0].mxu0 %v1841
    %v1877 = vpop.f32.mrb[0].mxu0
    %v1878 = vadd.f32 0.0, %v1877
    %v1879 = vpop.f32.mrb[0].mxu0
    %v1880 = vpop.f32.mrb[0].mxu0
    %v1881 = vadd.f32 0.0, %v1880
    %v1882 = vpop.f32.mrb[0].mxu0
    %1883 = vdwg.mxu0
    %v1885 = vsel %vm936, %v1766, 0
    %1887 = vmatprep.subr.bf16.mxu0 0
    %1888 = vmatpush1.bf16.msra.mxu0 %v1765
    %1889 = vmatprep.subr.bf16.mxu0 0
    %1890 = vmatpush1.bf16.msra.mxu0 0
    %1891 = vmatprep.subr.bf16.mxu0 0
    %1892 = vmatpush1.bf16.msra.mxu0 0
    %1893 = vmatprep.subr.bf16.mxu0 0
    %1894 = vmatpush1.bf16.msra.mxu0 0
    %1895 = vmatprep.subr.bf16.mxu0 0
    %1896 = vmatpush1.bf16.msra.mxu0 0
    %1897 = vmatprep.subr.bf16.mxu0 0
    %1898 = vmatpush1.bf16.msra.mxu0 0
    %1899 = vmatprep.subr.bf16.mxu0 0
    %1900 = vmatpush1.bf16.msra.mxu0 0
    %1901 = vmatprep.subr.bf16.mxu0 0
    %1902 = vmatpush1.bf16.msra.mxu0 0
    %1903 = vmatprep.subr.bf16.mxu0 0
    %1904 = vmatpush1.bf16.msra.mxu0 0
    %1905 = vmatprep.subr.bf16.mxu0 0
    %1906 = vmatpush1.bf16.msra.mxu0 0
    %1907 = vmatprep.subr.bf16.mxu0 0
    %1908 = vmatpush1.bf16.msra.mxu0 0
    %1909 = vmatprep.subr.bf16.mxu0 0
    %1910 = vmatpush1.bf16.msra.mxu0 0
    %1911 = vmatprep.subr.bf16.mxu0 0
    %1912 = vmatpush1.bf16.msra.mxu0 0
    %1913 = vmatprep.subr.bf16.mxu0 0
    %1914 = vmatpush1.bf16.msra.mxu0 0
    %1915 = vmatprep.subr.bf16.mxu0 0
    %1916 = vmatpush1.bf16.msra.mxu0 0
    %1917 = vmatprep.subr.bf16.mxu0 0
    %1918 = vmatpush1.bf16.msra.mxu0 0
    %1919 = vmatprep.mubr.bf16.mxu0 0
    %1920 = vmatmul.mubr.bf16.gmra.mrb[0].mxu0 %v1885
    %v1921 = vpop.f32.mrb[0].mxu0
    %v1922 = vadd.f32 %v1878, %v1921
    %v1923 = vpop.f32.mrb[0].mxu0
    %v1924 = vpop.f32.mrb[0].mxu0
    %v1925 = vadd.f32 %v1881, %v1924
    %v1926 = vpop.f32.mrb[0].mxu0
    %1927 = vdwg.mxu0
    %v1928 = vpack.c.bf16 %v1925, %v1922
    %s1929 = scalar_lea.vmem %s3, 112
    %v1930 = vld [vmem:[%s1929] sm:$0xf]
    %v1931 = vld [vmem:[%s1929 + $0x4] sm:$0xf]
    %v1932 = vld [vmem:[%s1929 + $0x8] sm:$0xf]
    %v1933 = vld [vmem:[%s1929 + $0xc] sm:$0xf]
    %v1938 = vunpack.c.l.b16 %v1930
    %v1939 = vunpack.c.l.b16 %v1931
    %v1940 = vunpack.c.l.b16 %v1932
    %v1941 = vunpack.c.l.b16 %v1933
    %v1942 = vpack.c.b16 %v1939, %v1938
    %v1943 = vpack.c.b16 %v1941, %v1940
    %v1947 = vsel %vm626, %v1928, 0
    %1949 = vmatprep.subr.bf16.mxu0 0
    %1950 = vmatpush1.bf16.msra.mxu0 %v1942
    %1951 = vmatprep.subr.bf16.mxu0 0
    %1952 = vmatpush1.bf16.msra.mxu0 %v1943
    %1953 = vmatprep.subr.bf16.mxu0 0
    %1954 = vmatpush1.bf16.msra.mxu0 0
    %1955 = vmatprep.subr.bf16.mxu0 0
    %1956 = vmatpush1.bf16.msra.mxu0 0
    %1957 = vmatprep.subr.bf16.mxu0 0
    %1958 = vmatpush1.bf16.msra.mxu0 0
    %1959 = vmatprep.subr.bf16.mxu0 0
    %1960 = vmatpush1.bf16.msra.mxu0 0
    %1961 = vmatprep.subr.bf16.mxu0 0
    %1962 = vmatpush1.bf16.msra.mxu0 0
    %1963 = vmatprep.subr.bf16.mxu0 0
    %1964 = vmatpush1.bf16.msra.mxu0 0
    %1965 = vmatprep.subr.bf16.mxu0 0
    %1966 = vmatpush1.bf16.msra.mxu0 0
    %1967 = vmatprep.subr.bf16.mxu0 0
    %1968 = vmatpush1.bf16.msra.mxu0 0
    %1969 = vmatprep.subr.bf16.mxu0 0
    %1970 = vmatpush1.bf16.msra.mxu0 0
    %1971 = vmatprep.subr.bf16.mxu0 0
    %1972 = vmatpush1.bf16.msra.mxu0 0
    %1973 = vmatprep.subr.bf16.mxu0 0
    %1974 = vmatpush1.bf16.msra.mxu0 0
    %1975 = vmatprep.subr.bf16.mxu0 0
    %1976 = vmatpush1.bf16.msra.mxu0 0
    %1977 = vmatprep.subr.bf16.mxu0 0
    %1978 = vmatpush1.bf16.msra.mxu0 0
    %1979 = vmatprep.subr.bf16.mxu0 0
    %1980 = vmatpush1.bf16.msra.mxu0 0
    %1981 = vmatprep.mubr.bf16.mxu0 0
    %1982 = vmatmul.mubr.bf16.gmra.mrb[0].mxu0 %v1947
    %v1983 = vpop.f32.mrb[0].mxu0
    %v1984 = vadd.f32 0.0, %v1983
    %v1985 = vpop.f32.mrb[0].mxu0
    %v1986 = vpop.f32.mrb[0].mxu0
    %v1987 = vadd.f32 0.0, %v1986
    %v1988 = vpop.f32.mrb[0].mxu0
    %1989 = vdwg.mxu0
    %v1990 = vadd.f32 %v1419, %v1984
    %v1991 = vadd.f32 %v1420, %v1987
    %v1992 = vlaneseq
    %v1993 = vshrl.u32 %v1992, 7
    %v1994 = vsub.s32 0, %v1993
    %v1995 = vrot.slane %v1427, %v1994
    %v1996 = vadd.f32 %v1990, %v1995
    %v1997 = vadd.f32 %v1991, %v1995
    %v1998 = vsel %vm626, %v1996, 0.0
    %1999 = vadd.xlane.f32.xlu0 %v1998
    %v2000 = vpop.xlane.xlu0 %1999
    %v2001 = vsel %vm626, %v1997, 0.0
    %2002 = vadd.xlane.f32.xlu0 %v2001
    %v2003 = vpop.xlane.xlu0 %2002
    %v2004 = vmul.f32 %v2000, %v633
    %v2005 = vmul.f32 %v2003, %v633
    %v2006 = vsub.f32 %v1996, %v2004
    %v2007 = vsub.f32 %v1997, %v2005
    %v2008 = vmul.f32 %v2006, %v2006
    %v2009 = vmul.f32 %v2007, %v2007
    %v2010 = vsel %vm626, %v2008, 0.0
    %2011 = vadd.xlane.f32.xlu0 %v2010
    %v2012 = vpop.xlane.xlu0 %2011
    %v2013 = vsel %vm626, %v2009, 0.0
    %2014 = vadd.xlane.f32.xlu0 %v2013
    %v2015 = vpop.xlane.xlu0 %2014
    %v2016 = vmul.f32 %v2012, %v633
    %v2017 = vmul.f32 %v2015, %v633
    %v2018 = vadd.f32 %v2016, 1e-06
    %v2019 = vadd.f32 %v2017, 1e-06
    %v2020 = vrsqrt.pop %v2018
    %v2021 = vrsqrt.pop %v2019
    %v2022 = vmul.f32 %v2006, %v2020
    %v2023 = vmul.f32 %v2007, %v2021
    %v2024 = vlaneseq
    %v2025 = vshrl.u32 %v2024, 7
    %v2026 = vsub.s32 0, %v2025
    %v2027 = vrot.slane %v1428, %v2026
    %v2028 = vmul.f32 %v2022, %v2027
    %v2029 = vmul.f32 %v2023, %v2027
    %v2030 = vlaneseq
    %v2031 = vshrl.u32 %v2030, 7
    %v2032 = vsub.s32 0, %v2031
    %v2033 = vrot.slane %v1429, %v2032
    %v2034 = vadd.f32 %v2028, %v2033
    %v2035 = vadd.f32 %v2029, %v2033
    %v2036 = vpack.c.bf16 %v2035, %v2034
    %s2037 = scalar_lea.vmem %s4, 16
    %v2038 = vld [vmem:[%s2037] sm:$0xf]
    %v2039 = vld [vmem:[%s2037 + $0x4] sm:$0xf]
    %v2040 = vld [vmem:[%s2037 + $0x8] sm:$0xf]
    %v2041 = vld [vmem:[%s2037 + $0xc] sm:$0xf]
    %v2042 = vlaneseq
    %v2043 = vshrl.u32 %v2042, 7
    %v2044 = vsub.s32 0, %v2043
    %v2045 = vrot.slane %v1431, %v2044
    %v2050 = vunpack.c.l.b16 %v2038
    %v2051 = vunpack.c.l.b16 %v2039
    %v2052 = vunpack.c.l.b16 %v2040
    %v2053 = vunpack.c.l.b16 %v2041
    %v2054 = vpack.c.b16 %v2051, %v2050
    %v2055 = vpack.c.b16 %v2053, %v2052
    %v2059 = vsel %vm626, %v2036, 0
    %2061 = vmatprep.subr.bf16.mxu0 0
    %2062 = vmatpush1.bf16.msra.mxu0 %v2054
    %2063 = vmatprep.subr.bf16.mxu0 0
    %2064 = vmatpush1.bf16.msra.mxu0 %v2055
    %2065 = vmatprep.subr.bf16.mxu0 0
    %2066 = vmatpush1.bf16.msra.mxu0 0
    %2067 = vmatprep.subr.bf16.mxu0 0
    %2068 = vmatpush1.bf16.msra.mxu0 0
    %2069 = vmatprep.subr.bf16.mxu0 0
    %2070 = vmatpush1.bf16.msra.mxu0 0
    %2071 = vmatprep.subr.bf16.mxu0 0
    %2072 = vmatpush1.bf16.msra.mxu0 0
    %2073 = vmatprep.subr.bf16.mxu0 0
    %2074 = vmatpush1.bf16.msra.mxu0 0
    %2075 = vmatprep.subr.bf16.mxu0 0
    %2076 = vmatpush1.bf16.msra.mxu0 0
    %2077 = vmatprep.subr.bf16.mxu0 0
    %2078 = vmatpush1.bf16.msra.mxu0 0
    %2079 = vmatprep.subr.bf16.mxu0 0
    %2080 = vmatpush1.bf16.msra.mxu0 0
    %2081 = vmatprep.subr.bf16.mxu0 0
    %2082 = vmatpush1.bf16.msra.mxu0 0
    %2083 = vmatprep.subr.bf16.mxu0 0
    %2084 = vmatpush1.bf16.msra.mxu0 0
    %2085 = vmatprep.subr.bf16.mxu0 0
    %2086 = vmatpush1.bf16.msra.mxu0 0
    %2087 = vmatprep.subr.bf16.mxu0 0
    %2088 = vmatpush1.bf16.msra.mxu0 0
    %2089 = vmatprep.subr.bf16.mxu0 0
    %2090 = vmatpush1.bf16.msra.mxu0 0
    %2091 = vmatprep.subr.bf16.mxu0 0
    %2092 = vmatpush1.bf16.msra.mxu0 0
    %2093 = vmatprep.mubr.bf16.mxu0 0
    %2094 = vmatmul.mubr.bf16.gmra.mrb[0].mxu0 %v2059
    %v2095 = vpop.f32.mrb[0].mxu0
    %v2096 = vadd.f32 %v2045, %v2095
    %v2097 = vpop.f32.mrb[0].mxu0
    %v2098 = vpop.f32.mrb[0].mxu0
    %v2099 = vadd.f32 %v2045, %v2098
    %v2100 = vpop.f32.mrb[0].mxu0
    %2101 = vdwg.mxu0
    %v2102 = vmul.f32 %v2096, 0.5
    %v2103 = vmul.f32 %v2099, 0.5
    %v2104 = vmul.f32 %v2096, 0.70710677
    %v2105 = vmul.f32 %v2099, 0.70710677
    %v2106 = verf.f32.pop %v2104
    %v2107 = verf.f32.pop %v2105
    %v2108 = vadd.f32 %v2106, 1.0
    %v2109 = vadd.f32 %v2107, 1.0
    %v2110 = vmul.f32 %v2102, %v2108
    %v2111 = vmul.f32 %v2103, %v2109
    %v2112 = vpack.c.bf16 %v2111, %v2110
    %s2113 = scalar_lea.vmem %s5, 64
    %v2114 = vld [vmem:[%s2113] sm:$0xf]
    %v2115 = vld [vmem:[%s2113 + $0x4] sm:$0xf]
    %v2116 = vld [vmem:[%s2113 + $0x8] sm:$0xf]
    %v2117 = vld [vmem:[%s2113 + $0xc] sm:$0xf]
    %v2118 = vld [vmem:[%s2113 + $0x10] sm:$0xf]
    %v2119 = vld [vmem:[%s2113 + $0x14] sm:$0xf]
    %v2120 = vld [vmem:[%s2113 + $0x18] sm:$0xf]
    %v2121 = vld [vmem:[%s2113 + $0x1c] sm:$0xf]
    %v2122 = vld [vmem:[%s2113 + $0x20] sm:$0xf]
    %v2123 = vld [vmem:[%s2113 + $0x24] sm:$0xf]
    %v2124 = vld [vmem:[%s2113 + $0x28] sm:$0xf]
    %v2125 = vld [vmem:[%s2113 + $0x2c] sm:$0xf]
    %v2126 = vld [vmem:[%s2113 + $0x30] sm:$0xf]
    %v2127 = vld [vmem:[%s2113 + $0x34] sm:$0xf]
    %v2128 = vld [vmem:[%s2113 + $0x38] sm:$0xf]
    %v2129 = vld [vmem:[%s2113 + $0x3c] sm:$0xf]
    %v2146 = vunpack.c.l.b16 %v2114
    %v2147 = vunpack.c.l.b16 %v2115
    %v2148 = vunpack.c.l.b16 %v2116
    %v2149 = vunpack.c.l.b16 %v2117
    %v2150 = vunpack.c.l.b16 %v2118
    %v2151 = vunpack.c.l.b16 %v2119
    %v2152 = vunpack.c.l.b16 %v2120
    %v2153 = vunpack.c.l.b16 %v2121
    %v2154 = vunpack.c.l.b16 %v2122
    %v2155 = vunpack.c.l.b16 %v2123
    %v2156 = vunpack.c.l.b16 %v2124
    %v2157 = vunpack.c.l.b16 %v2125
    %v2158 = vunpack.c.l.b16 %v2126
    %v2159 = vunpack.c.l.b16 %v2127
    %v2160 = vunpack.c.l.b16 %v2128
    %v2161 = vunpack.c.l.b16 %v2129
    %v2162 = vpack.c.b16 %v2147, %v2146
    %v2163 = vpack.c.b16 %v2149, %v2148
    %v2164 = vpack.c.b16 %v2151, %v2150
    %v2165 = vpack.c.b16 %v2153, %v2152
    %v2166 = vpack.c.b16 %v2155, %v2154
    %v2167 = vpack.c.b16 %v2157, %v2156
    %v2168 = vpack.c.b16 %v2159, %v2158
    %v2169 = vpack.c.b16 %v2161, %v2160
    %2178 = vmatprep.subr.bf16.mxu0 0
    %2179 = vmatpush1.bf16.msra.mxu0 %v2162
    %2180 = vmatprep.subr.bf16.mxu0 0
    %2181 = vmatpush1.bf16.msra.mxu0 %v2163
    %2182 = vmatprep.subr.bf16.mxu0 0
    %2183 = vmatpush1.bf16.msra.mxu0 %v2164
    %2184 = vmatprep.subr.bf16.mxu0 0
    %2185 = vmatpush1.bf16.msra.mxu0 %v2165
    %2186 = vmatprep.subr.bf16.mxu0 0
    %2187 = vmatpush1.bf16.msra.mxu0 %v2166
    %2188 = vmatprep.subr.bf16.mxu0 0
    %2189 = vmatpush1.bf16.msra.mxu0 %v2167
    %2190 = vmatprep.subr.bf16.mxu0 0
    %2191 = vmatpush1.bf16.msra.mxu0 %v2168
    %2192 = vmatprep.subr.bf16.mxu0 0
    %2193 = vmatpush1.bf16.msra.mxu0 %v2169
    %2194 = vmatprep.subr.bf16.mxu0 0
    %2195 = vmatpush1.bf16.msra.mxu0 0
    %2196 = vmatprep.subr.bf16.mxu0 0
    %2197 = vmatpush1.bf16.msra.mxu0 0
    %2198 = vmatprep.subr.bf16.mxu0 0
    %2199 = vmatpush1.bf16.msra.mxu0 0
    %2200 = vmatprep.subr.bf16.mxu0 0
    %2201 = vmatpush1.bf16.msra.mxu0 0
    %2202 = vmatprep.subr.bf16.mxu0 0
    %2203 = vmatpush1.bf16.msra.mxu0 0
    %2204 = vmatprep.subr.bf16.mxu0 0
    %2205 = vmatpush1.bf16.msra.mxu0 0
    %2206 = vmatprep.subr.bf16.mxu0 0
    %2207 = vmatpush1.bf16.msra.mxu0 0
    %2208 = vmatprep.subr.bf16.mxu0 0
    %2209 = vmatpush1.bf16.msra.mxu0 0
    %2210 = vmatprep.mubr.bf16.mxu0 0
    %2211 = vmatmul.mubr.bf16.gmra.mrb[0].mxu0 %v2112
    %v2212 = vpop.f32.mrb[0].mxu0
    %v2213 = vadd.f32 0.0, %v2212
    %v2214 = vpop.f32.mrb[0].mxu0
    %v2215 = vpop.f32.mrb[0].mxu0
    %v2216 = vadd.f32 0.0, %v2215
    %v2217 = vpop.f32.mrb[0].mxu0
    %2218 = vdwg.mxu0
    %v2219 = vadd.f32 %v1996, %v2213
    %v2220 = vadd.f32 %v1997, %v2216
    %v2221 = vlaneseq
    %v2222 = vshrl.u32 %v2221, 7
    %v2223 = vsub.s32 0, %v2222
    %v2224 = vrot.slane %v1430, %v2223
    %v2225 = vadd.f32 %v2219, %v2224
    %v2226 = vadd.f32 %v2220, %v2224
    %v2228 = vrot.slane %v2226, 7
    %vm2230 = vcmask 1040384
    %v2231 = vsel %vm2230, %v2225, %v2228
    %v2232 = vld [vmem:[%s7] sm:$0x1]
    %v2233 = vld [vmem:[%s7 + $0x1] sm:$0x1]
    %vm2234 = vcmask 254976
    %v2235 = vsel %vm2234, %v2231, 0.0
    %v2236 = vrot.slane %v2235, 4
    %v2237 = vadd.f32 %v2235, %v2236
    %v2238 = vrot.slane %v2237, 2
    %v2239 = vadd.f32 %v2237, %v2238
    %v2240 = vrot.slane %v2239, 1
    %v2241 = vadd.f32 %v2239, %v2240
    %v2242 = vrcp.pop 2.0
    %v2243 = vmul.f32 %v2241, %v2242
    %v2244 = vsub.f32 %v2231, %v2243
    %v2245 = vmul.f32 %v2244, %v2244
    %v2246 = vsel %vm2234, %v2245, 0.0
    %v2247 = vrot.slane %v2246, 4
    %v2248 = vadd.f32 %v2246, %v2247
    %v2249 = vrot.slane %v2248, 2
    %v2250 = vadd.f32 %v2248, %v2249
    %v2251 = vrot.slane %v2250, 1
    %v2252 = vadd.f32 %v2250, %v2251
    %v2253 = vmul.f32 %v2252, %v2242
    %v2254 = vadd.f32 %v2253, 1e-05
    %v2255 = vrsqrt.pop %v2254
    %v2256 = vmul.f32 %v2244, %v2255
    %v2257 = vlaneseq
    %v2258 = vshrl.u32 %v2257, 7
    %v2259 = vsub.s32 0, %v2258
    %v2260 = vrot.slane %v2232, %v2259
    %v2261 = vmul.f32 %v2256, %v2260
    %v2262 = vlaneseq
    %v2263 = vshrl.u32 %v2262, 7
    %v2264 = vsub.s32 0, %v2263
    %v2265 = vrot.slane %v2233, %v2264
    %v2266 = vadd.f32 %v2261, %v2265
    %v2267 = vmul.f32 %v2266, %v2266
    %v2268 = vsel %vm2234, %v2267, 0.0
    %2269 = vadd.xlane.f32.xlu0 %v2268
    %v2270 = vpop.xlane.xlu0 %2269
    %v2271 = vrsqrt.pop %v2270
    %v2272 = vmul.f32 %v2266, %v2271
    %v2273 = vld [vmem:[%s7 + $0x2] sm:$0x1]
    %v2274 = vld [vmem:[%s7 + $0x3] sm:$0x1]
    %v2275 = vlaneseq
    %v2276 = vshrl.u32 %v2275, 7
    %v2277 = vsub.s32 0, %v2276
    %v2278 = vrot.slane %v2274, %v2277
    %v2279 = vmul.f32 %v2272, %v2278
    %v2280 = vsel %vm2234, %v2279, 0.0
    %2281 = vadd.xlane.f32.xlu0 %v2280
    %v2282 = vpop.xlane.xlu0 %2281
    %v2283 = vld [vmem:[%s7 + $0x4] sm:$0x1]
    %v2284 = vlaneseq
    %v2285 = vshrl.u32 %v2284, 7
    %v2286 = vsub.s32 0, %v2285
    %v2287 = vrot.slane %v2283, %v2286
    %v2288 = vmul.f32 %v2272, %v2287
    %v2289 = vsel %vm2234, %v2288, 0.0
    %2290 = vadd.xlane.f32.xlu0 %v2289
    %v2291 = vpop.xlane.xlu0 %2290
    %vm2292 = vcmask 7168
    %v2293 = vsel %vm2292, %v2282, %v2291
    %v2294 = vlaneseq
    %v2295 = vshrl.u32 %v2294, 7
    %v2296 = vsub.s32 0, %v2295
    %v2297 = vrot.slane %v2273, %v2296
    %v2298 = vadd.f32 %v2293, %v2297
    %vm2299 = vcmask 9216
    %2300 = vst.msk [vmem:[#allocation2] sm:$0x3] %vm2299, %v2298
    // Predicated region
    $region34: #{vit_bh_forward.1} parent=1 // pred_check
      _
    $region35: #{vit_bh_forward.1} parent=1 // pred_check_branch
      %2302 = sbr.rel (0) target = $region37
    $region36: #{vit_bh_forward.1} parent=1 // pred_region
      %s2304 = ssub.s32 32, 32
      %2305 = vsyncadd [#allocation3], %s2304
      %s2307 = sshll.u32 [#allocation2], 4
      %s2308 = int_to_ptr.vmem [resolvable:$true] %s2307
      %2310 = dma.vmem_to_hbm [thread:$0]  %s2308, 32, %s8, [#allocation3]
    $region37: #{vit_bh_forward.1} parent=1 // pred_fallthru
      _
    // Predicated region
    $region38: #{vit_bh_forward.1} parent=1 // pred_check
      _
    $region39: #{vit_bh_forward.1} parent=1 // pred_check_branch
      %2312 = sbr.rel (0) target = $region41
    $region40: #{vit_bh_forward.1} parent=1 // pred_region
      %2313 = dma.done [#allocation3], 32
    $region41: #{vit_bh_forward.1} parent=1 // pred_fallthru
      _
    %2314 = vsyncpa [#allocation3], 1

</llo_original>
